<compile_context>
chip_gen: v6e
topology: v6e:2x2x1
jax: 0.10.0
libtpu: 0.0.40
codegen_flags: <defaults>
</compile_context>

<pallas_src>
import math
import functools

import jax
import jax.numpy as jnp
from jax.experimental import pallas as pl
from jax.experimental.pallas import tpu as pltpu


# ----------------------------------------------------------------------------
# Helpers
# ----------------------------------------------------------------------------

_VMEM_LIMIT = 32 * 1024 * 1024  # safe on v5e/v6e/v7x; tiles below use a few MiB


def _pick_tile(dim, target):
    """Largest clean tile: `target` if it divides `dim`, else the full dim."""
    if dim <= target:
        return dim
    if dim % target == 0:
        return target
    return dim  # fallback: whole axis (only hit for awkward sizes)


# ----------------------------------------------------------------------------
# Tiled linear: y = x @ wt + b, optional fused ReLU
# ----------------------------------------------------------------------------

def _linear_kernel(x_ref, wt_ref, b_ref, o_ref, acc_ref, *, relu):
    k = pl.program_id(2)

    @pl.when(k == 0)
    def _init():
        acc_ref[...] = jnp.zeros_like(acc_ref)

    acc_ref[...] += jnp.dot(x_ref[...], wt_ref[...],
                            preferred_element_type=jnp.float32)

    @pl.when(k == pl.num_programs(2) - 1)
    def _fin():
        z = acc_ref[...] + b_ref[...]
        if relu:
            z = jnp.maximum(z, 0.0)
        o_ref[...] = z


def linear_pallas(x2d, wt, b2, relu=False, *, tm=512, tn=256, tk=512):
    """PyTorch nn.Linear semantics with pre-transposed weight wt=(Din,Dout)."""
    M, K = x2d.shape
    _, N = wt.shape
    tm = _pick_tile(M, tm)
    tn = _pick_tile(N, tn)
    tk = _pick_tile(K, tk)
    grid = (M // tm, N // tn, K // tk)
    return pl.pallas_call(
        functools.partial(_linear_kernel, relu=relu),
        out_shape=jax.ShapeDtypeStruct((M, N), jnp.float32),
        grid_spec=pltpu.PrefetchScalarGridSpec(
            num_scalar_prefetch=0,
            grid=grid,
            in_specs=[
                pl.BlockSpec((tm, tk), lambda i, j, k: (i, k)),
                pl.BlockSpec((tk, tn), lambda i, j, k: (k, j)),
                pl.BlockSpec((1, tn), lambda i, j, k: (0, j)),
            ],
            out_specs=pl.BlockSpec((tm, tn), lambda i, j, k: (i, j)),
            scratch_shapes=[pltpu.VMEM((tm, tn), jnp.float32)],
        ),
        compiler_params=pltpu.CompilerParams(
            dimension_semantics=("parallel", "parallel", "arbitrary"),
            vmem_limit_bytes=_VMEM_LIMIT),
    )(x2d, wt, b2)


# ----------------------------------------------------------------------------
# Fused tiled linear + bias + residual add + LayerNorm (over last dim)
# ----------------------------------------------------------------------------

def _linear_add_ln_kernel(x_ref, wt_ref, b_ref, r_ref, g_ref, be_ref,
                          o_ref, acc_ref, *, eps):
    k = pl.program_id(1)

    @pl.when(k == 0)
    def _init():
        acc_ref[...] = jnp.zeros_like(acc_ref)

    acc_ref[...] += jnp.dot(x_ref[...], wt_ref[...],
                            preferred_element_type=jnp.float32)

    @pl.when(k == pl.num_programs(1) - 1)
    def _fin():
        z = acc_ref[...] + b_ref[...] + r_ref[...]
        mean = jnp.mean(z, axis=-1, keepdims=True)
        var = jnp.mean((z - mean) ** 2, axis=-1, keepdims=True)
        yn = (z - mean) * jax.lax.rsqrt(var + eps)
        o_ref[...] = g_ref[...] * yn + be_ref[...]


def linear_add_ln_pallas(x2d, wt, b2, resid, gamma2, beta2,
                         eps=1e-5, *, tm=256, tk=512):
    """LayerNorm(x @ wt + b + resid) * gamma + beta  (LN over the full Dout)."""
    M, K = x2d.shape
    _, N = wt.shape
    tm = _pick_tile(M, tm)
    tk = _pick_tile(K, tk)
    grid = (M // tm, K // tk)
    return pl.pallas_call(
        functools.partial(_linear_add_ln_kernel, eps=eps),
        out_shape=jax.ShapeDtypeStruct((M, N), jnp.float32),
        grid_spec=pltpu.PrefetchScalarGridSpec(
            num_scalar_prefetch=0,
            grid=grid,
            in_specs=[
                pl.BlockSpec((tm, tk), lambda i, k: (i, k)),
                pl.BlockSpec((tk, N), lambda i, k: (k, 0)),
                pl.BlockSpec((1, N), lambda i, k: (0, 0)),
                pl.BlockSpec((tm, N), lambda i, k: (i, 0)),
                pl.BlockSpec((1, N), lambda i, k: (0, 0)),
                pl.BlockSpec((1, N), lambda i, k: (0, 0)),
            ],
            out_specs=pl.BlockSpec((tm, N), lambda i, k: (i, 0)),
            scratch_shapes=[pltpu.VMEM((tm, N), jnp.float32)],
        ),
        compiler_params=pltpu.CompilerParams(
            dimension_semantics=("parallel", "arbitrary"),
            vmem_limit_bytes=_VMEM_LIMIT),
    )(x2d, wt, b2, resid, gamma2, beta2)


# ----------------------------------------------------------------------------
# Attention kernels (grid over batch, all heads per step).
# QKV / Q / KV projections are fused in-kernel: the projection weights are tiny
# relative to VMEM and their block index is constant over the grid, so they stay
# resident and the (B,S,3D)/(B,S,2D)/(B,S,D) intermediates never touch HBM.
# ----------------------------------------------------------------------------

def _sdpa_head(q, k, v, scale):
    # scores via dot_general contracting last dims (no k.T materialization)
    s = jax.lax.dot_general(q, k, (((1,), (1,)), ((), ())),
                            preferred_element_type=jnp.float32) * scale
    s = s - jnp.max(s, axis=-1, keepdims=True)
    p = jnp.exp(s)
    p = p * pl.reciprocal(jnp.sum(p, axis=-1, keepdims=True), approx=True)
    return jnp.dot(p, v, preferred_element_type=jnp.float32)


def _self_attn_kernel(y_ref, wqkv_ref, bqkv_ref, o_ref, *, H, hd):
    # y_ref: (1, Sq, D); wqkv: (D, 3D) packed per-head as [q_h | k_h | v_h];
    # o_ref: (1, H, Sq, hd)
    scale = 1.0 / math.sqrt(hd)
    qkv = jnp.dot(y_ref[0], wqkv_ref[...],
                  preferred_element_type=jnp.float32) + bqkv_ref[...]
    for h in range(H):
        base = 3 * hd * h
        q = qkv[:, base:base + hd]
        k = qkv[:, base + hd:base + 2 * hd]
        v = qkv[:, base + 2 * hd:base + 3 * hd]
        o_ref[0, h] = _sdpa_head(q, k, v, scale)


def _cross_attn_kernel(y_ref, x_ref, wq_ref, bq_ref, wkv_ref, bkv_ref,
                       o_ref, *, H, hd):
    # y_ref: (1, Sq, D) -> queries; x_ref: (1, Sk, D) -> keys/values;
    # wkv packed per-head as [k_h | v_h]; o_ref: (1, H, Sq, hd)
    scale = 1.0 / math.sqrt(hd)
    qm = jnp.dot(y_ref[0], wq_ref[...],
                 preferred_element_type=jnp.float32) + bq_ref[...]
    kvm = jnp.dot(x_ref[0], wkv_ref[...],
                  preferred_element_type=jnp.float32) + bkv_ref[...]
    for h in range(H):
        q = qm[:, h * hd:(h + 1) * hd]
        k = kvm[:, 2 * hd * h:2 * hd * h + hd]
        v = kvm[:, 2 * hd * h + hd:2 * hd * h + 2 * hd]
        o_ref[0, h] = _sdpa_head(q, k, v, scale)


def self_attention_pallas(y3, wqkv, bqkv, num_heads):
    B, Sq, D = y3.shape
    threeD = wqkv.shape[1]
    hd = D // num_heads
    return pl.pallas_call(
        functools.partial(_self_attn_kernel, H=num_heads, hd=hd),
        out_shape=jax.ShapeDtypeStruct((B, num_heads, Sq, hd), jnp.float32),
        grid=(B,),
        in_specs=[
            pl.BlockSpec((1, Sq, D), lambda b: (b, 0, 0)),
            pl.BlockSpec((D, threeD), lambda b: (0, 0)),
            pl.BlockSpec((1, threeD), lambda b: (0, 0)),
        ],
        out_specs=pl.BlockSpec((1, num_heads, Sq, hd), lambda b: (b, 0, 0, 0)),
        compiler_params=pltpu.CompilerParams(
            dimension_semantics=("parallel",),
            vmem_limit_bytes=_VMEM_LIMIT),
    )(y3, wqkv, bqkv)


def cross_attention_pallas(y3, x3, wq, bq, wkv, bkv, num_heads):
    B, Sq, D = y3.shape
    _, Sk, _ = x3.shape
    twoD = wkv.shape[1]
    hd = D // num_heads
    return pl.pallas_call(
        functools.partial(_cross_attn_kernel, H=num_heads, hd=hd),
        out_shape=jax.ShapeDtypeStruct((B, num_heads, Sq, hd), jnp.float32),
        grid=(B,),
        in_specs=[
            pl.BlockSpec((1, Sq, D), lambda b: (b, 0, 0)),
            pl.BlockSpec((1, Sk, D), lambda b: (b, 0, 0)),
            pl.BlockSpec((D, D), lambda b: (0, 0)),
            pl.BlockSpec((1, D), lambda b: (0, 0)),
            pl.BlockSpec((D, twoD), lambda b: (0, 0)),
            pl.BlockSpec((1, twoD), lambda b: (0, 0)),
        ],
        out_specs=pl.BlockSpec((1, num_heads, Sq, hd), lambda b: (b, 0, 0, 0)),
        compiler_params=pltpu.CompilerParams(
            dimension_semantics=("parallel",),
            vmem_limit_bytes=_VMEM_LIMIT),
    )(y3, x3, wq, bq, wkv, bkv)


# ----------------------------------------------------------------------------
# Parameter init (deterministic, PyTorch-default-like bounds).
# Weights are stored PRE-TRANSPOSED as (Din, Dout); biases as (1, Dout).
# ----------------------------------------------------------------------------

def _lin_init(kw, kb, dout, din):
    bound = 1.0 / math.sqrt(din)
    wt = jax.random.uniform(kw, (din, dout), jnp.float32, -bound, bound)
    b = jax.random.uniform(kb, (1, dout), jnp.float32, -bound, bound)
    return wt, b


def init_decoder_layer(key, d_model, d_data, ffn_hidden):
    ks = jax.random.split(key, 16)
    p = {}
    p["emb_wt"], p["emb_b"] = _lin_init(ks[0], ks[1], d_model, d_data)        # target_embedding
    p["qkv_wt"], p["qkv_b"] = _lin_init(ks[2], ks[3], 3 * d_model, d_model)   # self-attn qkv
    p["so_wt"], p["so_b"] = _lin_init(ks[4], ks[5], d_model, d_model)         # self-attn out
    p["kv_wt"], p["kv_b"] = _lin_init(ks[6], ks[7], 2 * d_model, d_model)     # cross-attn kv
    p["q_wt"], p["q_b"] = _lin_init(ks[8], ks[9], d_model, d_model)           # cross-attn q
    p["co_wt"], p["co_b"] = _lin_init(ks[10], ks[11], d_model, d_model)       # cross-attn out
    p["f1_wt"], p["f1_b"] = _lin_init(ks[12], ks[13], ffn_hidden, d_model)    # ffn linear1
    p["f2_wt"], p["f2_b"] = _lin_init(ks[14], ks[15], d_model, ffn_hidden)    # ffn linear2
    for i in (1, 2, 3):
        p[f"g{i}"] = jnp.ones((1, d_model), jnp.float32)
        p[f"b{i}"] = jnp.zeros((1, d_model), jnp.float32)
    return p


def init_decoder(key, d_model, d_data, ffn_hidden, num_layers):
    keys = jax.random.split(key, num_layers)
    return [init_decoder_layer(k, d_model, d_data, ffn_hidden) for k in keys]


# ----------------------------------------------------------------------------
# Forward pass
# ----------------------------------------------------------------------------

def decoder_layer_forward(p, x, y, num_heads):
    B, Sy, _ = y.shape
    _, Sx, _ = x.shape
    D = p["emb_wt"].shape[1]
    H = num_heads

    y2d = y.reshape(B * Sy, -1)

    # target_embedding
    y_emb = linear_pallas(y2d, p["emb_wt"], p["emb_b"])                        # (B*Sy, D)
    y_emb3 = y_emb.reshape(B, Sy, D)

    # --- self attention (QKV projection fused in-kernel) ---
    vals = self_attention_pallas(y_emb3, p["qkv_wt"], p["qkv_b"], H)           # (B, H, Sy, hd)
    # reference's exact (head-unpermuted) row-major reshape (B,H,Sy,hd)->(B*Sy,D)
    vals = vals.reshape(B * Sy, D)
    # fused: out-proj + bias + residual + norm1
    y1 = linear_add_ln_pallas(vals, p["so_wt"], p["so_b"], y_emb, p["g1"], p["b1"])

    # --- cross attention: kv from x, q from current y (both projections fused) ---
    vals2 = cross_attention_pallas(y1.reshape(B, Sy, D), x,
                                   p["q_wt"], p["q_b"],
                                   p["kv_wt"], p["kv_b"], H)                   # (B, H, Sy, hd)
    vals2 = vals2.reshape(B * Sy, D)
    # fused: out-proj + bias + residual + norm2
    y2 = linear_add_ln_pallas(vals2, p["co_wt"], p["co_b"], y1, p["g2"], p["b2"])

    # --- position-wise FFN ---
    h = linear_pallas(y2, p["f1_wt"], p["f1_b"], relu=True)                    # (B*Sy, ffn)
    # fused: linear2 + bias + residual + norm3
    y3 = linear_add_ln_pallas(h, p["f2_wt"], p["f2_b"], y2, p["g3"], p["b3"])

    return y3.reshape(B, Sy, D)


def decoder_forward(layer_params, x, y, mask, num_heads):
    # `mask` is unused by the reference forward (never reaches scaled_dot_product).
    del mask
    for p in layer_params:
        y = decoder_layer_forward(p, x, y, num_heads)
    return y


# ----------------------------------------------------------------------------
# Demo
# ----------------------------------------------------------------------------

if __name__ == "__main__":
    d_model = 32
    d_data = 32          # must equal d_model for num_layers > 1 (as in the reference)
    ffn_hidden = 64
    num_heads = 4
    num_layers = 2
    B, Sx, Sy = 2, 8, 8

    key = jax.random.PRNGKey(0)
    kp, kx, ky = jax.random.split(key, 3)

    params = init_decoder(kp, d_model, d_data, ffn_hidden, num_layers)
    x = jax.random.normal(kx, (B, Sx, d_model), jnp.float32)   # encoder-side features
    y = jax.random.normal(ky, (B, Sy, d_data), jnp.float32)    # decoder-side targets
    mask = None                                                # ignored by reference forward

    fwd = jax.jit(functools.partial(decoder_forward, num_heads=num_heads))
    out = fwd(params, x, y, mask)
    out = jax.block_until_ready(out)

    assert out.shape == (B, Sy, d_model)
    assert bool(jnp.all(jnp.isfinite(out)))
    print("KERNEL_OK")
</pallas_src>

<mosaic_0001>
module attributes {stable_mosaic.version = 11 : i64} {
  func.func @_self_attn_kernel(%arg0: i32, %arg1: memref<1x8x32xf32, #tpu.memory_space<vmem>>, %arg2: memref<32x96xf32, #tpu.memory_space<vmem>>, %arg3: memref<1x96xf32, #tpu.memory_space<vmem>>, %arg4: memref<1x4x8x8xf32, #tpu.memory_space<vmem>>) attributes {dimension_semantics = [#tpu.dimension_semantics<parallel>], iteration_bounds = array<i64: 2>, scalar_prefetch = 0 : i64, scratch_operands = 0 : i64, tpu.core_type = #tpu.core_type<tc>, window_params = [{transform_indices = @transform_0, window_bounds = array<i64: 1, 8, 32>}, {pipeline_mode = #tpu.pipeline_mode<synchronous>, transform_indices = @transform_1, window_bounds = array<i64: 32, 96>}, {pipeline_mode = #tpu.pipeline_mode<synchronous>, transform_indices = @transform_2, window_bounds = array<i64: 1, 96>}, {transform_indices = @transform_3, window_bounds = array<i64: 1, 4, 8, 8>}]} {
    %c0 = arith.constant 0 : index
    %c0_0 = arith.constant 0 : index
    %c0_1 = arith.constant 0 : index
    %0 = vector.load %arg1[%c0, %c0_0, %c0_1] : memref<1x8x32xf32, #tpu.memory_space<vmem>>, vector<1x8x32xf32>
    %1 = vector.shape_cast %0 : vector<1x8x32xf32> to vector<8x32xf32>
    %c0_2 = arith.constant 0 : index
    %c0_3 = arith.constant 0 : index
    %2 = vector.load %arg2[%c0_2, %c0_3] : memref<32x96xf32, #tpu.memory_space<vmem>>, vector<32x96xf32>
    %cst = arith.constant dense<0.000000e+00> : vector<8x96xf32>
    %3 = tpu.matmul %1, %2, %cst {dimension_numbers = #tpu.dot_dimension_numbers<[1], [0], [0], [1], [0, 0, 1, 1], [], []>} : vector<8x32xf32>, vector<32x96xf32>, vector<8x96xf32> -> vector<8x96xf32>
    %c0_4 = arith.constant 0 : index
    %c0_5 = arith.constant 0 : index
    %4 = vector.load %arg3[%c0_4, %c0_5] : memref<1x96xf32, #tpu.memory_space<vmem>>, vector<1x96xf32>
    %5 = vector.broadcast %4 : vector<1x96xf32> to vector<8x96xf32>
    %6 = arith.addf %3, %5 : vector<8x96xf32>
    %7 = vector.extract_strided_slice %6 {offsets = [0, 0], sizes = [8, 8], strides = [1, 1]} : vector<8x96xf32> to vector<8x8xf32>
    %8 = vector.extract_strided_slice %6 {offsets = [0, 8], sizes = [8, 8], strides = [1, 1]} : vector<8x96xf32> to vector<8x8xf32>
    %9 = vector.extract_strided_slice %6 {offsets = [0, 16], sizes = [8, 8], strides = [1, 1]} : vector<8x96xf32> to vector<8x8xf32>
    %cst_6 = arith.constant dense<0.000000e+00> : vector<8x8xf32>
    %10 = tpu.matmul %7, %8, %cst_6 {dimension_numbers = #tpu.dot_dimension_numbers<[1], [1], [0], [0], [0, 0, 1, 0], [], []>} : vector<8x8xf32>, vector<8x8xf32>, vector<8x8xf32> -> vector<8x8xf32>
    %cst_7 = arith.constant 0.353553385 : f32
    %11 = vector.broadcast %cst_7 : f32 to vector<8x8xf32>
    %12 = arith.mulf %10, %11 : vector<8x8xf32>
    %cst_8 = arith.constant dense<0xFF800000> : vector<8xf32>
    %13 = vector.multi_reduction <maximumf>, %12, %cst_8 [1] : vector<8x8xf32> to vector<8xf32>
    %14 = vector.shape_cast %13 : vector<8xf32> to vector<8x1xf32>
    %15 = vector.broadcast %14 : vector<8x1xf32> to vector<8x8xf32>
    %16 = arith.subf %12, %15 : vector<8x8xf32>
    %17 = math.exp %16 : vector<8x8xf32>
    %cst_9 = arith.constant dense<0.000000e+00> : vector<8xf32>
    %18 = vector.multi_reduction <add>, %17, %cst_9 [1] : vector<8x8xf32> to vector<8xf32>
    %19 = vector.shape_cast %18 : vector<8xf32> to vector<8x1xf32>
    %20 = tpu.reciprocal %19 {approx = true} : vector<8x1xf32> -> vector<8x1xf32>
    %21 = vector.broadcast %20 : vector<8x1xf32> to vector<8x8xf32>
    %22 = arith.mulf %17, %21 : vector<8x8xf32>
    %cst_10 = arith.constant dense<0.000000e+00> : vector<8x8xf32>
    %23 = tpu.matmul %22, %9, %cst_10 {dimension_numbers = #tpu.dot_dimension_numbers<[1], [0], [0], [1], [0, 0, 1, 1], [], []>} : vector<8x8xf32>, vector<8x8xf32>, vector<8x8xf32> -> vector<8x8xf32>
    %c0_11 = arith.constant 0 : index
    %c0_12 = arith.constant 0 : index
    %c0_13 = arith.constant 0 : index
    %c0_14 = arith.constant 0 : index
    %24 = vector.load %arg4[%c0_11, %c0_12, %c0_13, %c0_14] : memref<1x4x8x8xf32, #tpu.memory_space<vmem>>, vector<1x1x8x8xf32>
    %25 = vector.shape_cast %24 : vector<1x1x8x8xf32> to vector<8x8xf32>
    %26 = vector.shape_cast %23 : vector<8x8xf32> to vector<1x1x8x8xf32>
    tpu.vector_store %arg4[%c0_11, %c0_12, %c0_13, %c0_14], %26 {strides = array<i32>} : memref<1x4x8x8xf32, #tpu.memory_space<vmem>>, vector<1x1x8x8xf32>,
    %27 = vector.extract_strided_slice %6 {offsets = [0, 24], sizes = [8, 8], strides = [1, 1]} : vector<8x96xf32> to vector<8x8xf32>
    %28 = vector.extract_strided_slice %6 {offsets = [0, 32], sizes = [8, 8], strides = [1, 1]} : vector<8x96xf32> to vector<8x8xf32>
    %29 = vector.extract_strided_slice %6 {offsets = [0, 40], sizes = [8, 8], strides = [1, 1]} : vector<8x96xf32> to vector<8x8xf32>
    %cst_15 = arith.constant dense<0.000000e+00> : vector<8x8xf32>
    %30 = tpu.matmul %27, %28, %cst_15 {dimension_numbers = #tpu.dot_dimension_numbers<[1], [1], [0], [0], [0, 0, 1, 0], [], []>} : vector<8x8xf32>, vector<8x8xf32>, vector<8x8xf32> -> vector<8x8xf32>
    %cst_16 = arith.constant 0.353553385 : f32
    %31 = vector.broadcast %cst_16 : f32 to vector<8x8xf32>
    %32 = arith.mulf %30, %31 : vector<8x8xf32>
    %cst_17 = arith.constant dense<0xFF800000> : vector<8xf32>
    %33 = vector.multi_reduction <maximumf>, %32, %cst_17 [1] : vector<8x8xf32> to vector<8xf32>
    %34 = vector.shape_cast %33 : vector<8xf32> to vector<8x1xf32>
    %35 = vector.broadcast %34 : vector<8x1xf32> to vector<8x8xf32>
    %36 = arith.subf %32, %35 : vector<8x8xf32>
    %37 = math.exp %36 : vector<8x8xf32>
    %cst_18 = arith.constant dense<0.000000e+00> : vector<8xf32>
    %38 = vector.multi_reduction <add>, %37, %cst_18 [1] : vector<8x8xf32> to vector<8xf32>
    %39 = vector.shape_cast %38 : vector<8xf32> to vector<8x1xf32>
    %40 = tpu.reciprocal %39 {approx = true} : vector<8x1xf32> -> vector<8x1xf32>
    %41 = vector.broadcast %40 : vector<8x1xf32> to vector<8x8xf32>
    %42 = arith.mulf %37, %41 : vector<8x8xf32>
    %cst_19 = arith.constant dense<0.000000e+00> : vector<8x8xf32>
    %43 = tpu.matmul %42, %29, %cst_19 {dimension_numbers = #tpu.dot_dimension_numbers<[1], [0], [0], [1], [0, 0, 1, 1], [], []>} : vector<8x8xf32>, vector<8x8xf32>, vector<8x8xf32> -> vector<8x8xf32>
    %c0_20 = arith.constant 0 : index
    %c1 = arith.constant 1 : index
    %c0_21 = arith.constant 0 : index
    %c0_22 = arith.constant 0 : index
    %44 = vector.load %arg4[%c0_20, %c1, %c0_21, %c0_22] : memref<1x4x8x8xf32, #tpu.memory_space<vmem>>, vector<1x1x8x8xf32>
    %45 = vector.shape_cast %44 : vector<1x1x8x8xf32> to vector<8x8xf32>
    %46 = vector.shape_cast %43 : vector<8x8xf32> to vector<1x1x8x8xf32>
    tpu.vector_store %arg4[%c0_20, %c1, %c0_21, %c0_22], %46 {strides = array<i32>} : memref<1x4x8x8xf32, #tpu.memory_space<vmem>>, vector<1x1x8x8xf32>,
    %47 = vector.extract_strided_slice %6 {offsets = [0, 48], sizes = [8, 8], strides = [1, 1]} : vector<8x96xf32> to vector<8x8xf32>
    %48 = vector.extract_strided_slice %6 {offsets = [0, 56], sizes = [8, 8], strides = [1, 1]} : vector<8x96xf32> to vector<8x8xf32>
    %49 = vector.extract_strided_slice %6 {offsets = [0, 64], sizes = [8, 8], strides = [1, 1]} : vector<8x96xf32> to vector<8x8xf32>
    %cst_23 = arith.constant dense<0.000000e+00> : vector<8x8xf32>
    %50 = tpu.matmul %47, %48, %cst_23 {dimension_numbers = #tpu.dot_dimension_numbers<[1], [1], [0], [0], [0, 0, 1, 0], [], []>} : vector<8x8xf32>, vector<8x8xf32>, vector<8x8xf32> -> vector<8x8xf32>
    %cst_24 = arith.constant 0.353553385 : f32
    %51 = vector.broadcast %cst_24 : f32 to vector<8x8xf32>
    %52 = arith.mulf %50, %51 : vector<8x8xf32>
    %cst_25 = arith.constant dense<0xFF800000> : vector<8xf32>
    %53 = vector.multi_reduction <maximumf>, %52, %cst_25 [1] : vector<8x8xf32> to vector<8xf32>
    %54 = vector.shape_cast %53 : vector<8xf32> to vector<8x1xf32>
    %55 = vector.broadcast %54 : vector<8x1xf32> to vector<8x8xf32>
    %56 = arith.subf %52, %55 : vector<8x8xf32>
    %57 = math.exp %56 : vector<8x8xf32>
    %cst_26 = arith.constant dense<0.000000e+00> : vector<8xf32>
    %58 = vector.multi_reduction <add>, %57, %cst_26 [1] : vector<8x8xf32> to vector<8xf32>
    %59 = vector.shape_cast %58 : vector<8xf32> to vector<8x1xf32>
    %60 = tpu.reciprocal %59 {approx = true} : vector<8x1xf32> -> vector<8x1xf32>
    %61 = vector.broadcast %60 : vector<8x1xf32> to vector<8x8xf32>
    %62 = arith.mulf %57, %61 : vector<8x8xf32>
    %cst_27 = arith.constant dense<0.000000e+00> : vector<8x8xf32>
    %63 = tpu.matmul %62, %49, %cst_27 {dimension_numbers = #tpu.dot_dimension_numbers<[1], [0], [0], [1], [0, 0, 1, 1], [], []>} : vector<8x8xf32>, vector<8x8xf32>, vector<8x8xf32> -> vector<8x8xf32>
    %c0_28 = arith.constant 0 : index
    %c2 = arith.constant 2 : index
    %c0_29 = arith.constant 0 : index
    %c0_30 = arith.constant 0 : index
    %64 = vector.load %arg4[%c0_28, %c2, %c0_29, %c0_30] : memref<1x4x8x8xf32, #tpu.memory_space<vmem>>, vector<1x1x8x8xf32>
    %65 = vector.shape_cast %64 : vector<1x1x8x8xf32> to vector<8x8xf32>
    %66 = vector.shape_cast %63 : vector<8x8xf32> to vector<1x1x8x8xf32>
    tpu.vector_store %arg4[%c0_28, %c2, %c0_29, %c0_30], %66 {strides = array<i32>} : memref<1x4x8x8xf32, #tpu.memory_space<vmem>>, vector<1x1x8x8xf32>,
    %67 = vector.extract_strided_slice %6 {offsets = [0, 72], sizes = [8, 8], strides = [1, 1]} : vector<8x96xf32> to vector<8x8xf32>
    %68 = vector.extract_strided_slice %6 {offsets = [0, 80], sizes = [8, 8], strides = [1, 1]} : vector<8x96xf32> to vector<8x8xf32>
    %69 = vector.extract_strided_slice %6 {offsets = [0, 88], sizes = [8, 8], strides = [1, 1]} : vector<8x96xf32> to vector<8x8xf32>
    %cst_31 = arith.constant dense<0.000000e+00> : vector<8x8xf32>
    %70 = tpu.matmul %67, %68, %cst_31 {dimension_numbers = #tpu.dot_dimension_numbers<[1], [1], [0], [0], [0, 0, 1, 0], [], []>} : vector<8x8xf32>, vector<8x8xf32>, vector<8x8xf32> -> vector<8x8xf32>
    %cst_32 = arith.constant 0.353553385 : f32
    %71 = vector.broadcast %cst_32 : f32 to vector<8x8xf32>
    %72 = arith.mulf %70, %71 : vector<8x8xf32>
    %cst_33 = arith.constant dense<0xFF800000> : vector<8xf32>
    %73 = vector.multi_reduction <maximumf>, %72, %cst_33 [1] : vector<8x8xf32> to vector<8xf32>
    %74 = vector.shape_cast %73 : vector<8xf32> to vector<8x1xf32>
    %75 = vector.broadcast %74 : vector<8x1xf32> to vector<8x8xf32>
    %76 = arith.subf %72, %75 : vector<8x8xf32>
    %77 = math.exp %76 : vector<8x8xf32>
    %cst_34 = arith.constant dense<0.000000e+00> : vector<8xf32>
    %78 = vector.multi_reduction <add>, %77, %cst_34 [1] : vector<8x8xf32> to vector<8xf32>
    %79 = vector.shape_cast %78 : vector<8xf32> to vector<8x1xf32>
    %80 = tpu.reciprocal %79 {approx = true} : vector<8x1xf32> -> vector<8x1xf32>
    %81 = vector.broadcast %80 : vector<8x1xf32> to vector<8x8xf32>
    %82 = arith.mulf %77, %81 : vector<8x8xf32>
    %cst_35 = arith.constant dense<0.000000e+00> : vector<8x8xf32>
    %83 = tpu.matmul %82, %69, %cst_35 {dimension_numbers = #tpu.dot_dimension_numbers<[1], [0], [0], [1], [0, 0, 1, 1], [], []>} : vector<8x8xf32>, vector<8x8xf32>, vector<8x8xf32> -> vector<8x8xf32>
    %c0_36 = arith.constant 0 : index
    %c3 = arith.constant 3 : index
    %c0_37 = arith.constant 0 : index
    %c0_38 = arith.constant 0 : index
    %84 = vector.load %arg4[%c0_36, %c3, %c0_37, %c0_38] : memref<1x4x8x8xf32, #tpu.memory_space<vmem>>, vector<1x1x8x8xf32>
    %85 = vector.shape_cast %84 : vector<1x1x8x8xf32> to vector<8x8xf32>
    %86 = vector.shape_cast %83 : vector<8x8xf32> to vector<1x1x8x8xf32>
    tpu.vector_store %arg4[%c0_36, %c3, %c0_37, %c0_38], %86 {strides = array<i32>} : memref<1x4x8x8xf32, #tpu.memory_space<vmem>>, vector<1x1x8x8xf32>,
    return
  }
  func.func @transform_0(%arg0: i32) -> (i32, i32, i32) {
    %c0_i32 = arith.constant 0 : i32
    %c0_i32_0 = arith.constant 0 : i32
    %c0_i32_1 = arith.constant 0 : i32
    return %arg0, %c0_i32, %c0_i32_0 : i32, i32, i32
  }
  func.func @transform_1(%arg0: i32) -> (i32, i32) {
    %c0_i32 = arith.constant 0 : i32
    %c0_i32_0 = arith.constant 0 : i32
    %c0_i32_1 = arith.constant 0 : i32
    return %c0_i32, %c0_i32_0 : i32, i32
  }
  func.func @transform_2(%arg0: i32) -> (i32, i32) {
    %c0_i32 = arith.constant 0 : i32
    %c0_i32_0 = arith.constant 0 : i32
    %c0_i32_1 = arith.constant 0 : i32
    return %c0_i32, %c0_i32_0 : i32, i32
  }
  func.func @transform_3(%arg0: i32) -> (i32, i32, i32, i32) {
    %c0_i32 = arith.constant 0 : i32
    %c0_i32_0 = arith.constant 0 : i32
    %c0_i32_1 = arith.constant 0 : i32
    %c0_i32_2 = arith.constant 0 : i32
    return %arg0, %c0_i32, %c0_i32_0, %c0_i32_1 : i32, i32, i32, i32
  }
}

module attributes {stable_mosaic.version = 11 : i64} {
  func.func @_linear_add_ln_kernel(%arg0: i32, %arg1: i32, %arg2: memref<16x32xf32, #tpu.memory_space<vmem>>, %arg3: memref<32x32xf32, #tpu.memory_space<vmem>>, %arg4: memref<1x32xf32, #tpu.memory_space<vmem>>, %arg5: memref<16x32xf32, #tpu.memory_space<vmem>>, %arg6: memref<1x32xf32, #tpu.memory_space<vmem>>, %arg7: memref<1x32xf32, #tpu.memory_space<vmem>>, %arg8: memref<16x32xf32, #tpu.memory_space<vmem>>, %arg9: memref<16x32xf32, #tpu.memory_space<vmem>>) attributes {dimension_semantics = [#tpu.dimension_semantics<parallel>, #tpu.dimension_semantics<arbitrary>], iteration_bounds = array<i64: 1, 1>, scalar_prefetch = 0 : i64, scratch_operands = 1 : i64, tpu.core_type = #tpu.core_type<tc>, window_params = [{transform_indices = @transform_0, window_bounds = array<i64: 16, 32>}, {transform_indices = @transform_1, window_bounds = array<i64: 32, 32>}, {pipeline_mode = #tpu.pipeline_mode<synchronous>, transform_indices = @transform_2, window_bounds = array<i64: 1, 32>}, {transform_indices = @transform_3, window_bounds = array<i64: 16, 32>}, {pipeline_mode = #tpu.pipeline_mode<synchronous>, transform_indices = @transform_4, window_bounds = array<i64: 1, 32>}, {pipeline_mode = #tpu.pipeline_mode<synchronous>, transform_indices = @transform_5, window_bounds = array<i64: 1, 32>}, {transform_indices = @transform_6, window_bounds = array<i64: 16, 32>}]} {
    %c0_i32 = arith.constant 0 : i32
    %0 = arith.cmpi eq, %arg1, %c0_i32 : i32
    %1 = arith.extui %0 : i1 to i32
    %c0_i32_0 = arith.constant 0 : i32
    %2 = arith.cmpi ne, %1, %c0_i32_0 : i32
    scf.if %2 {
      %cst_10 = arith.constant 0.000000e+00 : f32
      %12 = vector.broadcast %cst_10 : f32 to vector<16x32xf32>
      %c0_11 = arith.constant 0 : index
      %c0_12 = arith.constant 0 : index
      %13 = vector.load %arg9[%c0_11, %c0_12] : memref<16x32xf32, #tpu.memory_space<vmem>>, vector<16x32xf32>
      tpu.vector_store %arg9[%c0_11, %c0_12], %12 {strides = array<i32>} : memref<16x32xf32, #tpu.memory_space<vmem>>, vector<16x32xf32>,
    } else {
    }
    %c0 = arith.constant 0 : index
    %c0_1 = arith.constant 0 : index
    %3 = vector.load %arg9[%c0, %c0_1] : memref<16x32xf32, #tpu.memory_space<vmem>>, vector<16x32xf32>
    %c0_2 = arith.constant 0 : index
    %c0_3 = arith.constant 0 : index
    %4 = vector.load %arg2[%c0_2, %c0_3] : memref<16x32xf32, #tpu.memory_space<vmem>>, vector<16x32xf32>
    %c0_4 = arith.constant 0 : index
    %c0_5 = arith.constant 0 : index
    %5 = vector.load %arg3[%c0_4, %c0_5] : memref<32x32xf32, #tpu.memory_space<vmem>>, vector<32x32xf32>
    %cst = arith.constant dense<0.000000e+00> : vector<16x32xf32>
    %6 = tpu.matmul %4, %5, %cst {dimension_numbers = #tpu.dot_dimension_numbers<[1], [0], [0], [1], [0, 0, 1, 1], [], []>} : vector<16x32xf32>, vector<32x32xf32>, vector<16x32xf32> -> vector<16x32xf32>
    %7 = arith.addf %3, %6 : vector<16x32xf32>
    %c0_6 = arith.constant 0 : index
    %c0_7 = arith.constant 0 : index
    %8 = vector.load %arg9[%c0_6, %c0_7] : memref<16x32xf32, #tpu.memory_space<vmem>>, vector<16x32xf32>
    tpu.vector_store %arg9[%c0_6, %c0_7], %7 {strides = array<i32>} : memref<16x32xf32, #tpu.memory_space<vmem>>, vector<16x32xf32>,
    %c0_i32_8 = arith.constant 0 : i32
    %9 = arith.cmpi eq, %arg1, %c0_i32_8 : i32
    %10 = arith.extui %9 : i1 to i32
    %c0_i32_9 = arith.constant 0 : i32
    %11 = arith.cmpi ne, %10, %c0_i32_9 : i32
    scf.if %11 {
      %c0_10 = arith.constant 0 : index
      %c0_11 = arith.constant 0 : index
      %12 = vector.load %arg9[%c0_10, %c0_11] : memref<16x32xf32, #tpu.memory_space<vmem>>, vector<16x32xf32>
      %c0_12 = arith.constant 0 : index
      %c0_13 = arith.constant 0 : index
      %13 = vector.load %arg4[%c0_12, %c0_13] : memref<1x32xf32, #tpu.memory_space<vmem>>, vector<1x32xf32>
      %14 = vector.broadcast %13 : vector<1x32xf32> to vector<16x32xf32>
      %15 = arith.addf %12, %14 : vector<16x32xf32>
      %c0_14 = arith.constant 0 : index
      %c0_15 = arith.constant 0 : index
      %16 = vector.load %arg5[%c0_14, %c0_15] : memref<16x32xf32, #tpu.memory_space<vmem>>, vector<16x32xf32>
      %17 = arith.addf %15, %16 : vector<16x32xf32>
      %cst_16 = arith.constant dense<0.000000e+00> : vector<16xf32>
      %18 = vector.multi_reduction <add>, %17, %cst_16 [1] : vector<16x32xf32> to vector<16xf32>
      %19 = vector.shape_cast %18 : vector<16xf32> to vector<16x1xf32>
      %cst_17 = arith.constant 3.200000e+01 : f32
      %20 = vector.broadcast %cst_17 : f32 to vector<16x1xf32>
      %21 = arith.divf %19, %20 : vector<16x1xf32>
      %22 = vector.broadcast %21 : vector<16x1xf32> to vector<16x32xf32>
      %23 = arith.subf %17, %22 : vector<16x32xf32>
      %24 = arith.mulf %23, %23 : vector<16x32xf32>
      %cst_18 = arith.constant dense<0.000000e+00> : vector<16xf32>
      %25 = vector.multi_reduction <add>, %24, %cst_18 [1] : vector<16x32xf32> to vector<16xf32>
      %26 = vector.shape_cast %25 : vector<16xf32> to vector<16x1xf32>
      %cst_19 = arith.constant 3.200000e+01 : f32
      %27 = vector.broadcast %cst_19 : f32 to vector<16x1xf32>
      %28 = arith.divf %26, %27 : vector<16x1xf32>
      %29 = vector.broadcast %21 : vector<16x1xf32> to vector<16x32xf32>
      %30 = arith.subf %17, %29 : vector<16x32xf32>
      %cst_20 = arith.constant 9.99999974E-6 : f32
      %31 = vector.broadcast %cst_20 : f32 to vector<16x1xf32>
      %32 = arith.addf %28, %31 : vector<16x1xf32>
      %33 = math.rsqrt %32 : vector<16x1xf32>
      %34 = vector.broadcast %33 : vector<16x1xf32> to vector<16x32xf32>
      %35 = arith.mulf %30, %34 : vector<16x32xf32>
      %c0_21 = arith.constant 0 : index
      %c0_22 = arith.constant 0 : index
      %36 = vector.load %arg6[%c0_21, %c0_22] : memref<1x32xf32, #tpu.memory_space<vmem>>, vector<1x32xf32>
      %37 = vector.broadcast %36 : vector<1x32xf32> to vector<16x32xf32>
      %38 = arith.mulf %37, %35 : vector<16x32xf32>
      %c0_23 = arith.constant 0 : index
      %c0_24 = arith.constant 0 : index
      %39 = vector.load %arg7[%c0_23, %c0_24] : memref<1x32xf32, #tpu.memory_space<vmem>>, vector<1x32xf32>
      %40 = vector.broadcast %39 : vector<1x32xf32> to vector<16x32xf32>
      %41 = arith.addf %38, %40 : vector<16x32xf32>
      %c0_25 = arith.constant 0 : index
      %c0_26 = arith.constant 0 : index
      %42 = vector.load %arg8[%c0_25, %c0_26] : memref<16x32xf32, #tpu.memory_space<vmem>>, vector<16x32xf32>
      tpu.vector_store %arg8[%c0_25, %c0_26], %41 {strides = array<i32>} : memref<16x32xf32, #tpu.memory_space<vmem>>, vector<16x32xf32>,
    } else {
    }
    return
  }
  func.func @transform_0(%arg0: i32, %arg1: i32) -> (i32, i32) {
    %c0_i32 = arith.constant 0 : i32
    return %arg0, %arg1 : i32, i32
  }
  func.func @transform_1(%arg0: i32, %arg1: i32) -> (i32, i32) {
    %c0_i32 = arith.constant 0 : i32
    %c0_i32_0 = arith.constant 0 : i32
    return %arg1, %c0_i32 : i32, i32
  }
  func.func @transform_2(%arg0: i32, %arg1: i32) -> (i32, i32) {
    %c0_i32 = arith.constant 0 : i32
    %c0_i32_0 = arith.constant 0 : i32
    %c0_i32_1 = arith.constant 0 : i32
    return %c0_i32, %c0_i32_0 : i32, i32
  }
  func.func @transform_3(%arg0: i32, %arg1: i32) -> (i32, i32) {
    %c0_i32 = arith.constant 0 : i32
    %c0_i32_0 = arith.constant 0 : i32
    return %arg0, %c0_i32 : i32, i32
  }
  func.func @transform_4(%arg0: i32, %arg1: i32) -> (i32, i32) {
    %c0_i32 = arith.constant 0 : i32
    %c0_i32_0 = arith.constant 0 : i32
    %c0_i32_1 = arith.constant 0 : i32
    return %c0_i32, %c0_i32_0 : i32, i32
  }
  func.func @transform_5(%arg0: i32, %arg1: i32) -> (i32, i32) {
    %c0_i32 = arith.constant 0 : i32
    %c0_i32_0 = arith.constant 0 : i32
    %c0_i32_1 = arith.constant 0 : i32
    return %c0_i32, %c0_i32_0 : i32, i32
  }
  func.func @transform_6(%arg0: i32, %arg1: i32) -> (i32, i32) {
    %c0_i32 = arith.constant 0 : i32
    %c0_i32_0 = arith.constant 0 : i32
    return %arg0, %c0_i32 : i32, i32
  }
}

module attributes {stable_mosaic.version = 11 : i64} {
  func.func @_linear_kernel(%arg0: i32, %arg1: i32, %arg2: i32, %arg3: memref<16x32xf32, #tpu.memory_space<vmem>>, %arg4: memref<32x32xf32, #tpu.memory_space<vmem>>, %arg5: memref<1x32xf32, #tpu.memory_space<vmem>>, %arg6: memref<16x32xf32, #tpu.memory_space<vmem>>, %arg7: memref<16x32xf32, #tpu.memory_space<vmem>>) attributes {dimension_semantics = [#tpu.dimension_semantics<parallel>, #tpu.dimension_semantics<parallel>, #tpu.dimension_semantics<arbitrary>], iteration_bounds = array<i64: 1, 1, 1>, scalar_prefetch = 0 : i64, scratch_operands = 1 : i64, tpu.core_type = #tpu.core_type<tc>, window_params = [{transform_indices = @transform_0, window_bounds = array<i64: 16, 32>}, {transform_indices = @transform_1, window_bounds = array<i64: 32, 32>}, {transform_indices = @transform_2, window_bounds = array<i64: 1, 32>}, {transform_indices = @transform_3, window_bounds = array<i64: 16, 32>}]} {
    %c0_i32 = arith.constant 0 : i32
    %0 = arith.cmpi eq, %arg2, %c0_i32 : i32
    %1 = arith.extui %0 : i1 to i32
    %c0_i32_0 = arith.constant 0 : i32
    %2 = arith.cmpi ne, %1, %c0_i32_0 : i32
    scf.if %2 {
      %cst_10 = arith.constant 0.000000e+00 : f32
      %12 = vector.broadcast %cst_10 : f32 to vector<16x32xf32>
      %c0_11 = arith.constant 0 : index
      %c0_12 = arith.constant 0 : index
      %13 = vector.load %arg7[%c0_11, %c0_12] : memref<16x32xf32, #tpu.memory_space<vmem>>, vector<16x32xf32>
      tpu.vector_store %arg7[%c0_11, %c0_12], %12 {strides = array<i32>} : memref<16x32xf32, #tpu.memory_space<vmem>>, vector<16x32xf32>,
    } else {
    }
    %c0 = arith.constant 0 : index
    %c0_1 = arith.constant 0 : index
    %3 = vector.load %arg7[%c0, %c0_1] : memref<16x32xf32, #tpu.memory_space<vmem>>, vector<16x32xf32>
    %c0_2 = arith.constant 0 : index
    %c0_3 = arith.constant 0 : index
    %4 = vector.load %arg3[%c0_2, %c0_3] : memref<16x32xf32, #tpu.memory_space<vmem>>, vector<16x32xf32>
    %c0_4 = arith.constant 0 : index
    %c0_5 = arith.constant 0 : index
    %5 = vector.load %arg4[%c0_4, %c0_5] : memref<32x32xf32, #tpu.memory_space<vmem>>, vector<32x32xf32>
    %cst = arith.constant dense<0.000000e+00> : vector<16x32xf32>
    %6 = tpu.matmul %4, %5, %cst {dimension_numbers = #tpu.dot_dimension_numbers<[1], [0], [0], [1], [0, 0, 1, 1], [], []>} : vector<16x32xf32>, vector<32x32xf32>, vector<16x32xf32> -> vector<16x32xf32>
    %7 = arith.addf %3, %6 : vector<16x32xf32>
    %c0_6 = arith.constant 0 : index
    %c0_7 = arith.constant 0 : index
    %8 = vector.load %arg7[%c0_6, %c0_7] : memref<16x32xf32, #tpu.memory_space<vmem>>, vector<16x32xf32>
    tpu.vector_store %arg7[%c0_6, %c0_7], %7 {strides = array<i32>} : memref<16x32xf32, #tpu.memory_space<vmem>>, vector<16x32xf32>,
    %c0_i32_8 = arith.constant 0 : i32
    %9 = arith.cmpi eq, %arg2, %c0_i32_8 : i32
    %10 = arith.extui %9 : i1 to i32
    %c0_i32_9 = arith.constant 0 : i32
    %11 = arith.cmpi ne, %10, %c0_i32_9 : i32
    scf.if %11 {
      %c0_10 = arith.constant 0 : index
      %c0_11 = arith.constant 0 : index
      %12 = vector.load %arg7[%c0_10, %c0_11] : memref<16x32xf32, #tpu.memory_space<vmem>>, vector<16x32xf32>
      %c0_12 = arith.constant 0 : index
      %c0_13 = arith.constant 0 : index
      %13 = vector.load %arg5[%c0_12, %c0_13] : memref<1x32xf32, #tpu.memory_space<vmem>>, vector<1x32xf32>
      %14 = vector.broadcast %13 : vector<1x32xf32> to vector<16x32xf32>
      %15 = arith.addf %12, %14 : vector<16x32xf32>
      %c0_14 = arith.constant 0 : index
      %c0_15 = arith.constant 0 : index
      %16 = vector.load %arg6[%c0_14, %c0_15] : memref<16x32xf32, #tpu.memory_space<vmem>>, vector<16x32xf32>
      tpu.vector_store %arg6[%c0_14, %c0_15], %15 {strides = array<i32>} : memref<16x32xf32, #tpu.memory_space<vmem>>, vector<16x32xf32>,
    } else {
    }
    return
  }
  func.func @transform_0(%arg0: i32, %arg1: i32, %arg2: i32) -> (i32, i32) {
    %c0_i32 = arith.constant 0 : i32
    return %arg0, %arg2 : i32, i32
  }
  func.func @transform_1(%arg0: i32, %arg1: i32, %arg2: i32) -> (i32, i32) {
    %c0_i32 = arith.constant 0 : i32
    return %arg2, %arg1 : i32, i32
  }
  func.func @transform_2(%arg0: i32, %arg1: i32, %arg2: i32) -> (i32, i32) {
    %c0_i32 = arith.constant 0 : i32
    %c0_i32_0 = arith.constant 0 : i32
    return %c0_i32, %arg1 : i32, i32
  }
  func.func @transform_3(%arg0: i32, %arg1: i32, %arg2: i32) -> (i32, i32) {
    %c0_i32 = arith.constant 0 : i32
    return %arg0, %arg1 : i32, i32
  }
}

module attributes {stable_mosaic.version = 11 : i64} {
  func.func @_cross_attn_kernel(%arg0: i32, %arg1: memref<1x8x32xf32, #tpu.memory_space<vmem>>, %arg2: memref<1x8x32xf32, #tpu.memory_space<vmem>>, %arg3: memref<32x32xf32, #tpu.memory_space<vmem>>, %arg4: memref<1x32xf32, #tpu.memory_space<vmem>>, %arg5: memref<32x64xf32, #tpu.memory_space<vmem>>, %arg6: memref<1x64xf32, #tpu.memory_space<vmem>>, %arg7: memref<1x4x8x8xf32, #tpu.memory_space<vmem>>) attributes {dimension_semantics = [#tpu.dimension_semantics<parallel>], iteration_bounds = array<i64: 2>, scalar_prefetch = 0 : i64, scratch_operands = 0 : i64, tpu.core_type = #tpu.core_type<tc>, window_params = [{transform_indices = @transform_0, window_bounds = array<i64: 1, 8, 32>}, {transform_indices = @transform_1, window_bounds = array<i64: 1, 8, 32>}, {pipeline_mode = #tpu.pipeline_mode<synchronous>, transform_indices = @transform_2, window_bounds = array<i64: 32, 32>}, {pipeline_mode = #tpu.pipeline_mode<synchronous>, transform_indices = @transform_3, window_bounds = array<i64: 1, 32>}, {pipeline_mode = #tpu.pipeline_mode<synchronous>, transform_indices = @transform_4, window_bounds = array<i64: 32, 64>}, {pipeline_mode = #tpu.pipeline_mode<synchronous>, transform_indices = @transform_5, window_bounds = array<i64: 1, 64>}, {transform_indices = @transform_6, window_bounds = array<i64: 1, 4, 8, 8>}]} {
    %c0 = arith.constant 0 : index
    %c0_0 = arith.constant 0 : index
    %c0_1 = arith.constant 0 : index
    %0 = vector.load %arg1[%c0, %c0_0, %c0_1] : memref<1x8x32xf32, #tpu.memory_space<vmem>>, vector<1x8x32xf32>
    %1 = vector.shape_cast %0 : vector<1x8x32xf32> to vector<8x32xf32>
    %c0_2 = arith.constant 0 : index
    %c0_3 = arith.constant 0 : index
    %2 = vector.load %arg3[%c0_2, %c0_3] : memref<32x32xf32, #tpu.memory_space<vmem>>, vector<32x32xf32>
    %cst = arith.constant dense<0.000000e+00> : vector<8x32xf32>
    %3 = tpu.matmul %1, %2, %cst {dimension_numbers = #tpu.dot_dimension_numbers<[1], [0], [0], [1], [0, 0, 1, 1], [], []>} : vector<8x32xf32>, vector<32x32xf32>, vector<8x32xf32> -> vector<8x32xf32>
    %c0_4 = arith.constant 0 : index
    %c0_5 = arith.constant 0 : index
    %4 = vector.load %arg4[%c0_4, %c0_5] : memref<1x32xf32, #tpu.memory_space<vmem>>, vector<1x32xf32>
    %5 = vector.broadcast %4 : vector<1x32xf32> to vector<8x32xf32>
    %6 = arith.addf %3, %5 : vector<8x32xf32>
    %c0_6 = arith.constant 0 : index
    %c0_7 = arith.constant 0 : index
    %c0_8 = arith.constant 0 : index
    %7 = vector.load %arg2[%c0_6, %c0_7, %c0_8] : memref<1x8x32xf32, #tpu.memory_space<vmem>>, vector<1x8x32xf32>
    %8 = vector.shape_cast %7 : vector<1x8x32xf32> to vector<8x32xf32>
    %c0_9 = arith.constant 0 : index
    %c0_10 = arith.constant 0 : index
    %9 = vector.load %arg5[%c0_9, %c0_10] : memref<32x64xf32, #tpu.memory_space<vmem>>, vector<32x64xf32>
    %cst_11 = arith.constant dense<0.000000e+00> : vector<8x64xf32>
    %10 = tpu.matmul %8, %9, %cst_11 {dimension_numbers = #tpu.dot_dimension_numbers<[1], [0], [0], [1], [0, 0, 1, 1], [], []>} : vector<8x32xf32>, vector<32x64xf32>, vector<8x64xf32> -> vector<8x64xf32>
    %c0_12 = arith.constant 0 : index
    %c0_13 = arith.constant 0 : index
    %11 = vector.load %arg6[%c0_12, %c0_13] : memref<1x64xf32, #tpu.memory_space<vmem>>, vector<1x64xf32>
    %12 = vector.broadcast %11 : vector<1x64xf32> to vector<8x64xf32>
    %13 = arith.addf %10, %12 : vector<8x64xf32>
    %14 = vector.extract_strided_slice %6 {offsets = [0, 0], sizes = [8, 8], strides = [1, 1]} : vector<8x32xf32> to vector<8x8xf32>
    %15 = vector.extract_strided_slice %13 {offsets = [0, 0], sizes = [8, 8], strides = [1, 1]} : vector<8x64xf32> to vector<8x8xf32>
    %16 = vector.extract_strided_slice %13 {offsets = [0, 8], sizes = [8, 8], strides = [1, 1]} : vector<8x64xf32> to vector<8x8xf32>
    %cst_14 = arith.constant dense<0.000000e+00> : vector<8x8xf32>
    %17 = tpu.matmul %14, %15, %cst_14 {dimension_numbers = #tpu.dot_dimension_numbers<[1], [1], [0], [0], [0, 0, 1, 0], [], []>} : vector<8x8xf32>, vector<8x8xf32>, vector<8x8xf32> -> vector<8x8xf32>
    %cst_15 = arith.constant 0.353553385 : f32
    %18 = vector.broadcast %cst_15 : f32 to vector<8x8xf32>
    %19 = arith.mulf %17, %18 : vector<8x8xf32>
    %cst_16 = arith.constant dense<0xFF800000> : vector<8xf32>
    %20 = vector.multi_reduction <maximumf>, %19, %cst_16 [1] : vector<8x8xf32> to vector<8xf32>
    %21 = vector.shape_cast %20 : vector<8xf32> to vector<8x1xf32>
    %22 = vector.broadcast %21 : vector<8x1xf32> to vector<8x8xf32>
    %23 = arith.subf %19, %22 : vector<8x8xf32>
    %24 = math.exp %23 : vector<8x8xf32>
    %cst_17 = arith.constant dense<0.000000e+00> : vector<8xf32>
    %25 = vector.multi_reduction <add>, %24, %cst_17 [1] : vector<8x8xf32> to vector<8xf32>
    %26 = vector.shape_cast %25 : vector<8xf32> to vector<8x1xf32>
    %27 = tpu.reciprocal %26 {approx = true} : vector<8x1xf32> -> vector<8x1xf32>
    %28 = vector.broadcast %27 : vector<8x1xf32> to vector<8x8xf32>
    %29 = arith.mulf %24, %28 : vector<8x8xf32>
    %cst_18 = arith.constant dense<0.000000e+00> : vector<8x8xf32>
    %30 = tpu.matmul %29, %16, %cst_18 {dimension_numbers = #tpu.dot_dimension_numbers<[1], [0], [0], [1], [0, 0, 1, 1], [], []>} : vector<8x8xf32>, vector<8x8xf32>, vector<8x8xf32> -> vector<8x8xf32>
    %c0_19 = arith.constant 0 : index
    %c0_20 = arith.constant 0 : index
    %c0_21 = arith.constant 0 : index
    %c0_22 = arith.constant 0 : index
    %31 = vector.load %arg7[%c0_19, %c0_20, %c0_21, %c0_22] : memref<1x4x8x8xf32, #tpu.memory_space<vmem>>, vector<1x1x8x8xf32>
    %32 = vector.shape_cast %31 : vector<1x1x8x8xf32> to vector<8x8xf32>
    %33 = vector.shape_cast %30 : vector<8x8xf32> to vector<1x1x8x8xf32>
    tpu.vector_store %arg7[%c0_19, %c0_20, %c0_21, %c0_22], %33 {strides = array<i32>} : memref<1x4x8x8xf32, #tpu.memory_space<vmem>>, vector<1x1x8x8xf32>,
    %34 = vector.extract_strided_slice %6 {offsets = [0, 8], sizes = [8, 8], strides = [1, 1]} : vector<8x32xf32> to vector<8x8xf32>
    %35 = vector.extract_strided_slice %13 {offsets = [0, 16], sizes = [8, 8], strides = [1, 1]} : vector<8x64xf32> to vector<8x8xf32>
    %36 = vector.extract_strided_slice %13 {offsets = [0, 24], sizes = [8, 8], strides = [1, 1]} : vector<8x64xf32> to vector<8x8xf32>
    %cst_23 = arith.constant dense<0.000000e+00> : vector<8x8xf32>
    %37 = tpu.matmul %34, %35, %cst_23 {dimension_numbers = #tpu.dot_dimension_numbers<[1], [1], [0], [0], [0, 0, 1, 0], [], []>} : vector<8x8xf32>, vector<8x8xf32>, vector<8x8xf32> -> vector<8x8xf32>
    %cst_24 = arith.constant 0.353553385 : f32
    %38 = vector.broadcast %cst_24 : f32 to vector<8x8xf32>
    %39 = arith.mulf %37, %38 : vector<8x8xf32>
    %cst_25 = arith.constant dense<0xFF800000> : vector<8xf32>
    %40 = vector.multi_reduction <maximumf>, %39, %cst_25 [1] : vector<8x8xf32> to vector<8xf32>
    %41 = vector.shape_cast %40 : vector<8xf32> to vector<8x1xf32>
    %42 = vector.broadcast %41 : vector<8x1xf32> to vector<8x8xf32>
    %43 = arith.subf %39, %42 : vector<8x8xf32>
    %44 = math.exp %43 : vector<8x8xf32>
    %cst_26 = arith.constant dense<0.000000e+00> : vector<8xf32>
    %45 = vector.multi_reduction <add>, %44, %cst_26 [1] : vector<8x8xf32> to vector<8xf32>
    %46 = vector.shape_cast %45 : vector<8xf32> to vector<8x1xf32>
    %47 = tpu.reciprocal %46 {approx = true} : vector<8x1xf32> -> vector<8x1xf32>
    %48 = vector.broadcast %47 : vector<8x1xf32> to vector<8x8xf32>
    %49 = arith.mulf %44, %48 : vector<8x8xf32>
    %cst_27 = arith.constant dense<0.000000e+00> : vector<8x8xf32>
    %50 = tpu.matmul %49, %36, %cst_27 {dimension_numbers = #tpu.dot_dimension_numbers<[1], [0], [0], [1], [0, 0, 1, 1], [], []>} : vector<8x8xf32>, vector<8x8xf32>, vector<8x8xf32> -> vector<8x8xf32>
    %c0_28 = arith.constant 0 : index
    %c1 = arith.constant 1 : index
    %c0_29 = arith.constant 0 : index
    %c0_30 = arith.constant 0 : index
    %51 = vector.load %arg7[%c0_28, %c1, %c0_29, %c0_30] : memref<1x4x8x8xf32, #tpu.memory_space<vmem>>, vector<1x1x8x8xf32>
    %52 = vector.shape_cast %51 : vector<1x1x8x8xf32> to vector<8x8xf32>
    %53 = vector.shape_cast %50 : vector<8x8xf32> to vector<1x1x8x8xf32>
    tpu.vector_store %arg7[%c0_28, %c1, %c0_29, %c0_30], %53 {strides = array<i32>} : memref<1x4x8x8xf32, #tpu.memory_space<vmem>>, vector<1x1x8x8xf32>,
    %54 = vector.extract_strided_slice %6 {offsets = [0, 16], sizes = [8, 8], strides = [1, 1]} : vector<8x32xf32> to vector<8x8xf32>
    %55 = vector.extract_strided_slice %13 {offsets = [0, 32], sizes = [8, 8], strides = [1, 1]} : vector<8x64xf32> to vector<8x8xf32>
    %56 = vector.extract_strided_slice %13 {offsets = [0, 40], sizes = [8, 8], strides = [1, 1]} : vector<8x64xf32> to vector<8x8xf32>
    %cst_31 = arith.constant dense<0.000000e+00> : vector<8x8xf32>
    %57 = tpu.matmul %54, %55, %cst_31 {dimension_numbers = #tpu.dot_dimension_numbers<[1], [1], [0], [0], [0, 0, 1, 0], [], []>} : vector<8x8xf32>, vector<8x8xf32>, vector<8x8xf32> -> vector<8x8xf32>
    %cst_32 = arith.constant 0.353553385 : f32
    %58 = vector.broadcast %cst_32 : f32 to vector<8x8xf32>
    %59 = arith.mulf %57, %58 : vector<8x8xf32>
    %cst_33 = arith.constant dense<0xFF800000> : vector<8xf32>
    %60 = vector.multi_reduction <maximumf>, %59, %cst_33 [1] : vector<8x8xf32> to vector<8xf32>
    %61 = vector.shape_cast %60 : vector<8xf32> to vector<8x1xf32>
    %62 = vector.broadcast %61 : vector<8x1xf32> to vector<8x8xf32>
    %63 = arith.subf %59, %62 : vector<8x8xf32>
    %64 = math.exp %63 : vector<8x8xf32>
    %cst_34 = arith.constant dense<0.000000e+00> : vector<8xf32>
    %65 = vector.multi_reduction <add>, %64, %cst_34 [1] : vector<8x8xf32> to vector<8xf32>
    %66 = vector.shape_cast %65 : vector<8xf32> to vector<8x1xf32>
    %67 = tpu.reciprocal %66 {approx = true} : vector<8x1xf32> -> vector<8x1xf32>
    %68 = vector.broadcast %67 : vector<8x1xf32> to vector<8x8xf32>
    %69 = arith.mulf %64, %68 : vector<8x8xf32>
    %cst_35 = arith.constant dense<0.000000e+00> : vector<8x8xf32>
    %70 = tpu.matmul %69, %56, %cst_35 {dimension_numbers = #tpu.dot_dimension_numbers<[1], [0], [0], [1], [0, 0, 1, 1], [], []>} : vector<8x8xf32>, vector<8x8xf32>, vector<8x8xf32> -> vector<8x8xf32>
    %c0_36 = arith.constant 0 : index
    %c2 = arith.constant 2 : index
    %c0_37 = arith.constant 0 : index
    %c0_38 = arith.constant 0 : index
    %71 = vector.load %arg7[%c0_36, %c2, %c0_37, %c0_38] : memref<1x4x8x8xf32, #tpu.memory_space<vmem>>, vector<1x1x8x8xf32>
    %72 = vector.shape_cast %71 : vector<1x1x8x8xf32> to vector<8x8xf32>
    %73 = vector.shape_cast %70 : vector<8x8xf32> to vector<1x1x8x8xf32>
    tpu.vector_store %arg7[%c0_36, %c2, %c0_37, %c0_38], %73 {strides = array<i32>} : memref<1x4x8x8xf32, #tpu.memory_space<vmem>>, vector<1x1x8x8xf32>,
    %74 = vector.extract_strided_slice %6 {offsets = [0, 24], sizes = [8, 8], strides = [1, 1]} : vector<8x32xf32> to vector<8x8xf32>
    %75 = vector.extract_strided_slice %13 {offsets = [0, 48], sizes = [8, 8], strides = [1, 1]} : vector<8x64xf32> to vector<8x8xf32>
    %76 = vector.extract_strided_slice %13 {offsets = [0, 56], sizes = [8, 8], strides = [1, 1]} : vector<8x64xf32> to vector<8x8xf32>
    %cst_39 = arith.constant dense<0.000000e+00> : vector<8x8xf32>
    %77 = tpu.matmul %74, %75, %cst_39 {dimension_numbers = #tpu.dot_dimension_numbers<[1], [1], [0], [0], [0, 0, 1, 0], [], []>} : vector<8x8xf32>, vector<8x8xf32>, vector<8x8xf32> -> vector<8x8xf32>
    %cst_40 = arith.constant 0.353553385 : f32
    %78 = vector.broadcast %cst_40 : f32 to vector<8x8xf32>
    %79 = arith.mulf %77, %78 : vector<8x8xf32>
    %cst_41 = arith.constant dense<0xFF800000> : vector<8xf32>
    %80 = vector.multi_reduction <maximumf>, %79, %cst_41 [1] : vector<8x8xf32> to vector<8xf32>
    %81 = vector.shape_cast %80 : vector<8xf32> to vector<8x1xf32>
    %82 = vector.broadcast %81 : vector<8x1xf32> to vector<8x8xf32>
    %83 = arith.subf %79, %82 : vector<8x8xf32>
    %84 = math.exp %83 : vector<8x8xf32>
    %cst_42 = arith.constant dense<0.000000e+00> : vector<8xf32>
    %85 = vector.multi_reduction <add>, %84, %cst_42 [1] : vector<8x8xf32> to vector<8xf32>
    %86 = vector.shape_cast %85 : vector<8xf32> to vector<8x1xf32>
    %87 = tpu.reciprocal %86 {approx = true} : vector<8x1xf32> -> vector<8x1xf32>
    %88 = vector.broadcast %87 : vector<8x1xf32> to vector<8x8xf32>
    %89 = arith.mulf %84, %88 : vector<8x8xf32>
    %cst_43 = arith.constant dense<0.000000e+00> : vector<8x8xf32>
    %90 = tpu.matmul %89, %76, %cst_43 {dimension_numbers = #tpu.dot_dimension_numbers<[1], [0], [0], [1], [0, 0, 1, 1], [], []>} : vector<8x8xf32>, vector<8x8xf32>, vector<8x8xf32> -> vector<8x8xf32>
    %c0_44 = arith.constant 0 : index
    %c3 = arith.constant 3 : index
    %c0_45 = arith.constant 0 : index
    %c0_46 = arith.constant 0 : index
    %91 = vector.load %arg7[%c0_44, %c3, %c0_45, %c0_46] : memref<1x4x8x8xf32, #tpu.memory_space<vmem>>, vector<1x1x8x8xf32>
    %92 = vector.shape_cast %91 : vector<1x1x8x8xf32> to vector<8x8xf32>
    %93 = vector.shape_cast %90 : vector<8x8xf32> to vector<1x1x8x8xf32>
    tpu.vector_store %arg7[%c0_44, %c3, %c0_45, %c0_46], %93 {strides = array<i32>} : memref<1x4x8x8xf32, #tpu.memory_space<vmem>>, vector<1x1x8x8xf32>,
    return
  }
  func.func @transform_0(%arg0: i32) -> (i32, i32, i32) {
    %c0_i32 = arith.constant 0 : i32
    %c0_i32_0 = arith.constant 0 : i32
    %c0_i32_1 = arith.constant 0 : i32
    return %arg0, %c0_i32, %c0_i32_0 : i32, i32, i32
  }
  func.func @transform_1(%arg0: i32) -> (i32, i32, i32) {
    %c0_i32 = arith.constant 0 : i32
    %c0_i32_0 = arith.constant 0 : i32
    %c0_i32_1 = arith.constant 0 : i32
    return %arg0, %c0_i32, %c0_i32_0 : i32, i32, i32
  }
  func.func @transform_2(%arg0: i32) -> (i32, i32) {
    %c0_i32 = arith.constant 0 : i32
    %c0_i32_0 = arith.constant 0 : i32
    %c0_i32_1 = arith.constant 0 : i32
    return %c0_i32, %c0_i32_0 : i32, i32
  }
  func.func @transform_3(%arg0: i32) -> (i32, i32) {
    %c0_i32 = arith.constant 0 : i32
    %c0_i32_0 = arith.constant 0 : i32
    %c0_i32_1 = arith.constant 0 : i32
    return %c0_i32, %c0_i32_0 : i32, i32
  }
  func.func @transform_4(%arg0: i32) -> (i32, i32) {
    %c0_i32 = arith.constant 0 : i32
    %c0_i32_0 = arith.constant 0 : i32
    %c0_i32_1 = arith.constant 0 : i32
    return %c0_i32, %c0_i32_0 : i32, i32
  }
  func.func @transform_5(%arg0: i32) -> (i32, i32) {
    %c0_i32 = arith.constant 0 : i32
    %c0_i32_0 = arith.constant 0 : i32
    %c0_i32_1 = arith.constant 0 : i32
    return %c0_i32, %c0_i32_0 : i32, i32
  }
  func.func @transform_6(%arg0: i32) -> (i32, i32, i32, i32) {
    %c0_i32 = arith.constant 0 : i32
    %c0_i32_0 = arith.constant 0 : i32
    %c0_i32_1 = arith.constant 0 : i32
    %c0_i32_2 = arith.constant 0 : i32
    return %arg0, %c0_i32, %c0_i32_0, %c0_i32_1 : i32, i32, i32, i32
  }
}

module attributes {stable_mosaic.version = 11 : i64} {
  func.func @_linear_kernel(%arg0: i32, %arg1: i32, %arg2: i32, %arg3: memref<16x32xf32, #tpu.memory_space<vmem>>, %arg4: memref<32x64xf32, #tpu.memory_space<vmem>>, %arg5: memref<1x64xf32, #tpu.memory_space<vmem>>, %arg6: memref<16x64xf32, #tpu.memory_space<vmem>>, %arg7: memref<16x64xf32, #tpu.memory_space<vmem>>) attributes {dimension_semantics = [#tpu.dimension_semantics<parallel>, #tpu.dimension_semantics<parallel>, #tpu.dimension_semantics<arbitrary>], iteration_bounds = array<i64: 1, 1, 1>, scalar_prefetch = 0 : i64, scratch_operands = 1 : i64, tpu.core_type = #tpu.core_type<tc>, window_params = [{transform_indices = @transform_0, window_bounds = array<i64: 16, 32>}, {transform_indices = @transform_1, window_bounds = array<i64: 32, 64>}, {transform_indices = @transform_2, window_bounds = array<i64: 1, 64>}, {transform_indices = @transform_3, window_bounds = array<i64: 16, 64>}]} {
    %c0_i32 = arith.constant 0 : i32
    %0 = arith.cmpi eq, %arg2, %c0_i32 : i32
    %1 = arith.extui %0 : i1 to i32
    %c0_i32_0 = arith.constant 0 : i32
    %2 = arith.cmpi ne, %1, %c0_i32_0 : i32
    scf.if %2 {
      %cst_10 = arith.constant 0.000000e+00 : f32
      %12 = vector.broadcast %cst_10 : f32 to vector<16x64xf32>
      %c0_11 = arith.constant 0 : index
      %c0_12 = arith.constant 0 : index
      %13 = vector.load %arg7[%c0_11, %c0_12] : memref<16x64xf32, #tpu.memory_space<vmem>>, vector<16x64xf32>
      tpu.vector_store %arg7[%c0_11, %c0_12], %12 {strides = array<i32>} : memref<16x64xf32, #tpu.memory_space<vmem>>, vector<16x64xf32>,
    } else {
    }
    %c0 = arith.constant 0 : index
    %c0_1 = arith.constant 0 : index
    %3 = vector.load %arg7[%c0, %c0_1] : memref<16x64xf32, #tpu.memory_space<vmem>>, vector<16x64xf32>
    %c0_2 = arith.constant 0 : index
    %c0_3 = arith.constant 0 : index
    %4 = vector.load %arg3[%c0_2, %c0_3] : memref<16x32xf32, #tpu.memory_space<vmem>>, vector<16x32xf32>
    %c0_4 = arith.constant 0 : index
    %c0_5 = arith.constant 0 : index
    %5 = vector.load %arg4[%c0_4, %c0_5] : memref<32x64xf32, #tpu.memory_space<vmem>>, vector<32x64xf32>
    %cst = arith.constant dense<0.000000e+00> : vector<16x64xf32>
    %6 = tpu.matmul %4, %5, %cst {dimension_numbers = #tpu.dot_dimension_numbers<[1], [0], [0], [1], [0, 0, 1, 1], [], []>} : vector<16x32xf32>, vector<32x64xf32>, vector<16x64xf32> -> vector<16x64xf32>
    %7 = arith.addf %3, %6 : vector<16x64xf32>
    %c0_6 = arith.constant 0 : index
    %c0_7 = arith.constant 0 : index
    %8 = vector.load %arg7[%c0_6, %c0_7] : memref<16x64xf32, #tpu.memory_space<vmem>>, vector<16x64xf32>
    tpu.vector_store %arg7[%c0_6, %c0_7], %7 {strides = array<i32>} : memref<16x64xf32, #tpu.memory_space<vmem>>, vector<16x64xf32>,
    %c0_i32_8 = arith.constant 0 : i32
    %9 = arith.cmpi eq, %arg2, %c0_i32_8 : i32
    %10 = arith.extui %9 : i1 to i32
    %c0_i32_9 = arith.constant 0 : i32
    %11 = arith.cmpi ne, %10, %c0_i32_9 : i32
    scf.if %11 {
      %c0_10 = arith.constant 0 : index
      %c0_11 = arith.constant 0 : index
      %12 = vector.load %arg7[%c0_10, %c0_11] : memref<16x64xf32, #tpu.memory_space<vmem>>, vector<16x64xf32>
      %c0_12 = arith.constant 0 : index
      %c0_13 = arith.constant 0 : index
      %13 = vector.load %arg5[%c0_12, %c0_13] : memref<1x64xf32, #tpu.memory_space<vmem>>, vector<1x64xf32>
      %14 = vector.broadcast %13 : vector<1x64xf32> to vector<16x64xf32>
      %15 = arith.addf %12, %14 : vector<16x64xf32>
      %cst_14 = arith.constant 0.000000e+00 : f32
      %16 = vector.broadcast %cst_14 : f32 to vector<16x64xf32>
      %17 = arith.maximumf %15, %16 : vector<16x64xf32>
      %c0_15 = arith.constant 0 : index
      %c0_16 = arith.constant 0 : index
      %18 = vector.load %arg6[%c0_15, %c0_16] : memref<16x64xf32, #tpu.memory_space<vmem>>, vector<16x64xf32>
      tpu.vector_store %arg6[%c0_15, %c0_16], %17 {strides = array<i32>} : memref<16x64xf32, #tpu.memory_space<vmem>>, vector<16x64xf32>,
    } else {
    }
    return
  }
  func.func @transform_0(%arg0: i32, %arg1: i32, %arg2: i32) -> (i32, i32) {
    %c0_i32 = arith.constant 0 : i32
    return %arg0, %arg2 : i32, i32
  }
  func.func @transform_1(%arg0: i32, %arg1: i32, %arg2: i32) -> (i32, i32) {
    %c0_i32 = arith.constant 0 : i32
    return %arg2, %arg1 : i32, i32
  }
  func.func @transform_2(%arg0: i32, %arg1: i32, %arg2: i32) -> (i32, i32) {
    %c0_i32 = arith.constant 0 : i32
    %c0_i32_0 = arith.constant 0 : i32
    return %c0_i32, %arg1 : i32, i32
  }
  func.func @transform_3(%arg0: i32, %arg1: i32, %arg2: i32) -> (i32, i32) {
    %c0_i32 = arith.constant 0 : i32
    return %arg0, %arg1 : i32, i32
  }
}

module attributes {stable_mosaic.version = 11 : i64} {
  func.func @_linear_add_ln_kernel(%arg0: i32, %arg1: i32, %arg2: memref<16x64xf32, #tpu.memory_space<vmem>>, %arg3: memref<64x32xf32, #tpu.memory_space<vmem>>, %arg4: memref<1x32xf32, #tpu.memory_space<vmem>>, %arg5: memref<16x32xf32, #tpu.memory_space<vmem>>, %arg6: memref<1x32xf32, #tpu.memory_space<vmem>>, %arg7: memref<1x32xf32, #tpu.memory_space<vmem>>, %arg8: memref<16x32xf32, #tpu.memory_space<vmem>>, %arg9: memref<16x32xf32, #tpu.memory_space<vmem>>) attributes {dimension_semantics = [#tpu.dimension_semantics<parallel>, #tpu.dimension_semantics<arbitrary>], iteration_bounds = array<i64: 1, 1>, scalar_prefetch = 0 : i64, scratch_operands = 1 : i64, tpu.core_type = #tpu.core_type<tc>, window_params = [{transform_indices = @transform_0, window_bounds = array<i64: 16, 64>}, {transform_indices = @transform_1, window_bounds = array<i64: 64, 32>}, {pipeline_mode = #tpu.pipeline_mode<synchronous>, transform_indices = @transform_2, window_bounds = array<i64: 1, 32>}, {transform_indices = @transform_3, window_bounds = array<i64: 16, 32>}, {pipeline_mode = #tpu.pipeline_mode<synchronous>, transform_indices = @transform_4, window_bounds = array<i64: 1, 32>}, {pipeline_mode = #tpu.pipeline_mode<synchronous>, transform_indices = @transform_5, window_bounds = array<i64: 1, 32>}, {transform_indices = @transform_6, window_bounds = array<i64: 16, 32>}]} {
    %c0_i32 = arith.constant 0 : i32
    %0 = arith.cmpi eq, %arg1, %c0_i32 : i32
    %1 = arith.extui %0 : i1 to i32
    %c0_i32_0 = arith.constant 0 : i32
    %2 = arith.cmpi ne, %1, %c0_i32_0 : i32
    scf.if %2 {
      %cst_10 = arith.constant 0.000000e+00 : f32
      %12 = vector.broadcast %cst_10 : f32 to vector<16x32xf32>
      %c0_11 = arith.constant 0 : index
      %c0_12 = arith.constant 0 : index
      %13 = vector.load %arg9[%c0_11, %c0_12] : memref<16x32xf32, #tpu.memory_space<vmem>>, vector<16x32xf32>
      tpu.vector_store %arg9[%c0_11, %c0_12], %12 {strides = array<i32>} : memref<16x32xf32, #tpu.memory_space<vmem>>, vector<16x32xf32>,
    } else {
    }
    %c0 = arith.constant 0 : index
    %c0_1 = arith.constant 0 : index
    %3 = vector.load %arg9[%c0, %c0_1] : memref<16x32xf32, #tpu.memory_space<vmem>>, vector<16x32xf32>
    %c0_2 = arith.constant 0 : index
    %c0_3 = arith.constant 0 : index
    %4 = vector.load %arg2[%c0_2, %c0_3] : memref<16x64xf32, #tpu.memory_space<vmem>>, vector<16x64xf32>
    %c0_4 = arith.constant 0 : index
    %c0_5 = arith.constant 0 : index
    %5 = vector.load %arg3[%c0_4, %c0_5] : memref<64x32xf32, #tpu.memory_space<vmem>>, vector<64x32xf32>
    %cst = arith.constant dense<0.000000e+00> : vector<16x32xf32>
    %6 = tpu.matmul %4, %5, %cst {dimension_numbers = #tpu.dot_dimension_numbers<[1], [0], [0], [1], [0, 0, 1, 1], [], []>} : vector<16x64xf32>, vector<64x32xf32>, vector<16x32xf32> -> vector<16x32xf32>
    %7 = arith.addf %3, %6 : vector<16x32xf32>
    %c0_6 = arith.constant 0 : index
    %c0_7 = arith.constant 0 : index
    %8 = vector.load %arg9[%c0_6, %c0_7] : memref<16x32xf32, #tpu.memory_space<vmem>>, vector<16x32xf32>
    tpu.vector_store %arg9[%c0_6, %c0_7], %7 {strides = array<i32>} : memref<16x32xf32, #tpu.memory_space<vmem>>, vector<16x32xf32>,
    %c0_i32_8 = arith.constant 0 : i32
    %9 = arith.cmpi eq, %arg1, %c0_i32_8 : i32
    %10 = arith.extui %9 : i1 to i32
    %c0_i32_9 = arith.constant 0 : i32
    %11 = arith.cmpi ne, %10, %c0_i32_9 : i32
    scf.if %11 {
      %c0_10 = arith.constant 0 : index
      %c0_11 = arith.constant 0 : index
      %12 = vector.load %arg9[%c0_10, %c0_11] : memref<16x32xf32, #tpu.memory_space<vmem>>, vector<16x32xf32>
      %c0_12 = arith.constant 0 : index
      %c0_13 = arith.constant 0 : index
      %13 = vector.load %arg4[%c0_12, %c0_13] : memref<1x32xf32, #tpu.memory_space<vmem>>, vector<1x32xf32>
      %14 = vector.broadcast %13 : vector<1x32xf32> to vector<16x32xf32>
      %15 = arith.addf %12, %14 : vector<16x32xf32>
      %c0_14 = arith.constant 0 : index
      %c0_15 = arith.constant 0 : index
      %16 = vector.load %arg5[%c0_14, %c0_15] : memref<16x32xf32, #tpu.memory_space<vmem>>, vector<16x32xf32>
      %17 = arith.addf %15, %16 : vector<16x32xf32>
      %cst_16 = arith.constant dense<0.000000e+00> : vector<16xf32>
      %18 = vector.multi_reduction <add>, %17, %cst_16 [1] : vector<16x32xf32> to vector<16xf32>
      %19 = vector.shape_cast %18 : vector<16xf32> to vector<16x1xf32>
      %cst_17 = arith.constant 3.200000e+01 : f32
      %20 = vector.broadcast %cst_17 : f32 to vector<16x1xf32>
      %21 = arith.divf %19, %20 : vector<16x1xf32>
      %22 = vector.broadcast %21 : vector<16x1xf32> to vector<16x32xf32>
      %23 = arith.subf %17, %22 : vector<16x32xf32>
      %24 = arith.mulf %23, %23 : vector<16x32xf32>
      %cst_18 = arith.constant dense<0.000000e+00> : vector<16xf32>
      %25 = vector.multi_reduction <add>, %24, %cst_18 [1] : vector<16x32xf32> to vector<16xf32>
      %26 = vector.shape_cast %25 : vector<16xf32> to vector<16x1xf32>
      %cst_19 = arith.constant 3.200000e+01 : f32
      %27 = vector.broadcast %cst_19 : f32 to vector<16x1xf32>
      %28 = arith.divf %26, %27 : vector<16x1xf32>
      %29 = vector.broadcast %21 : vector<16x1xf32> to vector<16x32xf32>
      %30 = arith.subf %17, %29 : vector<16x32xf32>
      %cst_20 = arith.constant 9.99999974E-6 : f32
      %31 = vector.broadcast %cst_20 : f32 to vector<16x1xf32>
      %32 = arith.addf %28, %31 : vector<16x1xf32>
      %33 = math.rsqrt %32 : vector<16x1xf32>
      %34 = vector.broadcast %33 : vector<16x1xf32> to vector<16x32xf32>
      %35 = arith.mulf %30, %34 : vector<16x32xf32>
      %c0_21 = arith.constant 0 : index
      %c0_22 = arith.constant 0 : index
      %36 = vector.load %arg6[%c0_21, %c0_22] : memref<1x32xf32, #tpu.memory_space<vmem>>, vector<1x32xf32>
      %37 = vector.broadcast %36 : vector<1x32xf32> to vector<16x32xf32>
      %38 = arith.mulf %37, %35 : vector<16x32xf32>
      %c0_23 = arith.constant 0 : index
      %c0_24 = arith.constant 0 : index
      %39 = vector.load %arg7[%c0_23, %c0_24] : memref<1x32xf32, #tpu.memory_space<vmem>>, vector<1x32xf32>
      %40 = vector.broadcast %39 : vector<1x32xf32> to vector<16x32xf32>
      %41 = arith.addf %38, %40 : vector<16x32xf32>
      %c0_25 = arith.constant 0 : index
      %c0_26 = arith.constant 0 : index
      %42 = vector.load %arg8[%c0_25, %c0_26] : memref<16x32xf32, #tpu.memory_space<vmem>>, vector<16x32xf32>
      tpu.vector_store %arg8[%c0_25, %c0_26], %41 {strides = array<i32>} : memref<16x32xf32, #tpu.memory_space<vmem>>, vector<16x32xf32>,
    } else {
    }
    return
  }
  func.func @transform_0(%arg0: i32, %arg1: i32) -> (i32, i32) {
    %c0_i32 = arith.constant 0 : i32
    return %arg0, %arg1 : i32, i32
  }
  func.func @transform_1(%arg0: i32, %arg1: i32) -> (i32, i32) {
    %c0_i32 = arith.constant 0 : i32
    %c0_i32_0 = arith.constant 0 : i32
    return %arg1, %c0_i32 : i32, i32
  }
  func.func @transform_2(%arg0: i32, %arg1: i32) -> (i32, i32) {
    %c0_i32 = arith.constant 0 : i32
    %c0_i32_0 = arith.constant 0 : i32
    %c0_i32_1 = arith.constant 0 : i32
    return %c0_i32, %c0_i32_0 : i32, i32
  }
  func.func @transform_3(%arg0: i32, %arg1: i32) -> (i32, i32) {
    %c0_i32 = arith.constant 0 : i32
    %c0_i32_0 = arith.constant 0 : i32
    return %arg0, %c0_i32 : i32, i32
  }
  func.func @transform_4(%arg0: i32, %arg1: i32) -> (i32, i32) {
    %c0_i32 = arith.constant 0 : i32
    %c0_i32_0 = arith.constant 0 : i32
    %c0_i32_1 = arith.constant 0 : i32
    return %c0_i32, %c0_i32_0 : i32, i32
  }
  func.func @transform_5(%arg0: i32, %arg1: i32) -> (i32, i32) {
    %c0_i32 = arith.constant 0 : i32
    %c0_i32_0 = arith.constant 0 : i32
    %c0_i32_1 = arith.constant 0 : i32
    return %c0_i32, %c0_i32_0 : i32, i32
  }
  func.func @transform_6(%arg0: i32, %arg1: i32) -> (i32, i32) {
    %c0_i32 = arith.constant 0 : i32
    %c0_i32_0 = arith.constant 0 : i32
    return %arg0, %c0_i32 : i32, i32
  }
}

module attributes {stable_mosaic.version = 11 : i64} {
  func.func @_linear_kernel(%arg0: i32, %arg1: i32, %arg2: i32, %arg3: memref<16x32xf32, #tpu.memory_space<vmem>>, %arg4: memref<32x32xf32, #tpu.memory_space<vmem>>, %arg5: memref<1x32xf32, #tpu.memory_space<vmem>>, %arg6: memref<16x32xf32, #tpu.memory_space<vmem>>, %arg7: memref<16x32xf32, #tpu.memory_space<vmem>>) attributes {dimension_semantics = [#tpu.dimension_semantics<parallel>, #tpu.dimension_semantics<parallel>, #tpu.dimension_semantics<arbitrary>], iteration_bounds = array<i64: 1, 1, 1>, scalar_prefetch = 0 : i64, scratch_operands = 1 : i64, tpu.core_type = #tpu.core_type<tc>, window_params = [{transform_indices = @transform_0, window_bounds = array<i64: 16, 32>}, {transform_indices = @transform_1, window_bounds = array<i64: 32, 32>}, {transform_indices = @transform_2, window_bounds = array<i64: 1, 32>}, {transform_indices = @transform_3, window_bounds = array<i64: 16, 32>}]} {
    %c0_i32 = arith.constant 0 : i32
    %0 = arith.cmpi eq, %arg2, %c0_i32 : i32
    %1 = arith.extui %0 : i1 to i32
    %c0_i32_0 = arith.constant 0 : i32
    %2 = arith.cmpi ne, %1, %c0_i32_0 : i32
    scf.if %2 {
      %cst_10 = arith.constant 0.000000e+00 : f32
      %12 = vector.broadcast %cst_10 : f32 to vector<16x32xf32>
      %c0_11 = arith.constant 0 : index
      %c0_12 = arith.constant 0 : index
      %13 = vector.load %arg7[%c0_11, %c0_12] : memref<16x32xf32, #tpu.memory_space<vmem>>, vector<16x32xf32>
      tpu.vector_store %arg7[%c0_11, %c0_12], %12 {strides = array<i32>} : memref<16x32xf32, #tpu.memory_space<vmem>>, vector<16x32xf32>,
    } else {
    }
    %c0 = arith.constant 0 : index
    %c0_1 = arith.constant 0 : index
    %3 = vector.load %arg7[%c0, %c0_1] : memref<16x32xf32, #tpu.memory_space<vmem>>, vector<16x32xf32>
    %c0_2 = arith.constant 0 : index
    %c0_3 = arith.constant 0 : index
    %4 = vector.load %arg3[%c0_2, %c0_3] : memref<16x32xf32, #tpu.memory_space<vmem>>, vector<16x32xf32>
    %c0_4 = arith.constant 0 : index
    %c0_5 = arith.constant 0 : index
    %5 = vector.load %arg4[%c0_4, %c0_5] : memref<32x32xf32, #tpu.memory_space<vmem>>, vector<32x32xf32>
    %cst = arith.constant dense<0.000000e+00> : vector<16x32xf32>
    %6 = tpu.matmul %4, %5, %cst {dimension_numbers = #tpu.dot_dimension_numbers<[1], [0], [0], [1], [0, 0, 1, 1], [], []>} : vector<16x32xf32>, vector<32x32xf32>, vector<16x32xf32> -> vector<16x32xf32>
    %7 = arith.addf %3, %6 : vector<16x32xf32>
    %c0_6 = arith.constant 0 : index
    %c0_7 = arith.constant 0 : index
    %8 = vector.load %arg7[%c0_6, %c0_7] : memref<16x32xf32, #tpu.memory_space<vmem>>, vector<16x32xf32>
    tpu.vector_store %arg7[%c0_6, %c0_7], %7 {strides = array<i32>} : memref<16x32xf32, #tpu.memory_space<vmem>>, vector<16x32xf32>,
    %c0_i32_8 = arith.constant 0 : i32
    %9 = arith.cmpi eq, %arg2, %c0_i32_8 : i32
    %10 = arith.extui %9 : i1 to i32
    %c0_i32_9 = arith.constant 0 : i32
    %11 = arith.cmpi ne, %10, %c0_i32_9 : i32
    scf.if %11 {
      %c0_10 = arith.constant 0 : index
      %c0_11 = arith.constant 0 : index
      %12 = vector.load %arg7[%c0_10, %c0_11] : memref<16x32xf32, #tpu.memory_space<vmem>>, vector<16x32xf32>
      %c0_12 = arith.constant 0 : index
      %c0_13 = arith.constant 0 : index
      %13 = vector.load %arg5[%c0_12, %c0_13] : memref<1x32xf32, #tpu.memory_space<vmem>>, vector<1x32xf32>
      %14 = vector.broadcast %13 : vector<1x32xf32> to vector<16x32xf32>
      %15 = arith.addf %12, %14 : vector<16x32xf32>
      %c0_14 = arith.constant 0 : index
      %c0_15 = arith.constant 0 : index
      %16 = vector.load %arg6[%c0_14, %c0_15] : memref<16x32xf32, #tpu.memory_space<vmem>>, vector<16x32xf32>
      tpu.vector_store %arg6[%c0_14, %c0_15], %15 {strides = array<i32>} : memref<16x32xf32, #tpu.memory_space<vmem>>, vector<16x32xf32>,
    } else {
    }
    return
  }
  func.func @transform_0(%arg0: i32, %arg1: i32, %arg2: i32) -> (i32, i32) {
    %c0_i32 = arith.constant 0 : i32
    return %arg0, %arg2 : i32, i32
  }
  func.func @transform_1(%arg0: i32, %arg1: i32, %arg2: i32) -> (i32, i32) {
    %c0_i32 = arith.constant 0 : i32
    return %arg2, %arg1 : i32, i32
  }
  func.func @transform_2(%arg0: i32, %arg1: i32, %arg2: i32) -> (i32, i32) {
    %c0_i32 = arith.constant 0 : i32
    %c0_i32_0 = arith.constant 0 : i32
    return %c0_i32, %arg1 : i32, i32
  }
  func.func @transform_3(%arg0: i32, %arg1: i32, %arg2: i32) -> (i32, i32) {
    %c0_i32 = arith.constant 0 : i32
    return %arg0, %arg1 : i32, i32
  }
}

module attributes {stable_mosaic.version = 11 : i64} {
  func.func @_linear_add_ln_kernel(%arg0: i32, %arg1: i32, %arg2: memref<16x64xf32, #tpu.memory_space<vmem>>, %arg3: memref<64x32xf32, #tpu.memory_space<vmem>>, %arg4: memref<1x32xf32, #tpu.memory_space<vmem>>, %arg5: memref<16x32xf32, #tpu.memory_space<vmem>>, %arg6: memref<1x32xf32, #tpu.memory_space<vmem>>, %arg7: memref<1x32xf32, #tpu.memory_space<vmem>>, %arg8: memref<16x32xf32, #tpu.memory_space<vmem>>, %arg9: memref<16x32xf32, #tpu.memory_space<vmem>>) attributes {dimension_semantics = [#tpu.dimension_semantics<parallel>, #tpu.dimension_semantics<arbitrary>], iteration_bounds = array<i64: 1, 1>, scalar_prefetch = 0 : i64, scratch_operands = 1 : i64, tpu.core_type = #tpu.core_type<tc>, window_params = [{transform_indices = @transform_0, window_bounds = array<i64: 16, 64>}, {transform_indices = @transform_1, window_bounds = array<i64: 64, 32>}, {pipeline_mode = #tpu.pipeline_mode<synchronous>, transform_indices = @transform_2, window_bounds = array<i64: 1, 32>}, {transform_indices = @transform_3, window_bounds = array<i64: 16, 32>}, {pipeline_mode = #tpu.pipeline_mode<synchronous>, transform_indices = @transform_4, window_bounds = array<i64: 1, 32>}, {pipeline_mode = #tpu.pipeline_mode<synchronous>, transform_indices = @transform_5, window_bounds = array<i64: 1, 32>}, {transform_indices = @transform_6, window_bounds = array<i64: 16, 32>}]} {
    %c0_i32 = arith.constant 0 : i32
    %0 = arith.cmpi eq, %arg1, %c0_i32 : i32
    %1 = arith.extui %0 : i1 to i32
    %c0_i32_0 = arith.constant 0 : i32
    %2 = arith.cmpi ne, %1, %c0_i32_0 : i32
    scf.if %2 {
      %cst_10 = arith.constant 0.000000e+00 : f32
      %12 = vector.broadcast %cst_10 : f32 to vector<16x32xf32>
      %c0_11 = arith.constant 0 : index
      %c0_12 = arith.constant 0 : index
      %13 = vector.load %arg9[%c0_11, %c0_12] : memref<16x32xf32, #tpu.memory_space<vmem>>, vector<16x32xf32>
      tpu.vector_store %arg9[%c0_11, %c0_12], %12 {strides = array<i32>} : memref<16x32xf32, #tpu.memory_space<vmem>>, vector<16x32xf32>,
    } else {
    }
    %c0 = arith.constant 0 : index
    %c0_1 = arith.constant 0 : index
    %3 = vector.load %arg9[%c0, %c0_1] : memref<16x32xf32, #tpu.memory_space<vmem>>, vector<16x32xf32>
    %c0_2 = arith.constant 0 : index
    %c0_3 = arith.constant 0 : index
    %4 = vector.load %arg2[%c0_2, %c0_3] : memref<16x64xf32, #tpu.memory_space<vmem>>, vector<16x64xf32>
    %c0_4 = arith.constant 0 : index
    %c0_5 = arith.constant 0 : index
    %5 = vector.load %arg3[%c0_4, %c0_5] : memref<64x32xf32, #tpu.memory_space<vmem>>, vector<64x32xf32>
    %cst = arith.constant dense<0.000000e+00> : vector<16x32xf32>
    %6 = tpu.matmul %4, %5, %cst {dimension_numbers = #tpu.dot_dimension_numbers<[1], [0], [0], [1], [0, 0, 1, 1], [], []>} : vector<16x64xf32>, vector<64x32xf32>, vector<16x32xf32> -> vector<16x32xf32>
    %7 = arith.addf %3, %6 : vector<16x32xf32>
    %c0_6 = arith.constant 0 : index
    %c0_7 = arith.constant 0 : index
    %8 = vector.load %arg9[%c0_6, %c0_7] : memref<16x32xf32, #tpu.memory_space<vmem>>, vector<16x32xf32>
    tpu.vector_store %arg9[%c0_6, %c0_7], %7 {strides = array<i32>} : memref<16x32xf32, #tpu.memory_space<vmem>>, vector<16x32xf32>,
    %c0_i32_8 = arith.constant 0 : i32
    %9 = arith.cmpi eq, %arg1, %c0_i32_8 : i32
    %10 = arith.extui %9 : i1 to i32
    %c0_i32_9 = arith.constant 0 : i32
    %11 = arith.cmpi ne, %10, %c0_i32_9 : i32
    scf.if %11 {
      %c0_10 = arith.constant 0 : index
      %c0_11 = arith.constant 0 : index
      %12 = vector.load %arg9[%c0_10, %c0_11] : memref<16x32xf32, #tpu.memory_space<vmem>>, vector<16x32xf32>
      %c0_12 = arith.constant 0 : index
      %c0_13 = arith.constant 0 : index
      %13 = vector.load %arg4[%c0_12, %c0_13] : memref<1x32xf32, #tpu.memory_space<vmem>>, vector<1x32xf32>
      %14 = vector.broadcast %13 : vector<1x32xf32> to vector<16x32xf32>
      %15 = arith.addf %12, %14 : vector<16x32xf32>
      %c0_14 = arith.constant 0 : index
      %c0_15 = arith.constant 0 : index
      %16 = vector.load %arg5[%c0_14, %c0_15] : memref<16x32xf32, #tpu.memory_space<vmem>>, vector<16x32xf32>
      %17 = arith.addf %15, %16 : vector<16x32xf32>
      %cst_16 = arith.constant dense<0.000000e+00> : vector<16xf32>
      %18 = vector.multi_reduction <add>, %17, %cst_16 [1] : vector<16x32xf32> to vector<16xf32>
      %19 = vector.shape_cast %18 : vector<16xf32> to vector<16x1xf32>
      %cst_17 = arith.constant 3.200000e+01 : f32
      %20 = vector.broadcast %cst_17 : f32 to vector<16x1xf32>
      %21 = arith.divf %19, %20 : vector<16x1xf32>
      %22 = vector.broadcast %21 : vector<16x1xf32> to vector<16x32xf32>
      %23 = arith.subf %17, %22 : vector<16x32xf32>
      %24 = arith.mulf %23, %23 : vector<16x32xf32>
      %cst_18 = arith.constant dense<0.000000e+00> : vector<16xf32>
      %25 = vector.multi_reduction <add>, %24, %cst_18 [1] : vector<16x32xf32> to vector<16xf32>
      %26 = vector.shape_cast %25 : vector<16xf32> to vector<16x1xf32>
      %cst_19 = arith.constant 3.200000e+01 : f32
      %27 = vector.broadcast %cst_19 : f32 to vector<16x1xf32>
      %28 = arith.divf %26, %27 : vector<16x1xf32>
      %29 = vector.broadcast %21 : vector<16x1xf32> to vector<16x32xf32>
      %30 = arith.subf %17, %29 : vector<16x32xf32>
      %cst_20 = arith.constant 9.99999974E-6 : f32
      %31 = vector.broadcast %cst_20 : f32 to vector<16x1xf32>
      %32 = arith.addf %28, %31 : vector<16x1xf32>
      %33 = math.rsqrt %32 : vector<16x1xf32>
      %34 = vector.broadcast %33 : vector<16x1xf32> to vector<16x32xf32>
      %35 = arith.mulf %30, %34 : vector<16x32xf32>
      %c0_21 = arith.constant 0 : index
      %c0_22 = arith.constant 0 : index
      %36 = vector.load %arg6[%c0_21, %c0_22] : memref<1x32xf32, #tpu.memory_space<vmem>>, vector<1x32xf32>
      %37 = vector.broadcast %36 : vector<1x32xf32> to vector<16x32xf32>
      %38 = arith.mulf %37, %35 : vector<16x32xf32>
      %c0_23 = arith.constant 0 : index
      %c0_24 = arith.constant 0 : index
      %39 = vector.load %arg7[%c0_23, %c0_24] : memref<1x32xf32, #tpu.memory_space<vmem>>, vector<1x32xf32>
      %40 = vector.broadcast %39 : vector<1x32xf32> to vector<16x32xf32>
      %41 = arith.addf %38, %40 : vector<16x32xf32>
      %c0_25 = arith.constant 0 : index
      %c0_26 = arith.constant 0 : index
      %42 = vector.load %arg8[%c0_25, %c0_26] : memref<16x32xf32, #tpu.memory_space<vmem>>, vector<16x32xf32>
      tpu.vector_store %arg8[%c0_25, %c0_26], %41 {strides = array<i32>} : memref<16x32xf32, #tpu.memory_space<vmem>>, vector<16x32xf32>,
    } else {
    }
    return
  }
  func.func @transform_0(%arg0: i32, %arg1: i32) -> (i32, i32) {
    %c0_i32 = arith.constant 0 : i32
    return %arg0, %arg1 : i32, i32
  }
  func.func @transform_1(%arg0: i32, %arg1: i32) -> (i32, i32) {
    %c0_i32 = arith.constant 0 : i32
    %c0_i32_0 = arith.constant 0 : i32
    return %arg1, %c0_i32 : i32, i32
  }
  func.func @transform_2(%arg0: i32, %arg1: i32) -> (i32, i32) {
    %c0_i32 = arith.constant 0 : i32
    %c0_i32_0 = arith.constant 0 : i32
    %c0_i32_1 = arith.constant 0 : i32
    return %c0_i32, %c0_i32_0 : i32, i32
  }
  func.func @transform_3(%arg0: i32, %arg1: i32) -> (i32, i32) {
    %c0_i32 = arith.constant 0 : i32
    %c0_i32_0 = arith.constant 0 : i32
    return %arg0, %c0_i32 : i32, i32
  }
  func.func @transform_4(%arg0: i32, %arg1: i32) -> (i32, i32) {
    %c0_i32 = arith.constant 0 : i32
    %c0_i32_0 = arith.constant 0 : i32
    %c0_i32_1 = arith.constant 0 : i32
    return %c0_i32, %c0_i32_0 : i32, i32
  }
  func.func @transform_5(%arg0: i32, %arg1: i32) -> (i32, i32) {
    %c0_i32 = arith.constant 0 : i32
    %c0_i32_0 = arith.constant 0 : i32
    %c0_i32_1 = arith.constant 0 : i32
    return %c0_i32, %c0_i32_0 : i32, i32
  }
  func.func @transform_6(%arg0: i32, %arg1: i32) -> (i32, i32) {
    %c0_i32 = arith.constant 0 : i32
    %c0_i32_0 = arith.constant 0 : i32
    return %arg0, %c0_i32 : i32, i32
  }
}

</mosaic_0001>

<llo_original>
// kernel: decoder_forward.14
$region0: #{decoder_forward.14}
  #allocation0 [shape = 'u32[]', space=smem, size = 0x4, offset = 0x4, fixed_abs, tag = 'smem constant byte address 0x4 - core index']
  #allocation1 [shape = 'u32[144,128]{1,0:T(1,128)}', space=vmem, size = 0x12000, scoped, tag = 'internal scratch']
  #allocation2 [shape = 'f32[16,32]{1,0:T(8,128)}', space=vmem, size = 0x2000, scoped, tag = 'scratch operand']
  %s0 = inlined_call_operand.vmem [shape: f32[16,32], index: 0, kind: input, shape index: {}]
  %s1 = inlined_call_operand.hbm [shape: f32[32,32], index: 1, kind: input, shape index: {}]
  %s2 = inlined_call_operand.vmem [shape: f32[1,32], index: 2, kind: input, shape index: {}]
  %s3 = inlined_call_operand.vmem [shape: f32[16,32], index: 3, kind: output, shape index: {}]
  %s4 = sld [smem:[#allocation0]]
  $region34: #{decoder_forward.14} parent=0
    _
  %s6 = ssub.s32 1, %s4
  %s7 = scalar_select 0, %s6, %s4
  $region1: #{decoder_forward.14} parent=0
    #allocation3 [shape = 'u8[16384]{0}', space=vmem, size = 0x4000, scoped, tag = 'input window, operand 1, single buffered']
    #allocation4 [shape = 's32[1]{0}', space=sflag, size = 0x4, scoped, tag = 'scoped memory for decoder_forward.14']
    %8 = vsyncpa [#allocation4], 0
    // Predicated region
    $region2: #{decoder_forward.14} parent=1 // pred_check
      _
    $region3: #{decoder_forward.14} parent=1 // pred_check_branch
      %10 = sbr.rel (0) target = $region5
    $region4: #{decoder_forward.14} parent=1 // pred_region
      _
    $region5: #{decoder_forward.14} parent=1 // pred_fallthru
      _
    // Predicated region
    $region6: #{decoder_forward.14} parent=1 // pred_check
      _
    $region7: #{decoder_forward.14} parent=1 // pred_check_branch
      %12 = sbr.rel (0) target = $region9
    $region8: #{decoder_forward.14} parent=1 // pred_region
      %s14 = ssub.s32 512, 512
      %15 = vsyncadd [#allocation4], %s14
      %s16 = sshll.u32 [#allocation3], 4
      %s17 = int_to_ptr.vmem [resolvable:$true] %s16
      %22 = dma.hbm_to_vmem [thread:$0]  %s1, 512, %s17, [#allocation4], 128, 128, 8
    $region9: #{decoder_forward.14} parent=1 // pred_fallthru
      _
    // Predicated region
    $region10: #{decoder_forward.14} parent=1 // pred_check
      _
    $region11: #{decoder_forward.14} parent=1 // pred_check_branch
      %24 = sbr.rel (0) target = $region13
    $region12: #{decoder_forward.14} parent=1 // pred_region
      _
    $region13: #{decoder_forward.14} parent=1 // pred_fallthru
      _
    // Predicated region
    $region14: #{decoder_forward.14} parent=1 // pred_check
      _
    $region15: #{decoder_forward.14} parent=1 // pred_check_branch
      %26 = sbr.rel (0) target = $region17
    $region16: #{decoder_forward.14} parent=1 // pred_region
      %27 = dma.done [#allocation4], 512
    $region17: #{decoder_forward.14} parent=1 // pred_fallthru
      _
    %p28 = scmp.eq.s32.totalorder 0, 0
    // Predicated region
    $region18: #{decoder_forward.14} parent=1 // pred_check
      %p29 = pneg %p28
    $region19: #{decoder_forward.14} parent=1 // pred_check_branch
      %31 = sbr.rel (%p29) target = $region21
    $region20: #{decoder_forward.14} parent=1 // pred_region
      %vm32 = vcmask 261120
      %33 = vst.msk [vmem:[#allocation2] sm:$0xff] %vm32, 0.0
      %34 = vst.msk [vmem:[#allocation2 + $0x8] sm:$0xff] %vm32, 0.0
    $region21: #{decoder_forward.14} parent=1 // pred_fallthru
      _
    %v35 = vld [vmem:[#allocation2] sm:$0xff]
    %v36 = vld [vmem:[#allocation2 + $0x8] sm:$0xff]
    %v37 = vld [vmem:[%s0] sm:$0xff]
    %v38 = vld [vmem:[%s0 + $0x8] sm:$0xff]
    %v39 = vld [vmem:[#allocation3] sm:$0xff]
    %v40 = vld [vmem:[#allocation3 + $0x8] sm:$0xff]
    %v41 = vld [vmem:[#allocation3 + $0x10] sm:$0xff]
    %v42 = vld [vmem:[#allocation3 + $0x18] sm:$0xff]
    %vm43 = vcmask 261120
    %v45 = vsel %vm43, %v37, 0
    %v48 = vsel %vm43, %v38, 0
    %50 = vmatprep.subr.mxu0 0.0
    %51 = vmatpush1.msra.mxu0 0.0
    %52 = vmatprep.subr.mxu0 0.0
    %53 = vmatpush1.msra.mxu0 0.0
    %54 = vmatprep.subr.mxu0 0.0
    %55 = vmatpush1.msra.mxu0 0.0
    %56 = vmatprep.subr.mxu0 0.0
    %57 = vmatpush1.msra.mxu0 0.0
    %58 = vmatprep.subr.mxu0 0.0
    %59 = vmatpush1.msra.mxu0 0.0
    %60 = vmatprep.subr.mxu0 0.0
    %61 = vmatpush1.msra.mxu0 0.0
    %62 = vmatprep.subr.mxu0 0.0
    %63 = vmatpush1.msra.mxu0 0.0
    %64 = vmatprep.subr.mxu0 0.0
    %65 = vmatpush1.msra.mxu0 0.0
    %66 = vmatprep.subr.mxu0 0.0
    %67 = vmatpush1.msra.mxu0 0.0
    %68 = vmatprep.subr.mxu0 0.0
    %69 = vmatpush1.msra.mxu0 0.0
    %70 = vmatprep.subr.mxu0 0.0
    %71 = vmatpush1.msra.mxu0 0.0
    %72 = vmatprep.subr.mxu0 0.0
    %73 = vmatpush1.msra.mxu0 0.0
    %74 = vmatprep.subr.mxu0 0.0
    %75 = vmatpush1.msra.mxu0 %v42
    %76 = vmatprep.subr.mxu0 0.0
    %77 = vmatpush1.msra.mxu0 %v41
    %78 = vmatprep.subr.mxu0 0.0
    %79 = vmatpush1.msra.mxu0 %v40
    %80 = vmatprep.subr.mxu0 0.0
    %81 = vmatpush1.msra.mxu0 %v39
    %82 = vmatprep.subr.mxu0 0.0
    %83 = vmatpush2.msra.mxu0 0.0
    %84 = vmatprep.subr.mxu0 0.0
    %85 = vmatpush2.msra.mxu0 0.0
    %86 = vmatprep.subr.mxu0 0.0
    %87 = vmatpush2.msra.mxu0 0.0
    %88 = vmatprep.subr.mxu0 0.0
    %89 = vmatpush2.msra.mxu0 0.0
    %90 = vmatprep.subr.mxu0 0.0
    %91 = vmatpush2.msra.mxu0 0.0
    %92 = vmatprep.subr.mxu0 0.0
    %93 = vmatpush2.msra.mxu0 0.0
    %94 = vmatprep.subr.mxu0 0.0
    %95 = vmatpush2.msra.mxu0 0.0
    %96 = vmatprep.subr.mxu0 0.0
    %97 = vmatpush2.msra.mxu0 0.0
    %98 = vmatprep.subr.mxu0 0.0
    %99 = vmatpush2.msra.mxu0 0.0
    %100 = vmatprep.subr.mxu0 0.0
    %101 = vmatpush2.msra.mxu0 0.0
    %102 = vmatprep.subr.mxu0 0.0
    %103 = vmatpush2.msra.mxu0 0.0
    %104 = vmatprep.subr.mxu0 0.0
    %105 = vmatpush2.msra.mxu0 0.0
    %106 = vmatprep.subr.mxu0 0.0
    %107 = vmatpush2.msra.mxu0 0.0
    %108 = vmatprep.subr.mxu0 0.0
    %109 = vmatpush2.msra.mxu0 0.0
    %110 = vmatprep.subr.mxu0 0.0
    %111 = vmatpush2.msra.mxu0 0.0
    %112 = vmatprep.subr.mxu0 0.0
    %113 = vmatpush2.msra.mxu0 0.0
    %114 = vmatprep.mubr.f32.mxu0 0.0
    %115 = vmatmul.mubr.f32.gmra.mxu0 %v45
    %v116 = vpop.f32.mrf.mxu0
    %v117 = vadd.f32 0.0, %v116
    %v118 = vpop.f32.mrf.mxu0
    %119 = vmatprep.mubr.f32.mxu0 0.0
    %120 = vmatmul.mubr.f32.gmra.mxu0 %v48
    %v121 = vpop.f32.mrf.mxu0
    %v122 = vadd.f32 0.0, %v121
    %v123 = vpop.f32.mrf.mxu0
    %124 = vdwg.mxu0
    %v125 = vadd.f32 %v35, %v117
    %v126 = vadd.f32 %v36, %v122
    %127 = vst.msk [vmem:[#allocation2] sm:$0xff] %vm43, %v125
    %128 = vst.msk [vmem:[#allocation2 + $0x8] sm:$0xff] %vm43, %v126
    // Predicated region
    $region22: #{decoder_forward.14} parent=1 // pred_check
      %p129 = pneg %p28
    $region23: #{decoder_forward.14} parent=1 // pred_check_branch
      %131 = sbr.rel (%p129) target = $region25
    $region24: #{decoder_forward.14} parent=1 // pred_region
      %v132 = vld [vmem:[#allocation2] sm:$0xff]
      %v133 = vld [vmem:[#allocation2 + $0x8] sm:$0xff]
      %v134 = vld [vmem:[%s2] sm:$0x1]
      %v136 = vlaneseq
      %v137 = vshrl.u32 %v136, 7
      %v138 = vsub.s32 0, %v137
      %v139 = vrot.slane %v134, %v138
      %v141 = vadd.f32 %v132, %v139
      %v142 = vadd.f32 %v133, %v139
      %143 = vst.msk [vmem:[%s3] sm:$0xff] %vm43, %v141
      %144 = vst.msk [vmem:[%s3 + $0x8] sm:$0xff] %vm43, %v142
    $region25: #{decoder_forward.14} parent=1 // pred_fallthru
      _
    // Predicated region
    $region26: #{decoder_forward.14} parent=1 // pred_check
      _
    $region27: #{decoder_forward.14} parent=1 // pred_check_branch
      %146 = sbr.rel (0) target = $region29
    $region28: #{decoder_forward.14} parent=1 // pred_region
      _
    $region29: #{decoder_forward.14} parent=1 // pred_fallthru
      _
    // Predicated region
    $region30: #{decoder_forward.14} parent=1 // pred_check
      _
    $region31: #{decoder_forward.14} parent=1 // pred_check_branch
      %148 = sbr.rel (0) target = $region33
    $region32: #{decoder_forward.14} parent=1 // pred_region
      _
    $region33: #{decoder_forward.14} parent=1 // pred_fallthru
      _
    %149 = vsyncpa [#allocation4], 1

// kernel: decoder_forward.16
$region0: #{decoder_forward.16}
  #allocation0 [shape = 'u32[]', space=smem, size = 0x4, offset = 0x4, fixed_abs, tag = 'smem constant byte address 0x4 - core index']
  #allocation1 [shape = 'u32[144,128]{1,0:T(1,128)}', space=vmem, size = 0x12000, scoped, tag = 'internal scratch']
  #allocation2 [shape = 'f32[16,32]{1,0:T(8,128)}', space=vmem, size = 0x2000, scoped, tag = 'scratch operand']
  %s0 = inlined_call_operand.vmem [shape: f32[16,32], index: 0, kind: input, shape index: {}]
  %s1 = inlined_call_operand.vmem [shape: f32[32,32], index: 1, kind: input, shape index: {}]
  %s2 = inlined_call_operand.vmem [shape: f32[1,32], index: 2, kind: input, shape index: {}]
  %s3 = inlined_call_operand.vmem [shape: f32[16,32], index: 3, kind: input, shape index: {}]
  %s4 = inlined_call_operand.vmem [shape: f32[1,32], index: 4, kind: input, shape index: {}]
  %s5 = inlined_call_operand.vmem [shape: f32[1,32], index: 5, kind: input, shape index: {}]
  %s6 = inlined_call_operand.vmem [shape: f32[16,32], index: 6, kind: output, shape index: {}]
  %s7 = sld [smem:[#allocation0]]
  $region42: #{decoder_forward.16} parent=0
    _
  %s9 = ssub.s32 1, %s7
  %s10 = scalar_select 0, %s9, %s7
  // Predicated region
  $region2: #{decoder_forward.16} parent=0 // pred_check
    _
  $region3: #{decoder_forward.16} parent=0 // pred_check_branch
    %12 = sbr.rel (0) target = $region5
  $region4: #{decoder_forward.16} parent=0 // pred_region
    _
  $region5: #{decoder_forward.16} parent=0 // pred_fallthru
    _
  // Predicated region
  $region6: #{decoder_forward.16} parent=0 // pred_check
    _
  $region7: #{decoder_forward.16} parent=0 // pred_check_branch
    %14 = sbr.rel (0) target = $region9
  $region8: #{decoder_forward.16} parent=0 // pred_region
    _
  $region9: #{decoder_forward.16} parent=0 // pred_fallthru
    _
  // Predicated region
  $region10: #{decoder_forward.16} parent=0 // pred_check
    _
  $region11: #{decoder_forward.16} parent=0 // pred_check_branch
    %16 = sbr.rel (0) target = $region13
  $region12: #{decoder_forward.16} parent=0 // pred_region
    _
  $region13: #{decoder_forward.16} parent=0 // pred_fallthru
    _
  // Predicated region
  $region14: #{decoder_forward.16} parent=0 // pred_check
    _
  $region15: #{decoder_forward.16} parent=0 // pred_check_branch
    %18 = sbr.rel (0) target = $region17
  $region16: #{decoder_forward.16} parent=0 // pred_region
    _
  $region17: #{decoder_forward.16} parent=0 // pred_fallthru
    _
  // Predicated region
  $region18: #{decoder_forward.16} parent=0 // pred_check
    _
  $region19: #{decoder_forward.16} parent=0 // pred_check_branch
    %20 = sbr.rel (0) target = $region21
  $region20: #{decoder_forward.16} parent=0 // pred_region
    _
  $region21: #{decoder_forward.16} parent=0 // pred_fallthru
    _
  // Predicated region
  $region22: #{decoder_forward.16} parent=0 // pred_check
    _
  $region23: #{decoder_forward.16} parent=0 // pred_check_branch
    %22 = sbr.rel (0) target = $region25
  $region24: #{decoder_forward.16} parent=0 // pred_region
    _
  $region25: #{decoder_forward.16} parent=0 // pred_fallthru
    _
  %p23 = scmp.eq.s32.totalorder 0, 0
  // Predicated region
  $region26: #{decoder_forward.16} parent=0 // pred_check
    %p24 = pneg %p23
  $region27: #{decoder_forward.16} parent=0 // pred_check_branch
    %26 = sbr.rel (%p24) target = $region29
  $region28: #{decoder_forward.16} parent=0 // pred_region
    %vm27 = vcmask 261120
    %28 = vst.msk [vmem:[#allocation2] sm:$0xff] %vm27, 0.0
    %29 = vst.msk [vmem:[#allocation2 + $0x8] sm:$0xff] %vm27, 0.0
  $region29: #{decoder_forward.16} parent=0 // pred_fallthru
    _
  %v30 = vld [vmem:[#allocation2] sm:$0xff]
  %v31 = vld [vmem:[#allocation2 + $0x8] sm:$0xff]
  %v32 = vld [vmem:[%s0] sm:$0xff]
  %v33 = vld [vmem:[%s0 + $0x8] sm:$0xff]
  %v34 = vld [vmem:[%s1] sm:$0xff]
  %v35 = vld [vmem:[%s1 + $0x8] sm:$0xff]
  %v36 = vld [vmem:[%s1 + $0x10] sm:$0xff]
  %v37 = vld [vmem:[%s1 + $0x18] sm:$0xff]
  %vm38 = vcmask 261120
  %v40 = vsel %vm38, %v32, 0
  %v43 = vsel %vm38, %v33, 0
  %45 = vmatprep.subr.mxu0 0.0
  %46 = vmatpush1.msra.mxu0 0.0
  %47 = vmatprep.subr.mxu0 0.0
  %48 = vmatpush1.msra.mxu0 0.0
  %49 = vmatprep.subr.mxu0 0.0
  %50 = vmatpush1.msra.mxu0 0.0
  %51 = vmatprep.subr.mxu0 0.0
  %52 = vmatpush1.msra.mxu0 0.0
  %53 = vmatprep.subr.mxu0 0.0
  %54 = vmatpush1.msra.mxu0 0.0
  %55 = vmatprep.subr.mxu0 0.0
  %56 = vmatpush1.msra.mxu0 0.0
  %57 = vmatprep.subr.mxu0 0.0
  %58 = vmatpush1.msra.mxu0 0.0
  %59 = vmatprep.subr.mxu0 0.0
  %60 = vmatpush1.msra.mxu0 0.0
  %61 = vmatprep.subr.mxu0 0.0
  %62 = vmatpush1.msra.mxu0 0.0
  %63 = vmatprep.subr.mxu0 0.0
  %64 = vmatpush1.msra.mxu0 0.0
  %65 = vmatprep.subr.mxu0 0.0
  %66 = vmatpush1.msra.mxu0 0.0
  %67 = vmatprep.subr.mxu0 0.0
  %68 = vmatpush1.msra.mxu0 0.0
  %69 = vmatprep.subr.mxu0 0.0
  %70 = vmatpush1.msra.mxu0 %v37
  %71 = vmatprep.subr.mxu0 0.0
  %72 = vmatpush1.msra.mxu0 %v36
  %73 = vmatprep.subr.mxu0 0.0
  %74 = vmatpush1.msra.mxu0 %v35
  %75 = vmatprep.subr.mxu0 0.0
  %76 = vmatpush1.msra.mxu0 %v34
  %77 = vmatprep.subr.mxu0 0.0
  %78 = vmatpush2.msra.mxu0 0.0
  %79 = vmatprep.subr.mxu0 0.0
  %80 = vmatpush2.msra.mxu0 0.0
  %81 = vmatprep.subr.mxu0 0.0
  %82 = vmatpush2.msra.mxu0 0.0
  %83 = vmatprep.subr.mxu0 0.0
  %84 = vmatpush2.msra.mxu0 0.0
  %85 = vmatprep.subr.mxu0 0.0
  %86 = vmatpush2.msra.mxu0 0.0
  %87 = vmatprep.subr.mxu0 0.0
  %88 = vmatpush2.msra.mxu0 0.0
  %89 = vmatprep.subr.mxu0 0.0
  %90 = vmatpush2.msra.mxu0 0.0
  %91 = vmatprep.subr.mxu0 0.0
  %92 = vmatpush2.msra.mxu0 0.0
  %93 = vmatprep.subr.mxu0 0.0
  %94 = vmatpush2.msra.mxu0 0.0
  %95 = vmatprep.subr.mxu0 0.0
  %96 = vmatpush2.msra.mxu0 0.0
  %97 = vmatprep.subr.mxu0 0.0
  %98 = vmatpush2.msra.mxu0 0.0
  %99 = vmatprep.subr.mxu0 0.0
  %100 = vmatpush2.msra.mxu0 0.0
  %101 = vmatprep.subr.mxu0 0.0
  %102 = vmatpush2.msra.mxu0 0.0
  %103 = vmatprep.subr.mxu0 0.0
  %104 = vmatpush2.msra.mxu0 0.0
  %105 = vmatprep.subr.mxu0 0.0
  %106 = vmatpush2.msra.mxu0 0.0
  %107 = vmatprep.subr.mxu0 0.0
  %108 = vmatpush2.msra.mxu0 0.0
  %109 = vmatprep.mubr.f32.mxu0 0.0
  %110 = vmatmul.mubr.f32.gmra.mxu0 %v40
  %v111 = vpop.f32.mrf.mxu0
  %v112 = vadd.f32 0.0, %v111
  %v113 = vpop.f32.mrf.mxu0
  %114 = vmatprep.mubr.f32.mxu0 0.0
  %115 = vmatmul.mubr.f32.gmra.mxu0 %v43
  %v116 = vpop.f32.mrf.mxu0
  %v117 = vadd.f32 0.0, %v116
  %v118 = vpop.f32.mrf.mxu0
  %119 = vdwg.mxu0
  %v120 = vadd.f32 %v30, %v112
  %v121 = vadd.f32 %v31, %v117
  %122 = vst.msk [vmem:[#allocation2] sm:$0xff] %vm38, %v120
  %123 = vst.msk [vmem:[#allocation2 + $0x8] sm:$0xff] %vm38, %v121
  // Predicated region
  $region30: #{decoder_forward.16} parent=0 // pred_check
    %p124 = pneg %p23
  $region31: #{decoder_forward.16} parent=0 // pred_check_branch
    %126 = sbr.rel (%p124) target = $region33
  $region32: #{decoder_forward.16} parent=0 // pred_region
    %v127 = vld [vmem:[#allocation2] sm:$0xff]
    %v128 = vld [vmem:[#allocation2 + $0x8] sm:$0xff]
    %v129 = vld [vmem:[%s2] sm:$0x1]
    %v131 = vlaneseq
    %v132 = vshrl.u32 %v131, 7
    %v133 = vsub.s32 0, %v132
    %v134 = vrot.slane %v129, %v133
    %v136 = vadd.f32 %v127, %v134
    %v137 = vadd.f32 %v128, %v134
    %v138 = vld [vmem:[%s3] sm:$0xff]
    %v139 = vld [vmem:[%s3 + $0x8] sm:$0xff]
    %v140 = vadd.f32 %v136, %v138
    %v141 = vadd.f32 %v137, %v139
    %v142 = vsel %vm38, %v140, 0.0
    %143 = vadd.xlane.f32.xlu0 %v142
    %v144 = vpop.xlane.xlu0 %143
    %v145 = vsel %vm38, %v141, 0.0
    %146 = vadd.xlane.f32.xlu0 %v145
    %v147 = vpop.xlane.xlu0 %146
    %v148 = vrcp.pop 32.0
    %v149 = vmul.f32 %v144, %v148
    %v150 = vmul.f32 %v147, %v148
    %v151 = vsub.f32 %v140, %v149
    %v152 = vsub.f32 %v141, %v150
    %v153 = vmul.f32 %v151, %v151
    %v154 = vmul.f32 %v152, %v152
    %v155 = vsel %vm38, %v153, 0.0
    %156 = vadd.xlane.f32.xlu0 %v155
    %v157 = vpop.xlane.xlu0 %156
    %v158 = vsel %vm38, %v154, 0.0
    %159 = vadd.xlane.f32.xlu0 %v158
    %v160 = vpop.xlane.xlu0 %159
    %v161 = vmul.f32 %v157, %v148
    %v162 = vmul.f32 %v160, %v148
    %v163 = vadd.f32 %v161, 1e-05
    %v164 = vadd.f32 %v162, 1e-05
    %v165 = vrsqrt.pop %v163
    %v166 = vrsqrt.pop %v164
    %v167 = vmul.f32 %v151, %v165
    %v168 = vmul.f32 %v152, %v166
    %v169 = vld [vmem:[%s4] sm:$0x1]
    %v171 = vlaneseq
    %v172 = vshrl.u32 %v171, 7
    %v173 = vsub.s32 0, %v172
    %v174 = vrot.slane %v169, %v173
    %v176 = vmul.f32 %v174, %v167
    %v177 = vmul.f32 %v174, %v168
    %v178 = vld [vmem:[%s5] sm:$0x1]
    %v180 = vlaneseq
    %v181 = vshrl.u32 %v180, 7
    %v182 = vsub.s32 0, %v181
    %v183 = vrot.slane %v178, %v182
    %v185 = vadd.f32 %v176, %v183
    %v186 = vadd.f32 %v177, %v183
    %187 = vst.msk [vmem:[%s6] sm:$0xff] %vm38, %v185
    %188 = vst.msk [vmem:[%s6 + $0x8] sm:$0xff] %vm38, %v186
  $region33: #{decoder_forward.16} parent=0 // pred_fallthru
    _
  // Predicated region
  $region34: #{decoder_forward.16} parent=0 // pred_check
    _
  $region35: #{decoder_forward.16} parent=0 // pred_check_branch
    %190 = sbr.rel (0) target = $region37
  $region36: #{decoder_forward.16} parent=0 // pred_region
    _
  $region37: #{decoder_forward.16} parent=0 // pred_fallthru
    _
  // Predicated region
  $region38: #{decoder_forward.16} parent=0 // pred_check
    _
  $region39: #{decoder_forward.16} parent=0 // pred_check_branch
    %192 = sbr.rel (0) target = $region41
  $region40: #{decoder_forward.16} parent=0 // pred_region
    _
  $region41: #{decoder_forward.16} parent=0 // pred_fallthru
    _

// kernel: decoder_forward.15
$region0: #{decoder_forward.15}
  #allocation0 [shape = 'u32[]', space=smem, size = 0x4, offset = 0x4, fixed_abs, tag = 'smem constant byte address 0x4 - core index']
  #allocation1 [shape = 'u32[144,128]{1,0:T(1,128)}', space=vmem, size = 0x12000, scoped, tag = 'internal scratch']
  %s0 = inlined_call_operand.vmem [shape: f32[2,8,32], index: 0, kind: input, shape index: {}]
  %s1 = inlined_call_operand.vmem [shape: f32[32,96], index: 1, kind: input, shape index: {}]
  %s2 = inlined_call_operand.vmem [shape: f32[1,96], index: 2, kind: input, shape index: {}]
  %s3 = inlined_call_operand.vmem [shape: f32[2,4,8,8], index: 3, kind: output, shape index: {}]
  %s4 = sld [smem:[#allocation0]]
  $region45: #{decoder_forward.15} parent=0
    _
  %s6 = ssub.s32 1, %s4
  %s7 = scalar_select 0, %s6, %s4
  loop: start=0, step=1, limit=4
  $region2: #{decoder_forward.15} parent=0 // loop_pre_header
    _
  $region3: #{decoder_forward.15} parent=0 // loop_header
    %s9 = sphi 0, %s13
    %p10 = scmp.ge.s32.totalorder %s9, 4
    %s19 = sphi 0, %s21
    %s22 = sphi 0, %s19
    %s23 = sphi 0, %s22
    %s39 = sphi 0, %s23
    %s43 = sphi 0, %s43
    %s45 = sphi 0, %s43
    %s46 = sphi 0, %s45
    %s60 = sphi 0, %s46
    %s64 = sphi 0, %s64
    %s66 = sphi 0, %s64
    %s67 = sphi 0, %s66
    %s81 = sphi 0, %s67
    %s87 = sphi 0, %s89
    %s90 = sphi 0, %s87
    %s91 = sphi 0, %s90
    %s107 = sphi 0, %s91
  $region4: #{decoder_forward.15} parent=0 // loop_header_branch
    %12 = sbr.rel (%p10) target = $region8
  $region5: #{decoder_forward.15} parent=0 // loop_body
    %s14 = ssub.s32 %s9, 1
    %s15 = ssub.s32 %s9, 2
    %s16 = sadd.s32 %s9, 1
    %s17 = ssub.s32 %s9, %s16
    %p18 = scmp.eq.s32.totalorder %s17, 0
    %s20 = sadd.s32 %s19, 1
    %s21 = scalar_select %p18, %s19, %s20
    %p24 = pneg %p18
    %p25 = scmp.eq.s32.totalorder %s9, 1
    %p26 = por %p24, %p25
    %p27 = scmp.ne.s32.totalorder %s19, %s22
    %p28 = scmp.eq.s32.totalorder %s9, 0
    %p29 = por %p27, %p28
    %p30 = scmp.ne.s32.totalorder %s19, %s22
    %p31 = scmp.eq.s32.totalorder %s14, 1
    %p32 = por %p30, %p31
    %p33 = scmp.ne.s32.totalorder %s22, %s23
    %p34 = scmp.eq.s32.totalorder %s14, 0
    %p35 = por %p33, %p34
    %p36 = scmp.ne.s32.totalorder %s22, %s23
    %p37 = scmp.eq.s32.totalorder %s15, 1
    %p38 = por %p36, %p37
    %p40 = scmp.ne.s32.totalorder %s23, %s39
    %p41 = scmp.eq.s32.totalorder %s15, 0
    %p42 = por %p40, %p41
    %s44 = sadd.s32 %s43, 1
    %p47 = scmp.eq.s32.totalorder %s9, 1
    %p48 = scmp.ne.s32.totalorder %s43, %s45
    %p49 = scmp.eq.s32.totalorder %s9, 0
    %p50 = por %p48, %p49
    %p51 = scmp.ne.s32.totalorder %s43, %s45
    %p52 = scmp.eq.s32.totalorder %s14, 1
    %p53 = por %p51, %p52
    %p54 = scmp.ne.s32.totalorder %s45, %s46
    %p55 = scmp.eq.s32.totalorder %s14, 0
    %p56 = por %p54, %p55
    %p57 = scmp.ne.s32.totalorder %s45, %s46
    %p58 = scmp.eq.s32.totalorder %s15, 1
    %p59 = por %p57, %p58
    %p61 = scmp.ne.s32.totalorder %s46, %s60
    %p62 = scmp.eq.s32.totalorder %s15, 0
    %p63 = por %p61, %p62
    %s65 = sadd.s32 %s64, 1
    %p68 = scmp.eq.s32.totalorder %s9, 1
    %p69 = scmp.ne.s32.totalorder %s64, %s66
    %p70 = scmp.eq.s32.totalorder %s9, 0
    %p71 = por %p69, %p70
    %p72 = scmp.ne.s32.totalorder %s64, %s66
    %p73 = scmp.eq.s32.totalorder %s14, 1
    %p74 = por %p72, %p73
    %p75 = scmp.ne.s32.totalorder %s66, %s67
    %p76 = scmp.eq.s32.totalorder %s14, 0
    %p77 = por %p75, %p76
    %p78 = scmp.ne.s32.totalorder %s66, %s67
    %p79 = scmp.eq.s32.totalorder %s15, 1
    %p80 = por %p78, %p79
    %p82 = scmp.ne.s32.totalorder %s67, %s81
    %p83 = scmp.eq.s32.totalorder %s15, 0
    %p84 = por %p82, %p83
    %s85 = ssub.s32 %s9, %s16
    %p86 = scmp.eq.s32.totalorder %s85, 0
    %s88 = sadd.s32 %s87, 1
    %s89 = scalar_select %p86, %s87, %s88
    %p92 = pneg %p86
    %p93 = scmp.eq.s32.totalorder %s9, 1
    %p94 = por %p92, %p93
    %p95 = scmp.ne.s32.totalorder %s87, %s90
    %p96 = scmp.eq.s32.totalorder %s9, 0
    %p97 = por %p95, %p96
    %p98 = scmp.ne.s32.totalorder %s87, %s90
    %p99 = scmp.eq.s32.totalorder %s14, 1
    %p100 = por %p98, %p99
    %p101 = scmp.ne.s32.totalorder %s90, %s91
    %p102 = scmp.eq.s32.totalorder %s14, 0
    %p103 = por %p101, %p102
    %p104 = scmp.ne.s32.totalorder %s90, %s91
    %p105 = scmp.eq.s32.totalorder %s15, 1
    %p106 = por %p104, %p105
    %p108 = scmp.ne.s32.totalorder %s91, %s107
    %p109 = scmp.eq.s32.totalorder %s15, 0
    %p110 = por %p108, %p109
    %p111 = scmp.le.s32.totalorder 1, %s9
    %p112 = scmp.lt.s32.totalorder %s9, 3
    %p113 = pnand %p111, %p112
    %p114 = pneg %p113
    // Predicated region
    $region9: #{decoder_forward.15} parent=5 // pred_check
      _
    $region10: #{decoder_forward.15} parent=5 // pred_check_branch
      %116 = sbr.rel (%p113) target = $region12
    $region11: #{decoder_forward.15} parent=5 // pred_region
      %s117 = ssub.s32 %s9, 1
      // Predicated region
      $region13: #{decoder_forward.15} parent=11 // pred_check
        %p118 = pneg %p56
      $region14: #{decoder_forward.15} parent=11 // pred_check_branch
        %120 = sbr.rel (%p118) target = $region16
      $region15: #{decoder_forward.15} parent=11 // pred_region
        _
      $region16: #{decoder_forward.15} parent=11 // pred_fallthru
        _
      // Predicated region
      $region17: #{decoder_forward.15} parent=11 // pred_check
        %p121 = pneg %p77
      $region18: #{decoder_forward.15} parent=11 // pred_check_branch
        %123 = sbr.rel (%p121) target = $region20
      $region19: #{decoder_forward.15} parent=11 // pred_region
        _
      $region20: #{decoder_forward.15} parent=11 // pred_fallthru
        _
    $region12: #{decoder_forward.15} parent=5 // pred_fallthru
      _
    %p124 = scmp.lt.s32.totalorder %s9, 2
    // Predicated region
    $region21: #{decoder_forward.15} parent=5 // pred_check
      %p125 = pneg %p124
    $region22: #{decoder_forward.15} parent=5 // pred_check_branch
      %127 = sbr.rel (%p125) target = $region24
    $region23: #{decoder_forward.15} parent=5 // pred_region
      // Predicated region
      $region25: #{decoder_forward.15} parent=23 // pred_check
        %p128 = pneg %p29
      $region26: #{decoder_forward.15} parent=23 // pred_check_branch
        %130 = sbr.rel (%p128) target = $region28
      $region27: #{decoder_forward.15} parent=23 // pred_region
        %p131 = scmp.lt.s32.totalorder %s9, 1
        %s132 = scalar_select %p131, %s9, 1
        %s133 = smul.addr %s132, 8
        %s134 = scalar_lea.vmem %s0, %s133
      $region28: #{decoder_forward.15} parent=23 // pred_fallthru
        _
    $region24: #{decoder_forward.15} parent=5 // pred_fallthru
      _
    %p135 = scmp.le.s32.totalorder 1, %s9
    %p136 = scmp.lt.s32.totalorder %s9, 3
    %p137 = pnand %p135, %p136
    %p138 = pneg %p137
    // Predicated region
    $region29: #{decoder_forward.15} parent=5 // pred_check
      _
    $region30: #{decoder_forward.15} parent=5 // pred_check_branch
      %140 = sbr.rel (%p137) target = $region32
    $region31: #{decoder_forward.15} parent=5 // pred_region
      %s141 = ssub.s32 %s9, 1
      %p142 = scmp.lt.s32.totalorder %s14, 1
      %s143 = scalar_select %p142, %s14, 1
      %s144 = smul.addr %s143, 8
      %s145 = scalar_lea.vmem %s0, %s144
      %p146 = pneg %p35
      %p147 = pneg %p32
      %p148 = pneg %p56
      %p149 = pneg %p53
      %p150 = pneg %p77
      %p151 = pneg %p74
      %p152 = pneg %p103
      %p153 = pneg %p100
      %p154 = scmp.lt.s32.totalorder %s14, 1
      %s155 = scalar_select %p154, %s14, 1
      %s156 = smul.addr %s155, 4
      %s157 = smul.addr %s156, 8
      %s158 = scalar_lea.vmem %s3, %s157
      %p159 = scmp.lt.s32.totalorder %s14, 1
      %s160 = scalar_select %p159, %s14, 1
      %s161 = smul.addr %s160, 8
      %s162 = scalar_lea.vmem %s0, %s161
      %p163 = scmp.lt.s32.totalorder %s14, 1
      %s164 = scalar_select %p163, %s14, 1
      %s165 = smul.addr %s164, 4
      %s166 = smul.addr %s165, 8
      %s167 = scalar_lea.vmem %s3, %s166
      %v168 = vld [vmem:[%s162] sm:$0xff]
      %v169 = vld [vmem:[%s1] sm:$0xff]
      %v170 = vld [vmem:[%s1 + $0x8] sm:$0xff]
      %v171 = vld [vmem:[%s1 + $0x10] sm:$0xff]
      %v172 = vld [vmem:[%s1 + $0x18] sm:$0xff]
      %v173 = vld [vmem:[%s2] sm:$0x1]
      %v175 = vlaneseq
      %v176 = vshrl.u32 %v175, 7
      %v177 = vsub.s32 0, %v176
      %v178 = vrot.slane %v173, %v177
      %vm180 = vcmask 261120
      %v182 = vsel %vm180, %v168, 0
      %184 = vmatprep.subr.mxu0 0.0
      %185 = vmatpush1.msra.mxu0 0.0
      %186 = vmatprep.subr.mxu0 0.0
      %187 = vmatpush1.msra.mxu0 0.0
      %188 = vmatprep.subr.mxu0 0.0
      %189 = vmatpush1.msra.mxu0 0.0
      %190 = vmatprep.subr.mxu0 0.0
      %191 = vmatpush1.msra.mxu0 0.0
      %192 = vmatprep.subr.mxu0 0.0
      %193 = vmatpush1.msra.mxu0 0.0
      %194 = vmatprep.subr.mxu0 0.0
      %195 = vmatpush1.msra.mxu0 0.0
      %196 = vmatprep.subr.mxu0 0.0
      %197 = vmatpush1.msra.mxu0 0.0
      %198 = vmatprep.subr.mxu0 0.0
      %199 = vmatpush1.msra.mxu0 0.0
      %200 = vmatprep.subr.mxu0 0.0
      %201 = vmatpush1.msra.mxu0 0.0
      %202 = vmatprep.subr.mxu0 0.0
      %203 = vmatpush1.msra.mxu0 0.0
      %204 = vmatprep.subr.mxu0 0.0
      %205 = vmatpush1.msra.mxu0 0.0
      %206 = vmatprep.subr.mxu0 0.0
      %207 = vmatpush1.msra.mxu0 0.0
      %208 = vmatprep.subr.mxu0 0.0
      %209 = vmatpush1.msra.mxu0 %v172
      %210 = vmatprep.subr.mxu0 0.0
      %211 = vmatpush1.msra.mxu0 %v171
      %212 = vmatprep.subr.mxu0 0.0
      %213 = vmatpush1.msra.mxu0 %v170
      %214 = vmatprep.subr.mxu0 0.0
      %215 = vmatpush1.msra.mxu0 %v169
      %216 = vmatprep.subr.mxu0 0.0
      %217 = vmatpush2.msra.mxu0 0.0
      %218 = vmatprep.subr.mxu0 0.0
      %219 = vmatpush2.msra.mxu0 0.0
      %220 = vmatprep.subr.mxu0 0.0
      %221 = vmatpush2.msra.mxu0 0.0
      %222 = vmatprep.subr.mxu0 0.0
      %223 = vmatpush2.msra.mxu0 0.0
      %224 = vmatprep.subr.mxu0 0.0
      %225 = vmatpush2.msra.mxu0 0.0
      %226 = vmatprep.subr.mxu0 0.0
      %227 = vmatpush2.msra.mxu0 0.0
      %228 = vmatprep.subr.mxu0 0.0
      %229 = vmatpush2.msra.mxu0 0.0
      %230 = vmatprep.subr.mxu0 0.0
      %231 = vmatpush2.msra.mxu0 0.0
      %232 = vmatprep.subr.mxu0 0.0
      %233 = vmatpush2.msra.mxu0 0.0
      %234 = vmatprep.subr.mxu0 0.0
      %235 = vmatpush2.msra.mxu0 0.0
      %236 = vmatprep.subr.mxu0 0.0
      %237 = vmatpush2.msra.mxu0 0.0
      %238 = vmatprep.subr.mxu0 0.0
      %239 = vmatpush2.msra.mxu0 0.0
      %240 = vmatprep.subr.mxu0 0.0
      %241 = vmatpush2.msra.mxu0 0.0
      %242 = vmatprep.subr.mxu0 0.0
      %243 = vmatpush2.msra.mxu0 0.0
      %244 = vmatprep.subr.mxu0 0.0
      %245 = vmatpush2.msra.mxu0 0.0
      %246 = vmatprep.subr.mxu0 0.0
      %247 = vmatpush2.msra.mxu0 0.0
      %248 = vmatprep.mubr.f32.mxu0 0.0
      %249 = vmatmul.mubr.f32.gmra.mxu0 %v182
      %v250 = vpop.f32.mrf.mxu0
      %v251 = vadd.f32 %v178, %v250
      %v252 = vpop.f32.mrf.mxu0
      %253 = vdwg.mxu0
      %255 = vrot.lane.b32.xlu0 %v251, 120
      %v256 = vpop.permute.xlu0 %255
      %vm257 = vcmask 64512
      %v258 = vsel %vm257, %v251, 0
      %v260 = vsel %vm257, %v256, 0
      %262 = vmatprep.subr.mxu0 0.0
      %263 = vmatpush1.xpose.msra.mxu0 0.0
      %264 = vmatprep.subr.mxu0 0.0
      %265 = vmatpush1.xpose.msra.mxu0 0.0
      %266 = vmatprep.subr.mxu0 0.0
      %267 = vmatpush1.xpose.msra.mxu0 0.0
      %268 = vmatprep.subr.mxu0 0.0
      %269 = vmatpush1.xpose.msra.mxu0 0.0
      %270 = vmatprep.subr.mxu0 0.0
      %271 = vmatpush1.xpose.msra.mxu0 0.0
      %272 = vmatprep.subr.mxu0 0.0
      %273 = vmatpush1.xpose.msra.mxu0 0.0
      %274 = vmatprep.subr.mxu0 0.0
      %275 = vmatpush1.xpose.msra.mxu0 0.0
      %276 = vmatprep.subr.mxu0 0.0
      %277 = vmatpush1.xpose.msra.mxu0 0.0
      %278 = vmatprep.subr.mxu0 0.0
      %279 = vmatpush1.xpose.msra.mxu0 0.0
      %280 = vmatprep.subr.mxu0 0.0
      %281 = vmatpush1.xpose.msra.mxu0 0.0
      %282 = vmatprep.subr.mxu0 0.0
      %283 = vmatpush1.xpose.msra.mxu0 0.0
      %284 = vmatprep.subr.mxu0 0.0
      %285 = vmatpush1.xpose.msra.mxu0 0.0
      %286 = vmatprep.subr.mxu0 0.0
      %287 = vmatpush1.xpose.msra.mxu0 0.0
      %288 = vmatprep.subr.mxu0 0.0
      %289 = vmatpush1.xpose.msra.mxu0 0.0
      %290 = vmatprep.subr.mxu0 0.0
      %291 = vmatpush1.xpose.msra.mxu0 0.0
      %292 = vmatprep.subr.mxu0 0.0
      %293 = vmatpush1.xpose.msra.mxu0 %v260
      %294 = vmatprep.subr.mxu0 0.0
      %295 = vmatpush2.xpose.msra.mxu0 0.0
      %296 = vmatprep.subr.mxu0 0.0
      %297 = vmatpush2.xpose.msra.mxu0 0.0
      %298 = vmatprep.subr.mxu0 0.0
      %299 = vmatpush2.xpose.msra.mxu0 0.0
      %300 = vmatprep.subr.mxu0 0.0
      %301 = vmatpush2.xpose.msra.mxu0 0.0
      %302 = vmatprep.subr.mxu0 0.0
      %303 = vmatpush2.xpose.msra.mxu0 0.0
      %304 = vmatprep.subr.mxu0 0.0
      %305 = vmatpush2.xpose.msra.mxu0 0.0
      %306 = vmatprep.subr.mxu0 0.0
      %307 = vmatpush2.xpose.msra.mxu0 0.0
      %308 = vmatprep.subr.mxu0 0.0
      %309 = vmatpush2.xpose.msra.mxu0 0.0
      %310 = vmatprep.subr.mxu0 0.0
      %311 = vmatpush2.xpose.msra.mxu0 0.0
      %312 = vmatprep.subr.mxu0 0.0
      %313 = vmatpush2.xpose.msra.mxu0 0.0
      %314 = vmatprep.subr.mxu0 0.0
      %315 = vmatpush2.xpose.msra.mxu0 0.0
      %316 = vmatprep.subr.mxu0 0.0
      %317 = vmatpush2.xpose.msra.mxu0 0.0
      %318 = vmatprep.subr.mxu0 0.0
      %319 = vmatpush2.xpose.msra.mxu0 0.0
      %320 = vmatprep.subr.mxu0 0.0
      %321 = vmatpush2.xpose.msra.mxu0 0.0
      %322 = vmatprep.subr.mxu0 0.0
      %323 = vmatpush2.xpose.msra.mxu0 0.0
      %324 = vmatprep.subr.mxu0 0.0
      %325 = vmatpush2.xpose.msra.mxu0 0.0
      %326 = vmatprep.mubr.f32.mxu0 0.0
      %327 = vmatmul.mubr.f32.gmra.mxu0 %v258
      %v328 = vpop.f32.mrf.mxu0
      %v329 = vadd.f32 0.0, %v328
      %v330 = vpop.f32.mrf.mxu0
      %331 = vdwg.mxu0
      %v332 = vmul.f32 %v329, 0.35355338
      %v333 = vsel %vm257, %v332, -inf
      %334 = vmax.xlane.f32.xlu0 %v333
      %v335 = vpop.xlane.xlu0 %334
      %v336 = vsub.f32 %v332, %v335
      %v337 = vmul.f32 %v336, 1.442695
      %v338 = vpow.pop %v337
      %v339 = vsel %vm257, %v338, 0.0
      %340 = vadd.xlane.f32.xlu0 %v339
      %v341 = vpop.xlane.xlu0 %340
      %v342 = vrcp.pop %v341
      %v343 = vmul.f32 %v338, %v342
      %344 = vrot.lane.b32.xlu0 %v251, 112
      %v345 = vpop.permute.xlu0 %344
      %v348 = vsel %vm257, %v343, 0
      %350 = vmatprep.subr.mxu0 0.0
      %351 = vmatpush1.msra.mxu0 0.0
      %352 = vmatprep.subr.mxu0 0.0
      %353 = vmatpush1.msra.mxu0 0.0
      %354 = vmatprep.subr.mxu0 0.0
      %355 = vmatpush1.msra.mxu0 0.0
      %356 = vmatprep.subr.mxu0 0.0
      %357 = vmatpush1.msra.mxu0 0.0
      %358 = vmatprep.subr.mxu0 0.0
      %359 = vmatpush1.msra.mxu0 0.0
      %360 = vmatprep.subr.mxu0 0.0
      %361 = vmatpush1.msra.mxu0 0.0
      %362 = vmatprep.subr.mxu0 0.0
      %363 = vmatpush1.msra.mxu0 0.0
      %364 = vmatprep.subr.mxu0 0.0
      %365 = vmatpush1.msra.mxu0 0.0
      %366 = vmatprep.subr.mxu0 0.0
      %367 = vmatpush1.msra.mxu0 0.0
      %368 = vmatprep.subr.mxu0 0.0
      %369 = vmatpush1.msra.mxu0 0.0
      %370 = vmatprep.subr.mxu0 0.0
      %371 = vmatpush1.msra.mxu0 0.0
      %372 = vmatprep.subr.mxu0 0.0
      %373 = vmatpush1.msra.mxu0 0.0
      %374 = vmatprep.subr.mxu0 0.0
      %375 = vmatpush1.msra.mxu0 0.0
      %376 = vmatprep.subr.mxu0 0.0
      %377 = vmatpush1.msra.mxu0 0.0
      %378 = vmatprep.subr.mxu0 0.0
      %379 = vmatpush1.msra.mxu0 0.0
      %380 = vmatprep.subr.mxu0 0.0
      %381 = vmatpush1.msra.mxu0 %v345
      %382 = vmatprep.subr.mxu0 0.0
      %383 = vmatpush2.msra.mxu0 0.0
      %384 = vmatprep.subr.mxu0 0.0
      %385 = vmatpush2.msra.mxu0 0.0
      %386 = vmatprep.subr.mxu0 0.0
      %387 = vmatpush2.msra.mxu0 0.0
      %388 = vmatprep.subr.mxu0 0.0
      %389 = vmatpush2.msra.mxu0 0.0
      %390 = vmatprep.subr.mxu0 0.0
      %391 = vmatpush2.msra.mxu0 0.0
      %392 = vmatprep.subr.mxu0 0.0
      %393 = vmatpush2.msra.mxu0 0.0
      %394 = vmatprep.subr.mxu0 0.0
      %395 = vmatpush2.msra.mxu0 0.0
      %396 = vmatprep.subr.mxu0 0.0
      %397 = vmatpush2.msra.mxu0 0.0
      %398 = vmatprep.subr.mxu0 0.0
      %399 = vmatpush2.msra.mxu0 0.0
      %400 = vmatprep.subr.mxu0 0.0
      %401 = vmatpush2.msra.mxu0 0.0
      %402 = vmatprep.subr.mxu0 0.0
      %403 = vmatpush2.msra.mxu0 0.0
      %404 = vmatprep.subr.mxu0 0.0
      %405 = vmatpush2.msra.mxu0 0.0
      %406 = vmatprep.subr.mxu0 0.0
      %407 = vmatpush2.msra.mxu0 0.0
      %408 = vmatprep.subr.mxu0 0.0
      %409 = vmatpush2.msra.mxu0 0.0
      %410 = vmatprep.subr.mxu0 0.0
      %411 = vmatpush2.msra.mxu0 0.0
      %412 = vmatprep.subr.mxu0 0.0
      %413 = vmatpush2.msra.mxu0 0.0
      %414 = vmatprep.mubr.f32.mxu0 0.0
      %415 = vmatmul.mubr.f32.gmra.mxu0 %v348
      %v416 = vpop.f32.mrf.mxu0
      %v417 = vadd.f32 0.0, %v416
      %v418 = vpop.f32.mrf.mxu0
      %419 = vdwg.mxu0
      %420 = vst.msk [vmem:[%s167] sm:$0xff] %vm257, %v417
      %421 = vrot.lane.b32.xlu0 %v251, 104
      %v422 = vpop.permute.xlu0 %421
      %423 = vrot.lane.b32.xlu0 %v251, 96
      %v424 = vpop.permute.xlu0 %423
      %v425 = vsel %vm257, %v422, 0
      %v427 = vsel %vm257, %v424, 0
      %429 = vmatprep.subr.mxu0 0.0
      %430 = vmatpush1.xpose.msra.mxu0 0.0
      %431 = vmatprep.subr.mxu0 0.0
      %432 = vmatpush1.xpose.msra.mxu0 0.0
      %433 = vmatprep.subr.mxu0 0.0
      %434 = vmatpush1.xpose.msra.mxu0 0.0
      %435 = vmatprep.subr.mxu0 0.0
      %436 = vmatpush1.xpose.msra.mxu0 0.0
      %437 = vmatprep.subr.mxu0 0.0
      %438 = vmatpush1.xpose.msra.mxu0 0.0
      %439 = vmatprep.subr.mxu0 0.0
      %440 = vmatpush1.xpose.msra.mxu0 0.0
      %441 = vmatprep.subr.mxu0 0.0
      %442 = vmatpush1.xpose.msra.mxu0 0.0
      %443 = vmatprep.subr.mxu0 0.0
      %444 = vmatpush1.xpose.msra.mxu0 0.0
      %445 = vmatprep.subr.mxu0 0.0
      %446 = vmatpush1.xpose.msra.mxu0 0.0
      %447 = vmatprep.subr.mxu0 0.0
      %448 = vmatpush1.xpose.msra.mxu0 0.0
      %449 = vmatprep.subr.mxu0 0.0
      %450 = vmatpush1.xpose.msra.mxu0 0.0
      %451 = vmatprep.subr.mxu0 0.0
      %452 = vmatpush1.xpose.msra.mxu0 0.0
      %453 = vmatprep.subr.mxu0 0.0
      %454 = vmatpush1.xpose.msra.mxu0 0.0
      %455 = vmatprep.subr.mxu0 0.0
      %456 = vmatpush1.xpose.msra.mxu0 0.0
      %457 = vmatprep.subr.mxu0 0.0
      %458 = vmatpush1.xpose.msra.mxu0 0.0
      %459 = vmatprep.subr.mxu0 0.0
      %460 = vmatpush1.xpose.msra.mxu0 %v427
      %461 = vmatprep.subr.mxu0 0.0
      %462 = vmatpush2.xpose.msra.mxu0 0.0
      %463 = vmatprep.subr.mxu0 0.0
      %464 = vmatpush2.xpose.msra.mxu0 0.0
      %465 = vmatprep.subr.mxu0 0.0
      %466 = vmatpush2.xpose.msra.mxu0 0.0
      %467 = vmatprep.subr.mxu0 0.0
      %468 = vmatpush2.xpose.msra.mxu0 0.0
      %469 = vmatprep.subr.mxu0 0.0
      %470 = vmatpush2.xpose.msra.mxu0 0.0
      %471 = vmatprep.subr.mxu0 0.0
      %472 = vmatpush2.xpose.msra.mxu0 0.0
      %473 = vmatprep.subr.mxu0 0.0
      %474 = vmatpush2.xpose.msra.mxu0 0.0
      %475 = vmatprep.subr.mxu0 0.0
      %476 = vmatpush2.xpose.msra.mxu0 0.0
      %477 = vmatprep.subr.mxu0 0.0
      %478 = vmatpush2.xpose.msra.mxu0 0.0
      %479 = vmatprep.subr.mxu0 0.0
      %480 = vmatpush2.xpose.msra.mxu0 0.0
      %481 = vmatprep.subr.mxu0 0.0
      %482 = vmatpush2.xpose.msra.mxu0 0.0
      %483 = vmatprep.subr.mxu0 0.0
      %484 = vmatpush2.xpose.msra.mxu0 0.0
      %485 = vmatprep.subr.mxu0 0.0
      %486 = vmatpush2.xpose.msra.mxu0 0.0
      %487 = vmatprep.subr.mxu0 0.0
      %488 = vmatpush2.xpose.msra.mxu0 0.0
      %489 = vmatprep.subr.mxu0 0.0
      %490 = vmatpush2.xpose.msra.mxu0 0.0
      %491 = vmatprep.subr.mxu0 0.0
      %492 = vmatpush2.xpose.msra.mxu0 0.0
      %493 = vmatprep.mubr.f32.mxu0 0.0
      %494 = vmatmul.mubr.f32.gmra.mxu0 %v425
      %v495 = vpop.f32.mrf.mxu0
      %v496 = vadd.f32 0.0, %v495
      %v497 = vpop.f32.mrf.mxu0
      %498 = vdwg.mxu0
      %v499 = vmul.f32 %v496, 0.35355338
      %v500 = vsel %vm257, %v499, -inf
      %501 = vmax.xlane.f32.xlu0 %v500
      %v502 = vpop.xlane.xlu0 %501
      %v503 = vsub.f32 %v499, %v502
      %v504 = vmul.f32 %v503, 1.442695
      %v505 = vpow.pop %v504
      %v506 = vsel %vm257, %v505, 0.0
      %507 = vadd.xlane.f32.xlu0 %v506
      %v508 = vpop.xlane.xlu0 %507
      %v509 = vrcp.pop %v508
      %v510 = vmul.f32 %v505, %v509
      %511 = vrot.lane.b32.xlu0 %v251, 88
      %v512 = vpop.permute.xlu0 %511
      %v515 = vsel %vm257, %v510, 0
      %517 = vmatprep.subr.mxu0 0.0
      %518 = vmatpush1.msra.mxu0 0.0
      %519 = vmatprep.subr.mxu0 0.0
      %520 = vmatpush1.msra.mxu0 0.0
      %521 = vmatprep.subr.mxu0 0.0
      %522 = vmatpush1.msra.mxu0 0.0
      %523 = vmatprep.subr.mxu0 0.0
      %524 = vmatpush1.msra.mxu0 0.0
      %525 = vmatprep.subr.mxu0 0.0
      %526 = vmatpush1.msra.mxu0 0.0
      %527 = vmatprep.subr.mxu0 0.0
      %528 = vmatpush1.msra.mxu0 0.0
      %529 = vmatprep.subr.mxu0 0.0
      %530 = vmatpush1.msra.mxu0 0.0
      %531 = vmatprep.subr.mxu0 0.0
      %532 = vmatpush1.msra.mxu0 0.0
      %533 = vmatprep.subr.mxu0 0.0
      %534 = vmatpush1.msra.mxu0 0.0
      %535 = vmatprep.subr.mxu0 0.0
      %536 = vmatpush1.msra.mxu0 0.0
      %537 = vmatprep.subr.mxu0 0.0
      %538 = vmatpush1.msra.mxu0 0.0
      %539 = vmatprep.subr.mxu0 0.0
      %540 = vmatpush1.msra.mxu0 0.0
      %541 = vmatprep.subr.mxu0 0.0
      %542 = vmatpush1.msra.mxu0 0.0
      %543 = vmatprep.subr.mxu0 0.0
      %544 = vmatpush1.msra.mxu0 0.0
      %545 = vmatprep.subr.mxu0 0.0
      %546 = vmatpush1.msra.mxu0 0.0
      %547 = vmatprep.subr.mxu0 0.0
      %548 = vmatpush1.msra.mxu0 %v512
      %549 = vmatprep.subr.mxu0 0.0
      %550 = vmatpush2.msra.mxu0 0.0
      %551 = vmatprep.subr.mxu0 0.0
      %552 = vmatpush2.msra.mxu0 0.0
      %553 = vmatprep.subr.mxu0 0.0
      %554 = vmatpush2.msra.mxu0 0.0
      %555 = vmatprep.subr.mxu0 0.0
      %556 = vmatpush2.msra.mxu0 0.0
      %557 = vmatprep.subr.mxu0 0.0
      %558 = vmatpush2.msra.mxu0 0.0
      %559 = vmatprep.subr.mxu0 0.0
      %560 = vmatpush2.msra.mxu0 0.0
      %561 = vmatprep.subr.mxu0 0.0
      %562 = vmatpush2.msra.mxu0 0.0
      %563 = vmatprep.subr.mxu0 0.0
      %564 = vmatpush2.msra.mxu0 0.0
      %565 = vmatprep.subr.mxu0 0.0
      %566 = vmatpush2.msra.mxu0 0.0
      %567 = vmatprep.subr.mxu0 0.0
      %568 = vmatpush2.msra.mxu0 0.0
      %569 = vmatprep.subr.mxu0 0.0
      %570 = vmatpush2.msra.mxu0 0.0
      %571 = vmatprep.subr.mxu0 0.0
      %572 = vmatpush2.msra.mxu0 0.0
      %573 = vmatprep.subr.mxu0 0.0
      %574 = vmatpush2.msra.mxu0 0.0
      %575 = vmatprep.subr.mxu0 0.0
      %576 = vmatpush2.msra.mxu0 0.0
      %577 = vmatprep.subr.mxu0 0.0
      %578 = vmatpush2.msra.mxu0 0.0
      %579 = vmatprep.subr.mxu0 0.0
      %580 = vmatpush2.msra.mxu0 0.0
      %581 = vmatprep.mubr.f32.mxu0 0.0
      %582 = vmatmul.mubr.f32.gmra.mxu0 %v515
      %v583 = vpop.f32.mrf.mxu0
      %v584 = vadd.f32 0.0, %v583
      %v585 = vpop.f32.mrf.mxu0
      %586 = vdwg.mxu0
      %s587 = scalar_lea.vmem %s167, 8
      %588 = vst.msk [vmem:[%s587] sm:$0xff] %vm257, %v584
      %589 = vrot.lane.b32.xlu0 %v251, 80
      %v590 = vpop.permute.xlu0 %589
      %591 = vrot.lane.b32.xlu0 %v251, 72
      %v592 = vpop.permute.xlu0 %591
      %v593 = vsel %vm257, %v590, 0
      %v595 = vsel %vm257, %v592, 0
      %597 = vmatprep.subr.mxu0 0.0
      %598 = vmatpush1.xpose.msra.mxu0 0.0
      %599 = vmatprep.subr.mxu0 0.0
      %600 = vmatpush1.xpose.msra.mxu0 0.0
      %601 = vmatprep.subr.mxu0 0.0
      %602 = vmatpush1.xpose.msra.mxu0 0.0
      %603 = vmatprep.subr.mxu0 0.0
      %604 = vmatpush1.xpose.msra.mxu0 0.0
      %605 = vmatprep.subr.mxu0 0.0
      %606 = vmatpush1.xpose.msra.mxu0 0.0
      %607 = vmatprep.subr.mxu0 0.0
      %608 = vmatpush1.xpose.msra.mxu0 0.0
      %609 = vmatprep.subr.mxu0 0.0
      %610 = vmatpush1.xpose.msra.mxu0 0.0
      %611 = vmatprep.subr.mxu0 0.0
      %612 = vmatpush1.xpose.msra.mxu0 0.0
      %613 = vmatprep.subr.mxu0 0.0
      %614 = vmatpush1.xpose.msra.mxu0 0.0
      %615 = vmatprep.subr.mxu0 0.0
      %616 = vmatpush1.xpose.msra.mxu0 0.0
      %617 = vmatprep.subr.mxu0 0.0
      %618 = vmatpush1.xpose.msra.mxu0 0.0
      %619 = vmatprep.subr.mxu0 0.0
      %620 = vmatpush1.xpose.msra.mxu0 0.0
      %621 = vmatprep.subr.mxu0 0.0
      %622 = vmatpush1.xpose.msra.mxu0 0.0
      %623 = vmatprep.subr.mxu0 0.0
      %624 = vmatpush1.xpose.msra.mxu0 0.0
      %625 = vmatprep.subr.mxu0 0.0
      %626 = vmatpush1.xpose.msra.mxu0 0.0
      %627 = vmatprep.subr.mxu0 0.0
      %628 = vmatpush1.xpose.msra.mxu0 %v595
      %629 = vmatprep.subr.mxu0 0.0
      %630 = vmatpush2.xpose.msra.mxu0 0.0
      %631 = vmatprep.subr.mxu0 0.0
      %632 = vmatpush2.xpose.msra.mxu0 0.0
      %633 = vmatprep.subr.mxu0 0.0
      %634 = vmatpush2.xpose.msra.mxu0 0.0
      %635 = vmatprep.subr.mxu0 0.0
      %636 = vmatpush2.xpose.msra.mxu0 0.0
      %637 = vmatprep.subr.mxu0 0.0
      %638 = vmatpush2.xpose.msra.mxu0 0.0
      %639 = vmatprep.subr.mxu0 0.0
      %640 = vmatpush2.xpose.msra.mxu0 0.0
      %641 = vmatprep.subr.mxu0 0.0
      %642 = vmatpush2.xpose.msra.mxu0 0.0
      %643 = vmatprep.subr.mxu0 0.0
      %644 = vmatpush2.xpose.msra.mxu0 0.0
      %645 = vmatprep.subr.mxu0 0.0
      %646 = vmatpush2.xpose.msra.mxu0 0.0
      %647 = vmatprep.subr.mxu0 0.0
      %648 = vmatpush2.xpose.msra.mxu0 0.0
      %649 = vmatprep.subr.mxu0 0.0
      %650 = vmatpush2.xpose.msra.mxu0 0.0
      %651 = vmatprep.subr.mxu0 0.0
      %652 = vmatpush2.xpose.msra.mxu0 0.0
      %653 = vmatprep.subr.mxu0 0.0
      %654 = vmatpush2.xpose.msra.mxu0 0.0
      %655 = vmatprep.subr.mxu0 0.0
      %656 = vmatpush2.xpose.msra.mxu0 0.0
      %657 = vmatprep.subr.mxu0 0.0
      %658 = vmatpush2.xpose.msra.mxu0 0.0
      %659 = vmatprep.subr.mxu0 0.0
      %660 = vmatpush2.xpose.msra.mxu0 0.0
      %661 = vmatprep.mubr.f32.mxu0 0.0
      %662 = vmatmul.mubr.f32.gmra.mxu0 %v593
      %v663 = vpop.f32.mrf.mxu0
      %v664 = vadd.f32 0.0, %v663
      %v665 = vpop.f32.mrf.mxu0
      %666 = vdwg.mxu0
      %v667 = vmul.f32 %v664, 0.35355338
      %v668 = vsel %vm257, %v667, -inf
      %669 = vmax.xlane.f32.xlu0 %v668
      %v670 = vpop.xlane.xlu0 %669
      %v671 = vsub.f32 %v667, %v670
      %v672 = vmul.f32 %v671, 1.442695
      %v673 = vpow.pop %v672
      %v674 = vsel %vm257, %v673, 0.0
      %675 = vadd.xlane.f32.xlu0 %v674
      %v676 = vpop.xlane.xlu0 %675
      %v677 = vrcp.pop %v676
      %v678 = vmul.f32 %v673, %v677
      %679 = vrot.lane.b32.xlu0 %v251, 64
      %v680 = vpop.permute.xlu0 %679
      %v683 = vsel %vm257, %v678, 0
      %685 = vmatprep.subr.mxu0 0.0
      %686 = vmatpush1.msra.mxu0 0.0
      %687 = vmatprep.subr.mxu0 0.0
      %688 = vmatpush1.msra.mxu0 0.0
      %689 = vmatprep.subr.mxu0 0.0
      %690 = vmatpush1.msra.mxu0 0.0
      %691 = vmatprep.subr.mxu0 0.0
      %692 = vmatpush1.msra.mxu0 0.0
      %693 = vmatprep.subr.mxu0 0.0
      %694 = vmatpush1.msra.mxu0 0.0
      %695 = vmatprep.subr.mxu0 0.0
      %696 = vmatpush1.msra.mxu0 0.0
      %697 = vmatprep.subr.mxu0 0.0
      %698 = vmatpush1.msra.mxu0 0.0
      %699 = vmatprep.subr.mxu0 0.0
      %700 = vmatpush1.msra.mxu0 0.0
      %701 = vmatprep.subr.mxu0 0.0
      %702 = vmatpush1.msra.mxu0 0.0
      %703 = vmatprep.subr.mxu0 0.0
      %704 = vmatpush1.msra.mxu0 0.0
      %705 = vmatprep.subr.mxu0 0.0
      %706 = vmatpush1.msra.mxu0 0.0
      %707 = vmatprep.subr.mxu0 0.0
      %708 = vmatpush1.msra.mxu0 0.0
      %709 = vmatprep.subr.mxu0 0.0
      %710 = vmatpush1.msra.mxu0 0.0
      %711 = vmatprep.subr.mxu0 0.0
      %712 = vmatpush1.msra.mxu0 0.0
      %713 = vmatprep.subr.mxu0 0.0
      %714 = vmatpush1.msra.mxu0 0.0
      %715 = vmatprep.subr.mxu0 0.0
      %716 = vmatpush1.msra.mxu0 %v680
      %717 = vmatprep.subr.mxu0 0.0
      %718 = vmatpush2.msra.mxu0 0.0
      %719 = vmatprep.subr.mxu0 0.0
      %720 = vmatpush2.msra.mxu0 0.0
      %721 = vmatprep.subr.mxu0 0.0
      %722 = vmatpush2.msra.mxu0 0.0
      %723 = vmatprep.subr.mxu0 0.0
      %724 = vmatpush2.msra.mxu0 0.0
      %725 = vmatprep.subr.mxu0 0.0
      %726 = vmatpush2.msra.mxu0 0.0
      %727 = vmatprep.subr.mxu0 0.0
      %728 = vmatpush2.msra.mxu0 0.0
      %729 = vmatprep.subr.mxu0 0.0
      %730 = vmatpush2.msra.mxu0 0.0
      %731 = vmatprep.subr.mxu0 0.0
      %732 = vmatpush2.msra.mxu0 0.0
      %733 = vmatprep.subr.mxu0 0.0
      %734 = vmatpush2.msra.mxu0 0.0
      %735 = vmatprep.subr.mxu0 0.0
      %736 = vmatpush2.msra.mxu0 0.0
      %737 = vmatprep.subr.mxu0 0.0
      %738 = vmatpush2.msra.mxu0 0.0
      %739 = vmatprep.subr.mxu0 0.0
      %740 = vmatpush2.msra.mxu0 0.0
      %741 = vmatprep.subr.mxu0 0.0
      %742 = vmatpush2.msra.mxu0 0.0
      %743 = vmatprep.subr.mxu0 0.0
      %744 = vmatpush2.msra.mxu0 0.0
      %745 = vmatprep.subr.mxu0 0.0
      %746 = vmatpush2.msra.mxu0 0.0
      %747 = vmatprep.subr.mxu0 0.0
      %748 = vmatpush2.msra.mxu0 0.0
      %749 = vmatprep.mubr.f32.mxu0 0.0
      %750 = vmatmul.mubr.f32.gmra.mxu0 %v683
      %v751 = vpop.f32.mrf.mxu0
      %v752 = vadd.f32 0.0, %v751
      %v753 = vpop.f32.mrf.mxu0
      %754 = vdwg.mxu0
      %s755 = scalar_lea.vmem %s167, 16
      %756 = vst.msk [vmem:[%s755] sm:$0xff] %vm257, %v752
      %757 = vrot.lane.b32.xlu0 %v251, 56
      %v758 = vpop.permute.xlu0 %757
      %759 = vrot.lane.b32.xlu0 %v251, 48
      %v760 = vpop.permute.xlu0 %759
      %v761 = vsel %vm257, %v758, 0
      %v763 = vsel %vm257, %v760, 0
      %765 = vmatprep.subr.mxu0 0.0
      %766 = vmatpush1.xpose.msra.mxu0 0.0
      %767 = vmatprep.subr.mxu0 0.0
      %768 = vmatpush1.xpose.msra.mxu0 0.0
      %769 = vmatprep.subr.mxu0 0.0
      %770 = vmatpush1.xpose.msra.mxu0 0.0
      %771 = vmatprep.subr.mxu0 0.0
      %772 = vmatpush1.xpose.msra.mxu0 0.0
      %773 = vmatprep.subr.mxu0 0.0
      %774 = vmatpush1.xpose.msra.mxu0 0.0
      %775 = vmatprep.subr.mxu0 0.0
      %776 = vmatpush1.xpose.msra.mxu0 0.0
      %777 = vmatprep.subr.mxu0 0.0
      %778 = vmatpush1.xpose.msra.mxu0 0.0
      %779 = vmatprep.subr.mxu0 0.0
      %780 = vmatpush1.xpose.msra.mxu0 0.0
      %781 = vmatprep.subr.mxu0 0.0
      %782 = vmatpush1.xpose.msra.mxu0 0.0
      %783 = vmatprep.subr.mxu0 0.0
      %784 = vmatpush1.xpose.msra.mxu0 0.0
      %785 = vmatprep.subr.mxu0 0.0
      %786 = vmatpush1.xpose.msra.mxu0 0.0
      %787 = vmatprep.subr.mxu0 0.0
      %788 = vmatpush1.xpose.msra.mxu0 0.0
      %789 = vmatprep.subr.mxu0 0.0
      %790 = vmatpush1.xpose.msra.mxu0 0.0
      %791 = vmatprep.subr.mxu0 0.0
      %792 = vmatpush1.xpose.msra.mxu0 0.0
      %793 = vmatprep.subr.mxu0 0.0
      %794 = vmatpush1.xpose.msra.mxu0 0.0
      %795 = vmatprep.subr.mxu0 0.0
      %796 = vmatpush1.xpose.msra.mxu0 %v763
      %797 = vmatprep.subr.mxu0 0.0
      %798 = vmatpush2.xpose.msra.mxu0 0.0
      %799 = vmatprep.subr.mxu0 0.0
      %800 = vmatpush2.xpose.msra.mxu0 0.0
      %801 = vmatprep.subr.mxu0 0.0
      %802 = vmatpush2.xpose.msra.mxu0 0.0
      %803 = vmatprep.subr.mxu0 0.0
      %804 = vmatpush2.xpose.msra.mxu0 0.0
      %805 = vmatprep.subr.mxu0 0.0
      %806 = vmatpush2.xpose.msra.mxu0 0.0
      %807 = vmatprep.subr.mxu0 0.0
      %808 = vmatpush2.xpose.msra.mxu0 0.0
      %809 = vmatprep.subr.mxu0 0.0
      %810 = vmatpush2.xpose.msra.mxu0 0.0
      %811 = vmatprep.subr.mxu0 0.0
      %812 = vmatpush2.xpose.msra.mxu0 0.0
      %813 = vmatprep.subr.mxu0 0.0
      %814 = vmatpush2.xpose.msra.mxu0 0.0
      %815 = vmatprep.subr.mxu0 0.0
      %816 = vmatpush2.xpose.msra.mxu0 0.0
      %817 = vmatprep.subr.mxu0 0.0
      %818 = vmatpush2.xpose.msra.mxu0 0.0
      %819 = vmatprep.subr.mxu0 0.0
      %820 = vmatpush2.xpose.msra.mxu0 0.0
      %821 = vmatprep.subr.mxu0 0.0
      %822 = vmatpush2.xpose.msra.mxu0 0.0
      %823 = vmatprep.subr.mxu0 0.0
      %824 = vmatpush2.xpose.msra.mxu0 0.0
      %825 = vmatprep.subr.mxu0 0.0
      %826 = vmatpush2.xpose.msra.mxu0 0.0
      %827 = vmatprep.subr.mxu0 0.0
      %828 = vmatpush2.xpose.msra.mxu0 0.0
      %829 = vmatprep.mubr.f32.mxu0 0.0
      %830 = vmatmul.mubr.f32.gmra.mxu0 %v761
      %v831 = vpop.f32.mrf.mxu0
      %v832 = vadd.f32 0.0, %v831
      %v833 = vpop.f32.mrf.mxu0
      %834 = vdwg.mxu0
      %v835 = vmul.f32 %v832, 0.35355338
      %v836 = vsel %vm257, %v835, -inf
      %837 = vmax.xlane.f32.xlu0 %v836
      %v838 = vpop.xlane.xlu0 %837
      %v839 = vsub.f32 %v835, %v838
      %v840 = vmul.f32 %v839, 1.442695
      %v841 = vpow.pop %v840
      %v842 = vsel %vm257, %v841, 0.0
      %843 = vadd.xlane.f32.xlu0 %v842
      %v844 = vpop.xlane.xlu0 %843
      %v845 = vrcp.pop %v844
      %v846 = vmul.f32 %v841, %v845
      %847 = vrot.lane.b32.xlu0 %v251, 40
      %v848 = vpop.permute.xlu0 %847
      %v851 = vsel %vm257, %v846, 0
      %853 = vmatprep.subr.mxu0 0.0
      %854 = vmatpush1.msra.mxu0 0.0
      %855 = vmatprep.subr.mxu0 0.0
      %856 = vmatpush1.msra.mxu0 0.0
      %857 = vmatprep.subr.mxu0 0.0
      %858 = vmatpush1.msra.mxu0 0.0
      %859 = vmatprep.subr.mxu0 0.0
      %860 = vmatpush1.msra.mxu0 0.0
      %861 = vmatprep.subr.mxu0 0.0
      %862 = vmatpush1.msra.mxu0 0.0
      %863 = vmatprep.subr.mxu0 0.0
      %864 = vmatpush1.msra.mxu0 0.0
      %865 = vmatprep.subr.mxu0 0.0
      %866 = vmatpush1.msra.mxu0 0.0
      %867 = vmatprep.subr.mxu0 0.0
      %868 = vmatpush1.msra.mxu0 0.0
      %869 = vmatprep.subr.mxu0 0.0
      %870 = vmatpush1.msra.mxu0 0.0
      %871 = vmatprep.subr.mxu0 0.0
      %872 = vmatpush1.msra.mxu0 0.0
      %873 = vmatprep.subr.mxu0 0.0
      %874 = vmatpush1.msra.mxu0 0.0
      %875 = vmatprep.subr.mxu0 0.0
      %876 = vmatpush1.msra.mxu0 0.0
      %877 = vmatprep.subr.mxu0 0.0
      %878 = vmatpush1.msra.mxu0 0.0
      %879 = vmatprep.subr.mxu0 0.0
      %880 = vmatpush1.msra.mxu0 0.0
      %881 = vmatprep.subr.mxu0 0.0
      %882 = vmatpush1.msra.mxu0 0.0
      %883 = vmatprep.subr.mxu0 0.0
      %884 = vmatpush1.msra.mxu0 %v848
      %885 = vmatprep.subr.mxu0 0.0
      %886 = vmatpush2.msra.mxu0 0.0
      %887 = vmatprep.subr.mxu0 0.0
      %888 = vmatpush2.msra.mxu0 0.0
      %889 = vmatprep.subr.mxu0 0.0
      %890 = vmatpush2.msra.mxu0 0.0
      %891 = vmatprep.subr.mxu0 0.0
      %892 = vmatpush2.msra.mxu0 0.0
      %893 = vmatprep.subr.mxu0 0.0
      %894 = vmatpush2.msra.mxu0 0.0
      %895 = vmatprep.subr.mxu0 0.0
      %896 = vmatpush2.msra.mxu0 0.0
      %897 = vmatprep.subr.mxu0 0.0
      %898 = vmatpush2.msra.mxu0 0.0
      %899 = vmatprep.subr.mxu0 0.0
      %900 = vmatpush2.msra.mxu0 0.0
      %901 = vmatprep.subr.mxu0 0.0
      %902 = vmatpush2.msra.mxu0 0.0
      %903 = vmatprep.subr.mxu0 0.0
      %904 = vmatpush2.msra.mxu0 0.0
      %905 = vmatprep.subr.mxu0 0.0
      %906 = vmatpush2.msra.mxu0 0.0
      %907 = vmatprep.subr.mxu0 0.0
      %908 = vmatpush2.msra.mxu0 0.0
      %909 = vmatprep.subr.mxu0 0.0
      %910 = vmatpush2.msra.mxu0 0.0
      %911 = vmatprep.subr.mxu0 0.0
      %912 = vmatpush2.msra.mxu0 0.0
      %913 = vmatprep.subr.mxu0 0.0
      %914 = vmatpush2.msra.mxu0 0.0
      %915 = vmatprep.subr.mxu0 0.0
      %916 = vmatpush2.msra.mxu0 0.0
      %917 = vmatprep.mubr.f32.mxu0 0.0
      %918 = vmatmul.mubr.f32.gmra.mxu0 %v851
      %v919 = vpop.f32.mrf.mxu0
      %v920 = vadd.f32 0.0, %v919
      %v921 = vpop.f32.mrf.mxu0
      %922 = vdwg.mxu0
      %s923 = scalar_lea.vmem %s167, 24
      %924 = vst.msk [vmem:[%s923] sm:$0xff] %vm257, %v920
      %p925 = scmp.lt.s32.totalorder %s14, 1
      %s926 = scalar_select %p925, %s14, 1
      %s927 = smul.addr %s926, 4
      %s928 = smul.addr %s927, 8
      %s929 = scalar_lea.vmem %s3, %s928
      // Predicated region
      $region33: #{decoder_forward.15} parent=31 // pred_check
        %p930 = pneg %p100
      $region34: #{decoder_forward.15} parent=31 // pred_check_branch
        %932 = sbr.rel (%p930) target = $region36
      $region35: #{decoder_forward.15} parent=31 // pred_region
        _
      $region36: #{decoder_forward.15} parent=31 // pred_fallthru
        _
    $region32: #{decoder_forward.15} parent=5 // pred_fallthru
      _
    %p933 = scmp.le.s32.totalorder 2, %s9
    // Predicated region
    $region37: #{decoder_forward.15} parent=5 // pred_check
      %p934 = pneg %p933
    $region38: #{decoder_forward.15} parent=5 // pred_check_branch
      %936 = sbr.rel (%p934) target = $region40
    $region39: #{decoder_forward.15} parent=5 // pred_region
      %s937 = ssub.s32 %s9, 2
      // Predicated region
      $region41: #{decoder_forward.15} parent=39 // pred_check
        %p938 = pneg %p106
      $region42: #{decoder_forward.15} parent=39 // pred_check_branch
        %940 = sbr.rel (%p938) target = $region44
      $region43: #{decoder_forward.15} parent=39 // pred_region
        %p941 = scmp.lt.s32.totalorder %s15, 1
        %s942 = scalar_select %p941, %s15, 1
        %s943 = smul.addr %s942, 4
        %s944 = smul.addr %s943, 8
        %s945 = scalar_lea.vmem %s3, %s944
      $region44: #{decoder_forward.15} parent=39 // pred_fallthru
        _
    $region40: #{decoder_forward.15} parent=5 // pred_fallthru
      _
  $region6: #{decoder_forward.15} parent=0 // loop_footer
    %s13 = sadd.s32 1, %s9
  $region7: #{decoder_forward.15} parent=0 // loop_footer_branch
    %8 = sbr.rel target = $region3
  $region8: #{decoder_forward.15} parent=0 // loop_exit
    _

// kernel: decoder_forward.19
$region0: #{decoder_forward.19}
  #allocation0 [shape = 'u32[]', space=smem, size = 0x4, offset = 0x4, fixed_abs, tag = 'smem constant byte address 0x4 - core index']
  #allocation1 [shape = 'u32[144,128]{1,0:T(1,128)}', space=vmem, size = 0x12000, scoped, tag = 'internal scratch']
  #allocation2 [shape = 'f32[16,64]{1,0:T(8,128)}', space=vmem, size = 0x2000, scoped, tag = 'scratch operand']
  %s0 = inlined_call_operand.vmem [shape: f32[16,32], index: 0, kind: input, shape index: {}]
  %s1 = inlined_call_operand.vmem [shape: f32[32,64], index: 1, kind: input, shape index: {}]
  %s2 = inlined_call_operand.vmem [shape: f32[1,64], index: 2, kind: input, shape index: {}]
  %s3 = inlined_call_operand.vmem [shape: f32[16,64], index: 3, kind: output, shape index: {}]
  %s4 = sld [smem:[#allocation0]]
  $region30: #{decoder_forward.19} parent=0
    _
  %s6 = ssub.s32 1, %s4
  %s7 = scalar_select 0, %s6, %s4
  // Predicated region
  $region2: #{decoder_forward.19} parent=0 // pred_check
    _
  $region3: #{decoder_forward.19} parent=0 // pred_check_branch
    %9 = sbr.rel (0) target = $region5
  $region4: #{decoder_forward.19} parent=0 // pred_region
    _
  $region5: #{decoder_forward.19} parent=0 // pred_fallthru
    _
  // Predicated region
  $region6: #{decoder_forward.19} parent=0 // pred_check
    _
  $region7: #{decoder_forward.19} parent=0 // pred_check_branch
    %11 = sbr.rel (0) target = $region9
  $region8: #{decoder_forward.19} parent=0 // pred_region
    _
  $region9: #{decoder_forward.19} parent=0 // pred_fallthru
    _
  // Predicated region
  $region10: #{decoder_forward.19} parent=0 // pred_check
    _
  $region11: #{decoder_forward.19} parent=0 // pred_check_branch
    %13 = sbr.rel (0) target = $region13
  $region12: #{decoder_forward.19} parent=0 // pred_region
    _
  $region13: #{decoder_forward.19} parent=0 // pred_fallthru
    _
  %p14 = scmp.eq.s32.totalorder 0, 0
  // Predicated region
  $region14: #{decoder_forward.19} parent=0 // pred_check
    %p15 = pneg %p14
  $region15: #{decoder_forward.19} parent=0 // pred_check_branch
    %17 = sbr.rel (%p15) target = $region17
  $region16: #{decoder_forward.19} parent=0 // pred_region
    %vm18 = vcmask 523264
    %19 = vst.msk [vmem:[#allocation2] sm:$0xff] %vm18, 0.0
    %20 = vst.msk [vmem:[#allocation2 + $0x8] sm:$0xff] %vm18, 0.0
  $region17: #{decoder_forward.19} parent=0 // pred_fallthru
    _
  %v21 = vld [vmem:[#allocation2] sm:$0xff]
  %v22 = vld [vmem:[#allocation2 + $0x8] sm:$0xff]
  %v23 = vld [vmem:[%s0] sm:$0xff]
  %v24 = vld [vmem:[%s0 + $0x8] sm:$0xff]
  %v25 = vld [vmem:[%s1] sm:$0xff]
  %v26 = vld [vmem:[%s1 + $0x8] sm:$0xff]
  %v27 = vld [vmem:[%s1 + $0x10] sm:$0xff]
  %v28 = vld [vmem:[%s1 + $0x18] sm:$0xff]
  %vm29 = vcmask 261120
  %v31 = vsel %vm29, %v23, 0
  %v34 = vsel %vm29, %v24, 0
  %36 = vmatprep.subr.mxu0 0.0
  %37 = vmatpush1.msra.mxu0 0.0
  %38 = vmatprep.subr.mxu0 0.0
  %39 = vmatpush1.msra.mxu0 0.0
  %40 = vmatprep.subr.mxu0 0.0
  %41 = vmatpush1.msra.mxu0 0.0
  %42 = vmatprep.subr.mxu0 0.0
  %43 = vmatpush1.msra.mxu0 0.0
  %44 = vmatprep.subr.mxu0 0.0
  %45 = vmatpush1.msra.mxu0 0.0
  %46 = vmatprep.subr.mxu0 0.0
  %47 = vmatpush1.msra.mxu0 0.0
  %48 = vmatprep.subr.mxu0 0.0
  %49 = vmatpush1.msra.mxu0 0.0
  %50 = vmatprep.subr.mxu0 0.0
  %51 = vmatpush1.msra.mxu0 0.0
  %52 = vmatprep.subr.mxu0 0.0
  %53 = vmatpush1.msra.mxu0 0.0
  %54 = vmatprep.subr.mxu0 0.0
  %55 = vmatpush1.msra.mxu0 0.0
  %56 = vmatprep.subr.mxu0 0.0
  %57 = vmatpush1.msra.mxu0 0.0
  %58 = vmatprep.subr.mxu0 0.0
  %59 = vmatpush1.msra.mxu0 0.0
  %60 = vmatprep.subr.mxu0 0.0
  %61 = vmatpush1.msra.mxu0 %v28
  %62 = vmatprep.subr.mxu0 0.0
  %63 = vmatpush1.msra.mxu0 %v27
  %64 = vmatprep.subr.mxu0 0.0
  %65 = vmatpush1.msra.mxu0 %v26
  %66 = vmatprep.subr.mxu0 0.0
  %67 = vmatpush1.msra.mxu0 %v25
  %68 = vmatprep.subr.mxu0 0.0
  %69 = vmatpush2.msra.mxu0 0.0
  %70 = vmatprep.subr.mxu0 0.0
  %71 = vmatpush2.msra.mxu0 0.0
  %72 = vmatprep.subr.mxu0 0.0
  %73 = vmatpush2.msra.mxu0 0.0
  %74 = vmatprep.subr.mxu0 0.0
  %75 = vmatpush2.msra.mxu0 0.0
  %76 = vmatprep.subr.mxu0 0.0
  %77 = vmatpush2.msra.mxu0 0.0
  %78 = vmatprep.subr.mxu0 0.0
  %79 = vmatpush2.msra.mxu0 0.0
  %80 = vmatprep.subr.mxu0 0.0
  %81 = vmatpush2.msra.mxu0 0.0
  %82 = vmatprep.subr.mxu0 0.0
  %83 = vmatpush2.msra.mxu0 0.0
  %84 = vmatprep.subr.mxu0 0.0
  %85 = vmatpush2.msra.mxu0 0.0
  %86 = vmatprep.subr.mxu0 0.0
  %87 = vmatpush2.msra.mxu0 0.0
  %88 = vmatprep.subr.mxu0 0.0
  %89 = vmatpush2.msra.mxu0 0.0
  %90 = vmatprep.subr.mxu0 0.0
  %91 = vmatpush2.msra.mxu0 0.0
  %92 = vmatprep.subr.mxu0 0.0
  %93 = vmatpush2.msra.mxu0 0.0
  %94 = vmatprep.subr.mxu0 0.0
  %95 = vmatpush2.msra.mxu0 0.0
  %96 = vmatprep.subr.mxu0 0.0
  %97 = vmatpush2.msra.mxu0 0.0
  %98 = vmatprep.subr.mxu0 0.0
  %99 = vmatpush2.msra.mxu0 0.0
  %100 = vmatprep.mubr.f32.mxu0 0.0
  %101 = vmatmul.mubr.f32.gmra.mxu0 %v31
  %v102 = vpop.f32.mrf.mxu0
  %v103 = vadd.f32 0.0, %v102
  %v104 = vpop.f32.mrf.mxu0
  %105 = vmatprep.mubr.f32.mxu0 0.0
  %106 = vmatmul.mubr.f32.gmra.mxu0 %v34
  %v107 = vpop.f32.mrf.mxu0
  %v108 = vadd.f32 0.0, %v107
  %v109 = vpop.f32.mrf.mxu0
  %110 = vdwg.mxu0
  %v111 = vadd.f32 %v21, %v103
  %v112 = vadd.f32 %v22, %v108
  %vm113 = vcmask 523264
  %114 = vst.msk [vmem:[#allocation2] sm:$0xff] %vm113, %v111
  %115 = vst.msk [vmem:[#allocation2 + $0x8] sm:$0xff] %vm113, %v112
  // Predicated region
  $region18: #{decoder_forward.19} parent=0 // pred_check
    %p116 = pneg %p14
  $region19: #{decoder_forward.19} parent=0 // pred_check_branch
    %118 = sbr.rel (%p116) target = $region21
  $region20: #{decoder_forward.19} parent=0 // pred_region
    %v119 = vld [vmem:[#allocation2] sm:$0xff]
    %v120 = vld [vmem:[#allocation2 + $0x8] sm:$0xff]
    %v121 = vld [vmem:[%s2] sm:$0x1]
    %v123 = vlaneseq
    %v124 = vshrl.u32 %v123, 7
    %v125 = vsub.s32 0, %v124
    %v126 = vrot.slane %v121, %v125
    %v128 = vadd.f32 %v119, %v126
    %v129 = vadd.f32 %v120, %v126
    %v130 = vmax.f32 %v128, 0.0
    %v131 = vmax.f32 %v129, 0.0
    %132 = vst.msk [vmem:[%s3] sm:$0xff] %vm113, %v130
    %133 = vst.msk [vmem:[%s3 + $0x8] sm:$0xff] %vm113, %v131
  $region21: #{decoder_forward.19} parent=0 // pred_fallthru
    _
  // Predicated region
  $region22: #{decoder_forward.19} parent=0 // pred_check
    _
  $region23: #{decoder_forward.19} parent=0 // pred_check_branch
    %135 = sbr.rel (0) target = $region25
  $region24: #{decoder_forward.19} parent=0 // pred_region
    _
  $region25: #{decoder_forward.19} parent=0 // pred_fallthru
    _
  // Predicated region
  $region26: #{decoder_forward.19} parent=0 // pred_check
    _
  $region27: #{decoder_forward.19} parent=0 // pred_check_branch
    %137 = sbr.rel (0) target = $region29
  $region28: #{decoder_forward.19} parent=0 // pred_region
    _
  $region29: #{decoder_forward.19} parent=0 // pred_fallthru
    _

// kernel: decoder_forward.17
$region0: #{decoder_forward.17}
  #allocation0 [shape = 'u32[]', space=smem, size = 0x4, offset = 0x4, fixed_abs, tag = 'smem constant byte address 0x4 - core index']
  #allocation1 [shape = 'u32[144,128]{1,0:T(1,128)}', space=vmem, size = 0x12000, scoped, tag = 'internal scratch']
  %s0 = inlined_call_operand.vmem [shape: f32[2,8,32], index: 0, kind: input, shape index: {}]
  %s1 = inlined_call_operand.vmem [shape: f32[2,8,32], index: 1, kind: input, shape index: {}]
  %s2 = inlined_call_operand.vmem [shape: f32[32,32], index: 2, kind: input, shape index: {}]
  %s3 = inlined_call_operand.vmem [shape: f32[1,32], index: 3, kind: input, shape index: {}]
  %s4 = inlined_call_operand.vmem [shape: f32[32,64], index: 4, kind: input, shape index: {}]
  %s5 = inlined_call_operand.vmem [shape: f32[1,64], index: 5, kind: input, shape index: {}]
  %s6 = inlined_call_operand.vmem [shape: f32[2,4,8,8], index: 6, kind: output, shape index: {}]
  %s7 = sld [smem:[#allocation0]]
  $region57: #{decoder_forward.17} parent=0
    _
  %s9 = ssub.s32 1, %s7
  %s10 = scalar_select 0, %s9, %s7
  loop: start=0, step=1, limit=4
  $region2: #{decoder_forward.17} parent=0 // loop_pre_header
    _
  $region3: #{decoder_forward.17} parent=0 // loop_header
    %s12 = sphi 0, %s16
    %p13 = scmp.ge.s32.totalorder %s12, 4
    %s22 = sphi 0, %s24
    %s25 = sphi 0, %s22
    %s26 = sphi 0, %s25
    %s42 = sphi 0, %s26
    %s48 = sphi 0, %s50
    %s51 = sphi 0, %s48
    %s52 = sphi 0, %s51
    %s68 = sphi 0, %s52
    %s72 = sphi 0, %s72
    %s74 = sphi 0, %s72
    %s75 = sphi 0, %s74
    %s89 = sphi 0, %s75
    %s93 = sphi 0, %s93
    %s95 = sphi 0, %s93
    %s96 = sphi 0, %s95
    %s110 = sphi 0, %s96
    %s114 = sphi 0, %s114
    %s116 = sphi 0, %s114
    %s117 = sphi 0, %s116
    %s131 = sphi 0, %s117
    %s135 = sphi 0, %s135
    %s137 = sphi 0, %s135
    %s138 = sphi 0, %s137
    %s152 = sphi 0, %s138
    %s158 = sphi 0, %s160
    %s161 = sphi 0, %s158
    %s162 = sphi 0, %s161
    %s178 = sphi 0, %s162
  $region4: #{decoder_forward.17} parent=0 // loop_header_branch
    %15 = sbr.rel (%p13) target = $region8
  $region5: #{decoder_forward.17} parent=0 // loop_body
    %s17 = ssub.s32 %s12, 1
    %s18 = ssub.s32 %s12, 2
    %s19 = sadd.s32 %s12, 1
    %s20 = ssub.s32 %s12, %s19
    %p21 = scmp.eq.s32.totalorder %s20, 0
    %s23 = sadd.s32 %s22, 1
    %s24 = scalar_select %p21, %s22, %s23
    %p27 = pneg %p21
    %p28 = scmp.eq.s32.totalorder %s12, 1
    %p29 = por %p27, %p28
    %p30 = scmp.ne.s32.totalorder %s22, %s25
    %p31 = scmp.eq.s32.totalorder %s12, 0
    %p32 = por %p30, %p31
    %p33 = scmp.ne.s32.totalorder %s22, %s25
    %p34 = scmp.eq.s32.totalorder %s17, 1
    %p35 = por %p33, %p34
    %p36 = scmp.ne.s32.totalorder %s25, %s26
    %p37 = scmp.eq.s32.totalorder %s17, 0
    %p38 = por %p36, %p37
    %p39 = scmp.ne.s32.totalorder %s25, %s26
    %p40 = scmp.eq.s32.totalorder %s18, 1
    %p41 = por %p39, %p40
    %p43 = scmp.ne.s32.totalorder %s26, %s42
    %p44 = scmp.eq.s32.totalorder %s18, 0
    %p45 = por %p43, %p44
    %s46 = ssub.s32 %s12, %s19
    %p47 = scmp.eq.s32.totalorder %s46, 0
    %s49 = sadd.s32 %s48, 1
    %s50 = scalar_select %p47, %s48, %s49
    %p53 = pneg %p47
    %p54 = scmp.eq.s32.totalorder %s12, 1
    %p55 = por %p53, %p54
    %p56 = scmp.ne.s32.totalorder %s48, %s51
    %p57 = scmp.eq.s32.totalorder %s12, 0
    %p58 = por %p56, %p57
    %p59 = scmp.ne.s32.totalorder %s48, %s51
    %p60 = scmp.eq.s32.totalorder %s17, 1
    %p61 = por %p59, %p60
    %p62 = scmp.ne.s32.totalorder %s51, %s52
    %p63 = scmp.eq.s32.totalorder %s17, 0
    %p64 = por %p62, %p63
    %p65 = scmp.ne.s32.totalorder %s51, %s52
    %p66 = scmp.eq.s32.totalorder %s18, 1
    %p67 = por %p65, %p66
    %p69 = scmp.ne.s32.totalorder %s52, %s68
    %p70 = scmp.eq.s32.totalorder %s18, 0
    %p71 = por %p69, %p70
    %s73 = sadd.s32 %s72, 1
    %p76 = scmp.eq.s32.totalorder %s12, 1
    %p77 = scmp.ne.s32.totalorder %s72, %s74
    %p78 = scmp.eq.s32.totalorder %s12, 0
    %p79 = por %p77, %p78
    %p80 = scmp.ne.s32.totalorder %s72, %s74
    %p81 = scmp.eq.s32.totalorder %s17, 1
    %p82 = por %p80, %p81
    %p83 = scmp.ne.s32.totalorder %s74, %s75
    %p84 = scmp.eq.s32.totalorder %s17, 0
    %p85 = por %p83, %p84
    %p86 = scmp.ne.s32.totalorder %s74, %s75
    %p87 = scmp.eq.s32.totalorder %s18, 1
    %p88 = por %p86, %p87
    %p90 = scmp.ne.s32.totalorder %s75, %s89
    %p91 = scmp.eq.s32.totalorder %s18, 0
    %p92 = por %p90, %p91
    %s94 = sadd.s32 %s93, 1
    %p97 = scmp.eq.s32.totalorder %s12, 1
    %p98 = scmp.ne.s32.totalorder %s93, %s95
    %p99 = scmp.eq.s32.totalorder %s12, 0
    %p100 = por %p98, %p99
    %p101 = scmp.ne.s32.totalorder %s93, %s95
    %p102 = scmp.eq.s32.totalorder %s17, 1
    %p103 = por %p101, %p102
    %p104 = scmp.ne.s32.totalorder %s95, %s96
    %p105 = scmp.eq.s32.totalorder %s17, 0
    %p106 = por %p104, %p105
    %p107 = scmp.ne.s32.totalorder %s95, %s96
    %p108 = scmp.eq.s32.totalorder %s18, 1
    %p109 = por %p107, %p108
    %p111 = scmp.ne.s32.totalorder %s96, %s110
    %p112 = scmp.eq.s32.totalorder %s18, 0
    %p113 = por %p111, %p112
    %s115 = sadd.s32 %s114, 1
    %p118 = scmp.eq.s32.totalorder %s12, 1
    %p119 = scmp.ne.s32.totalorder %s114, %s116
    %p120 = scmp.eq.s32.totalorder %s12, 0
    %p121 = por %p119, %p120
    %p122 = scmp.ne.s32.totalorder %s114, %s116
    %p123 = scmp.eq.s32.totalorder %s17, 1
    %p124 = por %p122, %p123
    %p125 = scmp.ne.s32.totalorder %s116, %s117
    %p126 = scmp.eq.s32.totalorder %s17, 0
    %p127 = por %p125, %p126
    %p128 = scmp.ne.s32.totalorder %s116, %s117
    %p129 = scmp.eq.s32.totalorder %s18, 1
    %p130 = por %p128, %p129
    %p132 = scmp.ne.s32.totalorder %s117, %s131
    %p133 = scmp.eq.s32.totalorder %s18, 0
    %p134 = por %p132, %p133
    %s136 = sadd.s32 %s135, 1
    %p139 = scmp.eq.s32.totalorder %s12, 1
    %p140 = scmp.ne.s32.totalorder %s135, %s137
    %p141 = scmp.eq.s32.totalorder %s12, 0
    %p142 = por %p140, %p141
    %p143 = scmp.ne.s32.totalorder %s135, %s137
    %p144 = scmp.eq.s32.totalorder %s17, 1
    %p145 = por %p143, %p144
    %p146 = scmp.ne.s32.totalorder %s137, %s138
    %p147 = scmp.eq.s32.totalorder %s17, 0
    %p148 = por %p146, %p147
    %p149 = scmp.ne.s32.totalorder %s137, %s138
    %p150 = scmp.eq.s32.totalorder %s18, 1
    %p151 = por %p149, %p150
    %p153 = scmp.ne.s32.totalorder %s138, %s152
    %p154 = scmp.eq.s32.totalorder %s18, 0
    %p155 = por %p153, %p154
    %s156 = ssub.s32 %s12, %s19
    %p157 = scmp.eq.s32.totalorder %s156, 0
    %s159 = sadd.s32 %s158, 1
    %s160 = scalar_select %p157, %s158, %s159
    %p163 = pneg %p157
    %p164 = scmp.eq.s32.totalorder %s12, 1
    %p165 = por %p163, %p164
    %p166 = scmp.ne.s32.totalorder %s158, %s161
    %p167 = scmp.eq.s32.totalorder %s12, 0
    %p168 = por %p166, %p167
    %p169 = scmp.ne.s32.totalorder %s158, %s161
    %p170 = scmp.eq.s32.totalorder %s17, 1
    %p171 = por %p169, %p170
    %p172 = scmp.ne.s32.totalorder %s161, %s162
    %p173 = scmp.eq.s32.totalorder %s17, 0
    %p174 = por %p172, %p173
    %p175 = scmp.ne.s32.totalorder %s161, %s162
    %p176 = scmp.eq.s32.totalorder %s18, 1
    %p177 = por %p175, %p176
    %p179 = scmp.ne.s32.totalorder %s162, %s178
    %p180 = scmp.eq.s32.totalorder %s18, 0
    %p181 = por %p179, %p180
    %p182 = scmp.le.s32.totalorder 1, %s12
    %p183 = scmp.lt.s32.totalorder %s12, 3
    %p184 = pnand %p182, %p183
    %p185 = pneg %p184
    // Predicated region
    $region9: #{decoder_forward.17} parent=5 // pred_check
      _
    $region10: #{decoder_forward.17} parent=5 // pred_check_branch
      %187 = sbr.rel (%p184) target = $region12
    $region11: #{decoder_forward.17} parent=5 // pred_region
      %s188 = ssub.s32 %s12, 1
      // Predicated region
      $region13: #{decoder_forward.17} parent=11 // pred_check
        %p189 = pneg %p85
      $region14: #{decoder_forward.17} parent=11 // pred_check_branch
        %191 = sbr.rel (%p189) target = $region16
      $region15: #{decoder_forward.17} parent=11 // pred_region
        _
      $region16: #{decoder_forward.17} parent=11 // pred_fallthru
        _
      // Predicated region
      $region17: #{decoder_forward.17} parent=11 // pred_check
        %p192 = pneg %p106
      $region18: #{decoder_forward.17} parent=11 // pred_check_branch
        %194 = sbr.rel (%p192) target = $region20
      $region19: #{decoder_forward.17} parent=11 // pred_region
        _
      $region20: #{decoder_forward.17} parent=11 // pred_fallthru
        _
      // Predicated region
      $region21: #{decoder_forward.17} parent=11 // pred_check
        %p195 = pneg %p127
      $region22: #{decoder_forward.17} parent=11 // pred_check_branch
        %197 = sbr.rel (%p195) target = $region24
      $region23: #{decoder_forward.17} parent=11 // pred_region
        _
      $region24: #{decoder_forward.17} parent=11 // pred_fallthru
        _
      // Predicated region
      $region25: #{decoder_forward.17} parent=11 // pred_check
        %p198 = pneg %p148
      $region26: #{decoder_forward.17} parent=11 // pred_check_branch
        %200 = sbr.rel (%p198) target = $region28
      $region27: #{decoder_forward.17} parent=11 // pred_region
        _
      $region28: #{decoder_forward.17} parent=11 // pred_fallthru
        _
    $region12: #{decoder_forward.17} parent=5 // pred_fallthru
      _
    %p201 = scmp.lt.s32.totalorder %s12, 2
    // Predicated region
    $region29: #{decoder_forward.17} parent=5 // pred_check
      %p202 = pneg %p201
    $region30: #{decoder_forward.17} parent=5 // pred_check_branch
      %204 = sbr.rel (%p202) target = $region32
    $region31: #{decoder_forward.17} parent=5 // pred_region
      // Predicated region
      $region33: #{decoder_forward.17} parent=31 // pred_check
        %p205 = pneg %p32
      $region34: #{decoder_forward.17} parent=31 // pred_check_branch
        %207 = sbr.rel (%p205) target = $region36
      $region35: #{decoder_forward.17} parent=31 // pred_region
        %p208 = scmp.lt.s32.totalorder %s12, 1
        %s209 = scalar_select %p208, %s12, 1
        %s210 = smul.addr %s209, 8
        %s211 = scalar_lea.vmem %s0, %s210
      $region36: #{decoder_forward.17} parent=31 // pred_fallthru
        _
      // Predicated region
      $region37: #{decoder_forward.17} parent=31 // pred_check
        %p212 = pneg %p58
      $region38: #{decoder_forward.17} parent=31 // pred_check_branch
        %214 = sbr.rel (%p212) target = $region40
      $region39: #{decoder_forward.17} parent=31 // pred_region
        %p215 = scmp.lt.s32.totalorder %s12, 1
        %s216 = scalar_select %p215, %s12, 1
        %s217 = smul.addr %s216, 8
        %s218 = scalar_lea.vmem %s1, %s217
      $region40: #{decoder_forward.17} parent=31 // pred_fallthru
        _
    $region32: #{decoder_forward.17} parent=5 // pred_fallthru
      _
    %p219 = scmp.le.s32.totalorder 1, %s12
    %p220 = scmp.lt.s32.totalorder %s12, 3
    %p221 = pnand %p219, %p220
    %p222 = pneg %p221
    // Predicated region
    $region41: #{decoder_forward.17} parent=5 // pred_check
      _
    $region42: #{decoder_forward.17} parent=5 // pred_check_branch
      %224 = sbr.rel (%p221) target = $region44
    $region43: #{decoder_forward.17} parent=5 // pred_region
      %s225 = ssub.s32 %s12, 1
      %p226 = scmp.lt.s32.totalorder %s17, 1
      %s227 = scalar_select %p226, %s17, 1
      %s228 = smul.addr %s227, 8
      %s229 = scalar_lea.vmem %s0, %s228
      %p230 = pneg %p38
      %p231 = pneg %p35
      %p232 = scmp.lt.s32.totalorder %s17, 1
      %s233 = scalar_select %p232, %s17, 1
      %s234 = smul.addr %s233, 8
      %s235 = scalar_lea.vmem %s1, %s234
      %p236 = pneg %p64
      %p237 = pneg %p61
      %p238 = pneg %p85
      %p239 = pneg %p82
      %p240 = pneg %p106
      %p241 = pneg %p103
      %p242 = pneg %p127
      %p243 = pneg %p124
      %p244 = pneg %p148
      %p245 = pneg %p145
      %p246 = pneg %p174
      %p247 = pneg %p171
      %p248 = scmp.lt.s32.totalorder %s17, 1
      %s249 = scalar_select %p248, %s17, 1
      %s250 = smul.addr %s249, 4
      %s251 = smul.addr %s250, 8
      %s252 = scalar_lea.vmem %s6, %s251
      %p253 = scmp.lt.s32.totalorder %s17, 1
      %s254 = scalar_select %p253, %s17, 1
      %s255 = smul.addr %s254, 8
      %s256 = scalar_lea.vmem %s0, %s255
      %p257 = scmp.lt.s32.totalorder %s17, 1
      %s258 = scalar_select %p257, %s17, 1
      %s259 = smul.addr %s258, 8
      %s260 = scalar_lea.vmem %s1, %s259
      %p261 = scmp.lt.s32.totalorder %s17, 1
      %s262 = scalar_select %p261, %s17, 1
      %s263 = smul.addr %s262, 4
      %s264 = smul.addr %s263, 8
      %s265 = scalar_lea.vmem %s6, %s264
      %v266 = vld [vmem:[%s256] sm:$0xff]
      %v267 = vld [vmem:[%s2] sm:$0xff]
      %v268 = vld [vmem:[%s2 + $0x8] sm:$0xff]
      %v269 = vld [vmem:[%s2 + $0x10] sm:$0xff]
      %v270 = vld [vmem:[%s2 + $0x18] sm:$0xff]
      %v271 = vld [vmem:[%s3] sm:$0x1]
      %v273 = vlaneseq
      %v274 = vshrl.u32 %v273, 7
      %v275 = vsub.s32 0, %v274
      %v276 = vrot.slane %v271, %v275
      %vm278 = vcmask 261120
      %v280 = vsel %vm278, %v266, 0
      %282 = vmatprep.subr.mxu0 0.0
      %283 = vmatpush1.msra.mxu0 0.0
      %284 = vmatprep.subr.mxu0 0.0
      %285 = vmatpush1.msra.mxu0 0.0
      %286 = vmatprep.subr.mxu0 0.0
      %287 = vmatpush1.msra.mxu0 0.0
      %288 = vmatprep.subr.mxu0 0.0
      %289 = vmatpush1.msra.mxu0 0.0
      %290 = vmatprep.subr.mxu0 0.0
      %291 = vmatpush1.msra.mxu0 0.0
      %292 = vmatprep.subr.mxu0 0.0
      %293 = vmatpush1.msra.mxu0 0.0
      %294 = vmatprep.subr.mxu0 0.0
      %295 = vmatpush1.msra.mxu0 0.0
      %296 = vmatprep.subr.mxu0 0.0
      %297 = vmatpush1.msra.mxu0 0.0
      %298 = vmatprep.subr.mxu0 0.0
      %299 = vmatpush1.msra.mxu0 0.0
      %300 = vmatprep.subr.mxu0 0.0
      %301 = vmatpush1.msra.mxu0 0.0
      %302 = vmatprep.subr.mxu0 0.0
      %303 = vmatpush1.msra.mxu0 0.0
      %304 = vmatprep.subr.mxu0 0.0
      %305 = vmatpush1.msra.mxu0 0.0
      %306 = vmatprep.subr.mxu0 0.0
      %307 = vmatpush1.msra.mxu0 %v270
      %308 = vmatprep.subr.mxu0 0.0
      %309 = vmatpush1.msra.mxu0 %v269
      %310 = vmatprep.subr.mxu0 0.0
      %311 = vmatpush1.msra.mxu0 %v268
      %312 = vmatprep.subr.mxu0 0.0
      %313 = vmatpush1.msra.mxu0 %v267
      %314 = vmatprep.subr.mxu0 0.0
      %315 = vmatpush2.msra.mxu0 0.0
      %316 = vmatprep.subr.mxu0 0.0
      %317 = vmatpush2.msra.mxu0 0.0
      %318 = vmatprep.subr.mxu0 0.0
      %319 = vmatpush2.msra.mxu0 0.0
      %320 = vmatprep.subr.mxu0 0.0
      %321 = vmatpush2.msra.mxu0 0.0
      %322 = vmatprep.subr.mxu0 0.0
      %323 = vmatpush2.msra.mxu0 0.0
      %324 = vmatprep.subr.mxu0 0.0
      %325 = vmatpush2.msra.mxu0 0.0
      %326 = vmatprep.subr.mxu0 0.0
      %327 = vmatpush2.msra.mxu0 0.0
      %328 = vmatprep.subr.mxu0 0.0
      %329 = vmatpush2.msra.mxu0 0.0
      %330 = vmatprep.subr.mxu0 0.0
      %331 = vmatpush2.msra.mxu0 0.0
      %332 = vmatprep.subr.mxu0 0.0
      %333 = vmatpush2.msra.mxu0 0.0
      %334 = vmatprep.subr.mxu0 0.0
      %335 = vmatpush2.msra.mxu0 0.0
      %336 = vmatprep.subr.mxu0 0.0
      %337 = vmatpush2.msra.mxu0 0.0
      %338 = vmatprep.subr.mxu0 0.0
      %339 = vmatpush2.msra.mxu0 0.0
      %340 = vmatprep.subr.mxu0 0.0
      %341 = vmatpush2.msra.mxu0 0.0
      %342 = vmatprep.subr.mxu0 0.0
      %343 = vmatpush2.msra.mxu0 0.0
      %344 = vmatprep.subr.mxu0 0.0
      %345 = vmatpush2.msra.mxu0 0.0
      %346 = vmatprep.mubr.f32.mxu0 0.0
      %347 = vmatmul.mubr.f32.gmra.mxu0 %v280
      %v348 = vpop.f32.mrf.mxu0
      %v349 = vadd.f32 %v276, %v348
      %v350 = vpop.f32.mrf.mxu0
      %351 = vdwg.mxu0
      %v352 = vld [vmem:[%s260] sm:$0xff]
      %v353 = vld [vmem:[%s4] sm:$0xff]
      %v354 = vld [vmem:[%s4 + $0x8] sm:$0xff]
      %v355 = vld [vmem:[%s4 + $0x10] sm:$0xff]
      %v356 = vld [vmem:[%s4 + $0x18] sm:$0xff]
      %v357 = vld [vmem:[%s5] sm:$0x1]
      %v359 = vlaneseq
      %v360 = vshrl.u32 %v359, 7
      %v361 = vsub.s32 0, %v360
      %v362 = vrot.slane %v357, %v361
      %v365 = vsel %vm278, %v352, 0
      %367 = vmatprep.subr.mxu0 0.0
      %368 = vmatpush1.msra.mxu0 0.0
      %369 = vmatprep.subr.mxu0 0.0
      %370 = vmatpush1.msra.mxu0 0.0
      %371 = vmatprep.subr.mxu0 0.0
      %372 = vmatpush1.msra.mxu0 0.0
      %373 = vmatprep.subr.mxu0 0.0
      %374 = vmatpush1.msra.mxu0 0.0
      %375 = vmatprep.subr.mxu0 0.0
      %376 = vmatpush1.msra.mxu0 0.0
      %377 = vmatprep.subr.mxu0 0.0
      %378 = vmatpush1.msra.mxu0 0.0
      %379 = vmatprep.subr.mxu0 0.0
      %380 = vmatpush1.msra.mxu0 0.0
      %381 = vmatprep.subr.mxu0 0.0
      %382 = vmatpush1.msra.mxu0 0.0
      %383 = vmatprep.subr.mxu0 0.0
      %384 = vmatpush1.msra.mxu0 0.0
      %385 = vmatprep.subr.mxu0 0.0
      %386 = vmatpush1.msra.mxu0 0.0
      %387 = vmatprep.subr.mxu0 0.0
      %388 = vmatpush1.msra.mxu0 0.0
      %389 = vmatprep.subr.mxu0 0.0
      %390 = vmatpush1.msra.mxu0 0.0
      %391 = vmatprep.subr.mxu0 0.0
      %392 = vmatpush1.msra.mxu0 %v356
      %393 = vmatprep.subr.mxu0 0.0
      %394 = vmatpush1.msra.mxu0 %v355
      %395 = vmatprep.subr.mxu0 0.0
      %396 = vmatpush1.msra.mxu0 %v354
      %397 = vmatprep.subr.mxu0 0.0
      %398 = vmatpush1.msra.mxu0 %v353
      %399 = vmatprep.subr.mxu0 0.0
      %400 = vmatpush2.msra.mxu0 0.0
      %401 = vmatprep.subr.mxu0 0.0
      %402 = vmatpush2.msra.mxu0 0.0
      %403 = vmatprep.subr.mxu0 0.0
      %404 = vmatpush2.msra.mxu0 0.0
      %405 = vmatprep.subr.mxu0 0.0
      %406 = vmatpush2.msra.mxu0 0.0
      %407 = vmatprep.subr.mxu0 0.0
      %408 = vmatpush2.msra.mxu0 0.0
      %409 = vmatprep.subr.mxu0 0.0
      %410 = vmatpush2.msra.mxu0 0.0
      %411 = vmatprep.subr.mxu0 0.0
      %412 = vmatpush2.msra.mxu0 0.0
      %413 = vmatprep.subr.mxu0 0.0
      %414 = vmatpush2.msra.mxu0 0.0
      %415 = vmatprep.subr.mxu0 0.0
      %416 = vmatpush2.msra.mxu0 0.0
      %417 = vmatprep.subr.mxu0 0.0
      %418 = vmatpush2.msra.mxu0 0.0
      %419 = vmatprep.subr.mxu0 0.0
      %420 = vmatpush2.msra.mxu0 0.0
      %421 = vmatprep.subr.mxu0 0.0
      %422 = vmatpush2.msra.mxu0 0.0
      %423 = vmatprep.subr.mxu0 0.0
      %424 = vmatpush2.msra.mxu0 0.0
      %425 = vmatprep.subr.mxu0 0.0
      %426 = vmatpush2.msra.mxu0 0.0
      %427 = vmatprep.subr.mxu0 0.0
      %428 = vmatpush2.msra.mxu0 0.0
      %429 = vmatprep.subr.mxu0 0.0
      %430 = vmatpush2.msra.mxu0 0.0
      %431 = vmatprep.mubr.f32.mxu0 0.0
      %432 = vmatmul.mubr.f32.gmra.mxu0 %v365
      %v433 = vpop.f32.mrf.mxu0
      %v434 = vadd.f32 %v362, %v433
      %v435 = vpop.f32.mrf.mxu0
      %436 = vdwg.mxu0
      %vm437 = vcmask 64512
      %v439 = vsel %vm437, %v349, 0
      %v442 = vsel %vm437, %v434, 0
      %444 = vmatprep.subr.mxu0 0.0
      %445 = vmatpush1.xpose.msra.mxu0 0.0
      %446 = vmatprep.subr.mxu0 0.0
      %447 = vmatpush1.xpose.msra.mxu0 0.0
      %448 = vmatprep.subr.mxu0 0.0
      %449 = vmatpush1.xpose.msra.mxu0 0.0
      %450 = vmatprep.subr.mxu0 0.0
      %451 = vmatpush1.xpose.msra.mxu0 0.0
      %452 = vmatprep.subr.mxu0 0.0
      %453 = vmatpush1.xpose.msra.mxu0 0.0
      %454 = vmatprep.subr.mxu0 0.0
      %455 = vmatpush1.xpose.msra.mxu0 0.0
      %456 = vmatprep.subr.mxu0 0.0
      %457 = vmatpush1.xpose.msra.mxu0 0.0
      %458 = vmatprep.subr.mxu0 0.0
      %459 = vmatpush1.xpose.msra.mxu0 0.0
      %460 = vmatprep.subr.mxu0 0.0
      %461 = vmatpush1.xpose.msra.mxu0 0.0
      %462 = vmatprep.subr.mxu0 0.0
      %463 = vmatpush1.xpose.msra.mxu0 0.0
      %464 = vmatprep.subr.mxu0 0.0
      %465 = vmatpush1.xpose.msra.mxu0 0.0
      %466 = vmatprep.subr.mxu0 0.0
      %467 = vmatpush1.xpose.msra.mxu0 0.0
      %468 = vmatprep.subr.mxu0 0.0
      %469 = vmatpush1.xpose.msra.mxu0 0.0
      %470 = vmatprep.subr.mxu0 0.0
      %471 = vmatpush1.xpose.msra.mxu0 0.0
      %472 = vmatprep.subr.mxu0 0.0
      %473 = vmatpush1.xpose.msra.mxu0 0.0
      %474 = vmatprep.subr.mxu0 0.0
      %475 = vmatpush1.xpose.msra.mxu0 %v442
      %476 = vmatprep.subr.mxu0 0.0
      %477 = vmatpush2.xpose.msra.mxu0 0.0
      %478 = vmatprep.subr.mxu0 0.0
      %479 = vmatpush2.xpose.msra.mxu0 0.0
      %480 = vmatprep.subr.mxu0 0.0
      %481 = vmatpush2.xpose.msra.mxu0 0.0
      %482 = vmatprep.subr.mxu0 0.0
      %483 = vmatpush2.xpose.msra.mxu0 0.0
      %484 = vmatprep.subr.mxu0 0.0
      %485 = vmatpush2.xpose.msra.mxu0 0.0
      %486 = vmatprep.subr.mxu0 0.0
      %487 = vmatpush2.xpose.msra.mxu0 0.0
      %488 = vmatprep.subr.mxu0 0.0
      %489 = vmatpush2.xpose.msra.mxu0 0.0
      %490 = vmatprep.subr.mxu0 0.0
      %491 = vmatpush2.xpose.msra.mxu0 0.0
      %492 = vmatprep.subr.mxu0 0.0
      %493 = vmatpush2.xpose.msra.mxu0 0.0
      %494 = vmatprep.subr.mxu0 0.0
      %495 = vmatpush2.xpose.msra.mxu0 0.0
      %496 = vmatprep.subr.mxu0 0.0
      %497 = vmatpush2.xpose.msra.mxu0 0.0
      %498 = vmatprep.subr.mxu0 0.0
      %499 = vmatpush2.xpose.msra.mxu0 0.0
      %500 = vmatprep.subr.mxu0 0.0
      %501 = vmatpush2.xpose.msra.mxu0 0.0
      %502 = vmatprep.subr.mxu0 0.0
      %503 = vmatpush2.xpose.msra.mxu0 0.0
      %504 = vmatprep.subr.mxu0 0.0
      %505 = vmatpush2.xpose.msra.mxu0 0.0
      %506 = vmatprep.subr.mxu0 0.0
      %507 = vmatpush2.xpose.msra.mxu0 0.0
      %508 = vmatprep.mubr.f32.mxu0 0.0
      %509 = vmatmul.mubr.f32.gmra.mxu0 %v439
      %v510 = vpop.f32.mrf.mxu0
      %v511 = vadd.f32 0.0, %v510
      %v512 = vpop.f32.mrf.mxu0
      %513 = vdwg.mxu0
      %v514 = vmul.f32 %v511, 0.35355338
      %v515 = vsel %vm437, %v514, -inf
      %516 = vmax.xlane.f32.xlu0 %v515
      %v517 = vpop.xlane.xlu0 %516
      %v518 = vsub.f32 %v514, %v517
      %v519 = vmul.f32 %v518, 1.442695
      %v520 = vpow.pop %v519
      %v521 = vsel %vm437, %v520, 0.0
      %522 = vadd.xlane.f32.xlu0 %v521
      %v523 = vpop.xlane.xlu0 %522
      %v524 = vrcp.pop %v523
      %v525 = vmul.f32 %v520, %v524
      %526 = vrot.lane.b32.xlu0 %v434, 120
      %v527 = vpop.permute.xlu0 %526
      %v530 = vsel %vm437, %v525, 0
      %532 = vmatprep.subr.mxu0 0.0
      %533 = vmatpush1.msra.mxu0 0.0
      %534 = vmatprep.subr.mxu0 0.0
      %535 = vmatpush1.msra.mxu0 0.0
      %536 = vmatprep.subr.mxu0 0.0
      %537 = vmatpush1.msra.mxu0 0.0
      %538 = vmatprep.subr.mxu0 0.0
      %539 = vmatpush1.msra.mxu0 0.0
      %540 = vmatprep.subr.mxu0 0.0
      %541 = vmatpush1.msra.mxu0 0.0
      %542 = vmatprep.subr.mxu0 0.0
      %543 = vmatpush1.msra.mxu0 0.0
      %544 = vmatprep.subr.mxu0 0.0
      %545 = vmatpush1.msra.mxu0 0.0
      %546 = vmatprep.subr.mxu0 0.0
      %547 = vmatpush1.msra.mxu0 0.0
      %548 = vmatprep.subr.mxu0 0.0
      %549 = vmatpush1.msra.mxu0 0.0
      %550 = vmatprep.subr.mxu0 0.0
      %551 = vmatpush1.msra.mxu0 0.0
      %552 = vmatprep.subr.mxu0 0.0
      %553 = vmatpush1.msra.mxu0 0.0
      %554 = vmatprep.subr.mxu0 0.0
      %555 = vmatpush1.msra.mxu0 0.0
      %556 = vmatprep.subr.mxu0 0.0
      %557 = vmatpush1.msra.mxu0 0.0
      %558 = vmatprep.subr.mxu0 0.0
      %559 = vmatpush1.msra.mxu0 0.0
      %560 = vmatprep.subr.mxu0 0.0
      %561 = vmatpush1.msra.mxu0 0.0
      %562 = vmatprep.subr.mxu0 0.0
      %563 = vmatpush1.msra.mxu0 %v527
      %564 = vmatprep.subr.mxu0 0.0
      %565 = vmatpush2.msra.mxu0 0.0
      %566 = vmatprep.subr.mxu0 0.0
      %567 = vmatpush2.msra.mxu0 0.0
      %568 = vmatprep.subr.mxu0 0.0
      %569 = vmatpush2.msra.mxu0 0.0
      %570 = vmatprep.subr.mxu0 0.0
      %571 = vmatpush2.msra.mxu0 0.0
      %572 = vmatprep.subr.mxu0 0.0
      %573 = vmatpush2.msra.mxu0 0.0
      %574 = vmatprep.subr.mxu0 0.0
      %575 = vmatpush2.msra.mxu0 0.0
      %576 = vmatprep.subr.mxu0 0.0
      %577 = vmatpush2.msra.mxu0 0.0
      %578 = vmatprep.subr.mxu0 0.0
      %579 = vmatpush2.msra.mxu0 0.0
      %580 = vmatprep.subr.mxu0 0.0
      %581 = vmatpush2.msra.mxu0 0.0
      %582 = vmatprep.subr.mxu0 0.0
      %583 = vmatpush2.msra.mxu0 0.0
      %584 = vmatprep.subr.mxu0 0.0
      %585 = vmatpush2.msra.mxu0 0.0
      %586 = vmatprep.subr.mxu0 0.0
      %587 = vmatpush2.msra.mxu0 0.0
      %588 = vmatprep.subr.mxu0 0.0
      %589 = vmatpush2.msra.mxu0 0.0
      %590 = vmatprep.subr.mxu0 0.0
      %591 = vmatpush2.msra.mxu0 0.0
      %592 = vmatprep.subr.mxu0 0.0
      %593 = vmatpush2.msra.mxu0 0.0
      %594 = vmatprep.subr.mxu0 0.0
      %595 = vmatpush2.msra.mxu0 0.0
      %596 = vmatprep.mubr.f32.mxu0 0.0
      %597 = vmatmul.mubr.f32.gmra.mxu0 %v530
      %v598 = vpop.f32.mrf.mxu0
      %v599 = vadd.f32 0.0, %v598
      %v600 = vpop.f32.mrf.mxu0
      %601 = vdwg.mxu0
      %602 = vst.msk [vmem:[%s265] sm:$0xff] %vm437, %v599
      %603 = vrot.lane.b32.xlu0 %v349, 120
      %v604 = vpop.permute.xlu0 %603
      %605 = vrot.lane.b32.xlu0 %v434, 112
      %v606 = vpop.permute.xlu0 %605
      %v607 = vsel %vm437, %v604, 0
      %v609 = vsel %vm437, %v606, 0
      %611 = vmatprep.subr.mxu0 0.0
      %612 = vmatpush1.xpose.msra.mxu0 0.0
      %613 = vmatprep.subr.mxu0 0.0
      %614 = vmatpush1.xpose.msra.mxu0 0.0
      %615 = vmatprep.subr.mxu0 0.0
      %616 = vmatpush1.xpose.msra.mxu0 0.0
      %617 = vmatprep.subr.mxu0 0.0
      %618 = vmatpush1.xpose.msra.mxu0 0.0
      %619 = vmatprep.subr.mxu0 0.0
      %620 = vmatpush1.xpose.msra.mxu0 0.0
      %621 = vmatprep.subr.mxu0 0.0
      %622 = vmatpush1.xpose.msra.mxu0 0.0
      %623 = vmatprep.subr.mxu0 0.0
      %624 = vmatpush1.xpose.msra.mxu0 0.0
      %625 = vmatprep.subr.mxu0 0.0
      %626 = vmatpush1.xpose.msra.mxu0 0.0
      %627 = vmatprep.subr.mxu0 0.0
      %628 = vmatpush1.xpose.msra.mxu0 0.0
      %629 = vmatprep.subr.mxu0 0.0
      %630 = vmatpush1.xpose.msra.mxu0 0.0
      %631 = vmatprep.subr.mxu0 0.0
      %632 = vmatpush1.xpose.msra.mxu0 0.0
      %633 = vmatprep.subr.mxu0 0.0
      %634 = vmatpush1.xpose.msra.mxu0 0.0
      %635 = vmatprep.subr.mxu0 0.0
      %636 = vmatpush1.xpose.msra.mxu0 0.0
      %637 = vmatprep.subr.mxu0 0.0
      %638 = vmatpush1.xpose.msra.mxu0 0.0
      %639 = vmatprep.subr.mxu0 0.0
      %640 = vmatpush1.xpose.msra.mxu0 0.0
      %641 = vmatprep.subr.mxu0 0.0
      %642 = vmatpush1.xpose.msra.mxu0 %v609
      %643 = vmatprep.subr.mxu0 0.0
      %644 = vmatpush2.xpose.msra.mxu0 0.0
      %645 = vmatprep.subr.mxu0 0.0
      %646 = vmatpush2.xpose.msra.mxu0 0.0
      %647 = vmatprep.subr.mxu0 0.0
      %648 = vmatpush2.xpose.msra.mxu0 0.0
      %649 = vmatprep.subr.mxu0 0.0
      %650 = vmatpush2.xpose.msra.mxu0 0.0
      %651 = vmatprep.subr.mxu0 0.0
      %652 = vmatpush2.xpose.msra.mxu0 0.0
      %653 = vmatprep.subr.mxu0 0.0
      %654 = vmatpush2.xpose.msra.mxu0 0.0
      %655 = vmatprep.subr.mxu0 0.0
      %656 = vmatpush2.xpose.msra.mxu0 0.0
      %657 = vmatprep.subr.mxu0 0.0
      %658 = vmatpush2.xpose.msra.mxu0 0.0
      %659 = vmatprep.subr.mxu0 0.0
      %660 = vmatpush2.xpose.msra.mxu0 0.0
      %661 = vmatprep.subr.mxu0 0.0
      %662 = vmatpush2.xpose.msra.mxu0 0.0
      %663 = vmatprep.subr.mxu0 0.0
      %664 = vmatpush2.xpose.msra.mxu0 0.0
      %665 = vmatprep.subr.mxu0 0.0
      %666 = vmatpush2.xpose.msra.mxu0 0.0
      %667 = vmatprep.subr.mxu0 0.0
      %668 = vmatpush2.xpose.msra.mxu0 0.0
      %669 = vmatprep.subr.mxu0 0.0
      %670 = vmatpush2.xpose.msra.mxu0 0.0
      %671 = vmatprep.subr.mxu0 0.0
      %672 = vmatpush2.xpose.msra.mxu0 0.0
      %673 = vmatprep.subr.mxu0 0.0
      %674 = vmatpush2.xpose.msra.mxu0 0.0
      %675 = vmatprep.mubr.f32.mxu0 0.0
      %676 = vmatmul.mubr.f32.gmra.mxu0 %v607
      %v677 = vpop.f32.mrf.mxu0
      %v678 = vadd.f32 0.0, %v677
      %v679 = vpop.f32.mrf.mxu0
      %680 = vdwg.mxu0
      %v681 = vmul.f32 %v678, 0.35355338
      %v682 = vsel %vm437, %v681, -inf
      %683 = vmax.xlane.f32.xlu0 %v682
      %v684 = vpop.xlane.xlu0 %683
      %v685 = vsub.f32 %v681, %v684
      %v686 = vmul.f32 %v685, 1.442695
      %v687 = vpow.pop %v686
      %v688 = vsel %vm437, %v687, 0.0
      %689 = vadd.xlane.f32.xlu0 %v688
      %v690 = vpop.xlane.xlu0 %689
      %v691 = vrcp.pop %v690
      %v692 = vmul.f32 %v687, %v691
      %693 = vrot.lane.b32.xlu0 %v434, 104
      %v694 = vpop.permute.xlu0 %693
      %v697 = vsel %vm437, %v692, 0
      %699 = vmatprep.subr.mxu0 0.0
      %700 = vmatpush1.msra.mxu0 0.0
      %701 = vmatprep.subr.mxu0 0.0
      %702 = vmatpush1.msra.mxu0 0.0
      %703 = vmatprep.subr.mxu0 0.0
      %704 = vmatpush1.msra.mxu0 0.0
      %705 = vmatprep.subr.mxu0 0.0
      %706 = vmatpush1.msra.mxu0 0.0
      %707 = vmatprep.subr.mxu0 0.0
      %708 = vmatpush1.msra.mxu0 0.0
      %709 = vmatprep.subr.mxu0 0.0
      %710 = vmatpush1.msra.mxu0 0.0
      %711 = vmatprep.subr.mxu0 0.0
      %712 = vmatpush1.msra.mxu0 0.0
      %713 = vmatprep.subr.mxu0 0.0
      %714 = vmatpush1.msra.mxu0 0.0
      %715 = vmatprep.subr.mxu0 0.0
      %716 = vmatpush1.msra.mxu0 0.0
      %717 = vmatprep.subr.mxu0 0.0
      %718 = vmatpush1.msra.mxu0 0.0
      %719 = vmatprep.subr.mxu0 0.0
      %720 = vmatpush1.msra.mxu0 0.0
      %721 = vmatprep.subr.mxu0 0.0
      %722 = vmatpush1.msra.mxu0 0.0
      %723 = vmatprep.subr.mxu0 0.0
      %724 = vmatpush1.msra.mxu0 0.0
      %725 = vmatprep.subr.mxu0 0.0
      %726 = vmatpush1.msra.mxu0 0.0
      %727 = vmatprep.subr.mxu0 0.0
      %728 = vmatpush1.msra.mxu0 0.0
      %729 = vmatprep.subr.mxu0 0.0
      %730 = vmatpush1.msra.mxu0 %v694
      %731 = vmatprep.subr.mxu0 0.0
      %732 = vmatpush2.msra.mxu0 0.0
      %733 = vmatprep.subr.mxu0 0.0
      %734 = vmatpush2.msra.mxu0 0.0
      %735 = vmatprep.subr.mxu0 0.0
      %736 = vmatpush2.msra.mxu0 0.0
      %737 = vmatprep.subr.mxu0 0.0
      %738 = vmatpush2.msra.mxu0 0.0
      %739 = vmatprep.subr.mxu0 0.0
      %740 = vmatpush2.msra.mxu0 0.0
      %741 = vmatprep.subr.mxu0 0.0
      %742 = vmatpush2.msra.mxu0 0.0
      %743 = vmatprep.subr.mxu0 0.0
      %744 = vmatpush2.msra.mxu0 0.0
      %745 = vmatprep.subr.mxu0 0.0
      %746 = vmatpush2.msra.mxu0 0.0
      %747 = vmatprep.subr.mxu0 0.0
      %748 = vmatpush2.msra.mxu0 0.0
      %749 = vmatprep.subr.mxu0 0.0
      %750 = vmatpush2.msra.mxu0 0.0
      %751 = vmatprep.subr.mxu0 0.0
      %752 = vmatpush2.msra.mxu0 0.0
      %753 = vmatprep.subr.mxu0 0.0
      %754 = vmatpush2.msra.mxu0 0.0
      %755 = vmatprep.subr.mxu0 0.0
      %756 = vmatpush2.msra.mxu0 0.0
      %757 = vmatprep.subr.mxu0 0.0
      %758 = vmatpush2.msra.mxu0 0.0
      %759 = vmatprep.subr.mxu0 0.0
      %760 = vmatpush2.msra.mxu0 0.0
      %761 = vmatprep.subr.mxu0 0.0
      %762 = vmatpush2.msra.mxu0 0.0
      %763 = vmatprep.mubr.f32.mxu0 0.0
      %764 = vmatmul.mubr.f32.gmra.mxu0 %v697
      %v765 = vpop.f32.mrf.mxu0
      %v766 = vadd.f32 0.0, %v765
      %v767 = vpop.f32.mrf.mxu0
      %768 = vdwg.mxu0
      %s769 = scalar_lea.vmem %s265, 8
      %770 = vst.msk [vmem:[%s769] sm:$0xff] %vm437, %v766
      %771 = vrot.lane.b32.xlu0 %v349, 112
      %v772 = vpop.permute.xlu0 %771
      %773 = vrot.lane.b32.xlu0 %v434, 96
      %v774 = vpop.permute.xlu0 %773
      %v775 = vsel %vm437, %v772, 0
      %v777 = vsel %vm437, %v774, 0
      %779 = vmatprep.subr.mxu0 0.0
      %780 = vmatpush1.xpose.msra.mxu0 0.0
      %781 = vmatprep.subr.mxu0 0.0
      %782 = vmatpush1.xpose.msra.mxu0 0.0
      %783 = vmatprep.subr.mxu0 0.0
      %784 = vmatpush1.xpose.msra.mxu0 0.0
      %785 = vmatprep.subr.mxu0 0.0
      %786 = vmatpush1.xpose.msra.mxu0 0.0
      %787 = vmatprep.subr.mxu0 0.0
      %788 = vmatpush1.xpose.msra.mxu0 0.0
      %789 = vmatprep.subr.mxu0 0.0
      %790 = vmatpush1.xpose.msra.mxu0 0.0
      %791 = vmatprep.subr.mxu0 0.0
      %792 = vmatpush1.xpose.msra.mxu0 0.0
      %793 = vmatprep.subr.mxu0 0.0
      %794 = vmatpush1.xpose.msra.mxu0 0.0
      %795 = vmatprep.subr.mxu0 0.0
      %796 = vmatpush1.xpose.msra.mxu0 0.0
      %797 = vmatprep.subr.mxu0 0.0
      %798 = vmatpush1.xpose.msra.mxu0 0.0
      %799 = vmatprep.subr.mxu0 0.0
      %800 = vmatpush1.xpose.msra.mxu0 0.0
      %801 = vmatprep.subr.mxu0 0.0
      %802 = vmatpush1.xpose.msra.mxu0 0.0
      %803 = vmatprep.subr.mxu0 0.0
      %804 = vmatpush1.xpose.msra.mxu0 0.0
      %805 = vmatprep.subr.mxu0 0.0
      %806 = vmatpush1.xpose.msra.mxu0 0.0
      %807 = vmatprep.subr.mxu0 0.0
      %808 = vmatpush1.xpose.msra.mxu0 0.0
      %809 = vmatprep.subr.mxu0 0.0
      %810 = vmatpush1.xpose.msra.mxu0 %v777
      %811 = vmatprep.subr.mxu0 0.0
      %812 = vmatpush2.xpose.msra.mxu0 0.0
      %813 = vmatprep.subr.mxu0 0.0
      %814 = vmatpush2.xpose.msra.mxu0 0.0
      %815 = vmatprep.subr.mxu0 0.0
      %816 = vmatpush2.xpose.msra.mxu0 0.0
      %817 = vmatprep.subr.mxu0 0.0
      %818 = vmatpush2.xpose.msra.mxu0 0.0
      %819 = vmatprep.subr.mxu0 0.0
      %820 = vmatpush2.xpose.msra.mxu0 0.0
      %821 = vmatprep.subr.mxu0 0.0
      %822 = vmatpush2.xpose.msra.mxu0 0.0
      %823 = vmatprep.subr.mxu0 0.0
      %824 = vmatpush2.xpose.msra.mxu0 0.0
      %825 = vmatprep.subr.mxu0 0.0
      %826 = vmatpush2.xpose.msra.mxu0 0.0
      %827 = vmatprep.subr.mxu0 0.0
      %828 = vmatpush2.xpose.msra.mxu0 0.0
      %829 = vmatprep.subr.mxu0 0.0
      %830 = vmatpush2.xpose.msra.mxu0 0.0
      %831 = vmatprep.subr.mxu0 0.0
      %832 = vmatpush2.xpose.msra.mxu0 0.0
      %833 = vmatprep.subr.mxu0 0.0
      %834 = vmatpush2.xpose.msra.mxu0 0.0
      %835 = vmatprep.subr.mxu0 0.0
      %836 = vmatpush2.xpose.msra.mxu0 0.0
      %837 = vmatprep.subr.mxu0 0.0
      %838 = vmatpush2.xpose.msra.mxu0 0.0
      %839 = vmatprep.subr.mxu0 0.0
      %840 = vmatpush2.xpose.msra.mxu0 0.0
      %841 = vmatprep.subr.mxu0 0.0
      %842 = vmatpush2.xpose.msra.mxu0 0.0
      %843 = vmatprep.mubr.f32.mxu0 0.0
      %844 = vmatmul.mubr.f32.gmra.mxu0 %v775
      %v845 = vpop.f32.mrf.mxu0
      %v846 = vadd.f32 0.0, %v845
      %v847 = vpop.f32.mrf.mxu0
      %848 = vdwg.mxu0
      %v849 = vmul.f32 %v846, 0.35355338
      %v850 = vsel %vm437, %v849, -inf
      %851 = vmax.xlane.f32.xlu0 %v850
      %v852 = vpop.xlane.xlu0 %851
      %v853 = vsub.f32 %v849, %v852
      %v854 = vmul.f32 %v853, 1.442695
      %v855 = vpow.pop %v854
      %v856 = vsel %vm437, %v855, 0.0
      %857 = vadd.xlane.f32.xlu0 %v856
      %v858 = vpop.xlane.xlu0 %857
      %v859 = vrcp.pop %v858
      %v860 = vmul.f32 %v855, %v859
      %861 = vrot.lane.b32.xlu0 %v434, 88
      %v862 = vpop.permute.xlu0 %861
      %v865 = vsel %vm437, %v860, 0
      %867 = vmatprep.subr.mxu0 0.0
      %868 = vmatpush1.msra.mxu0 0.0
      %869 = vmatprep.subr.mxu0 0.0
      %870 = vmatpush1.msra.mxu0 0.0
      %871 = vmatprep.subr.mxu0 0.0
      %872 = vmatpush1.msra.mxu0 0.0
      %873 = vmatprep.subr.mxu0 0.0
      %874 = vmatpush1.msra.mxu0 0.0
      %875 = vmatprep.subr.mxu0 0.0
      %876 = vmatpush1.msra.mxu0 0.0
      %877 = vmatprep.subr.mxu0 0.0
      %878 = vmatpush1.msra.mxu0 0.0
      %879 = vmatprep.subr.mxu0 0.0
      %880 = vmatpush1.msra.mxu0 0.0
      %881 = vmatprep.subr.mxu0 0.0
      %882 = vmatpush1.msra.mxu0 0.0
      %883 = vmatprep.subr.mxu0 0.0
      %884 = vmatpush1.msra.mxu0 0.0
      %885 = vmatprep.subr.mxu0 0.0
      %886 = vmatpush1.msra.mxu0 0.0
      %887 = vmatprep.subr.mxu0 0.0
      %888 = vmatpush1.msra.mxu0 0.0
      %889 = vmatprep.subr.mxu0 0.0
      %890 = vmatpush1.msra.mxu0 0.0
      %891 = vmatprep.subr.mxu0 0.0
      %892 = vmatpush1.msra.mxu0 0.0
      %893 = vmatprep.subr.mxu0 0.0
      %894 = vmatpush1.msra.mxu0 0.0
      %895 = vmatprep.subr.mxu0 0.0
      %896 = vmatpush1.msra.mxu0 0.0
      %897 = vmatprep.subr.mxu0 0.0
      %898 = vmatpush1.msra.mxu0 %v862
      %899 = vmatprep.subr.mxu0 0.0
      %900 = vmatpush2.msra.mxu0 0.0
      %901 = vmatprep.subr.mxu0 0.0
      %902 = vmatpush2.msra.mxu0 0.0
      %903 = vmatprep.subr.mxu0 0.0
      %904 = vmatpush2.msra.mxu0 0.0
      %905 = vmatprep.subr.mxu0 0.0
      %906 = vmatpush2.msra.mxu0 0.0
      %907 = vmatprep.subr.mxu0 0.0
      %908 = vmatpush2.msra.mxu0 0.0
      %909 = vmatprep.subr.mxu0 0.0
      %910 = vmatpush2.msra.mxu0 0.0
      %911 = vmatprep.subr.mxu0 0.0
      %912 = vmatpush2.msra.mxu0 0.0
      %913 = vmatprep.subr.mxu0 0.0
      %914 = vmatpush2.msra.mxu0 0.0
      %915 = vmatprep.subr.mxu0 0.0
      %916 = vmatpush2.msra.mxu0 0.0
      %917 = vmatprep.subr.mxu0 0.0
      %918 = vmatpush2.msra.mxu0 0.0
      %919 = vmatprep.subr.mxu0 0.0
      %920 = vmatpush2.msra.mxu0 0.0
      %921 = vmatprep.subr.mxu0 0.0
      %922 = vmatpush2.msra.mxu0 0.0
      %923 = vmatprep.subr.mxu0 0.0
      %924 = vmatpush2.msra.mxu0 0.0
      %925 = vmatprep.subr.mxu0 0.0
      %926 = vmatpush2.msra.mxu0 0.0
      %927 = vmatprep.subr.mxu0 0.0
      %928 = vmatpush2.msra.mxu0 0.0
      %929 = vmatprep.subr.mxu0 0.0
      %930 = vmatpush2.msra.mxu0 0.0
      %931 = vmatprep.mubr.f32.mxu0 0.0
      %932 = vmatmul.mubr.f32.gmra.mxu0 %v865
      %v933 = vpop.f32.mrf.mxu0
      %v934 = vadd.f32 0.0, %v933
      %v935 = vpop.f32.mrf.mxu0
      %936 = vdwg.mxu0
      %s937 = scalar_lea.vmem %s265, 16
      %938 = vst.msk [vmem:[%s937] sm:$0xff] %vm437, %v934
      %939 = vrot.lane.b32.xlu0 %v349, 104
      %v940 = vpop.permute.xlu0 %939
      %941 = vrot.lane.b32.xlu0 %v434, 80
      %v942 = vpop.permute.xlu0 %941
      %v943 = vsel %vm437, %v940, 0
      %v945 = vsel %vm437, %v942, 0
      %947 = vmatprep.subr.mxu0 0.0
      %948 = vmatpush1.xpose.msra.mxu0 0.0
      %949 = vmatprep.subr.mxu0 0.0
      %950 = vmatpush1.xpose.msra.mxu0 0.0
      %951 = vmatprep.subr.mxu0 0.0
      %952 = vmatpush1.xpose.msra.mxu0 0.0
      %953 = vmatprep.subr.mxu0 0.0
      %954 = vmatpush1.xpose.msra.mxu0 0.0
      %955 = vmatprep.subr.mxu0 0.0
      %956 = vmatpush1.xpose.msra.mxu0 0.0
      %957 = vmatprep.subr.mxu0 0.0
      %958 = vmatpush1.xpose.msra.mxu0 0.0
      %959 = vmatprep.subr.mxu0 0.0
      %960 = vmatpush1.xpose.msra.mxu0 0.0
      %961 = vmatprep.subr.mxu0 0.0
      %962 = vmatpush1.xpose.msra.mxu0 0.0
      %963 = vmatprep.subr.mxu0 0.0
      %964 = vmatpush1.xpose.msra.mxu0 0.0
      %965 = vmatprep.subr.mxu0 0.0
      %966 = vmatpush1.xpose.msra.mxu0 0.0
      %967 = vmatprep.subr.mxu0 0.0
      %968 = vmatpush1.xpose.msra.mxu0 0.0
      %969 = vmatprep.subr.mxu0 0.0
      %970 = vmatpush1.xpose.msra.mxu0 0.0
      %971 = vmatprep.subr.mxu0 0.0
      %972 = vmatpush1.xpose.msra.mxu0 0.0
      %973 = vmatprep.subr.mxu0 0.0
      %974 = vmatpush1.xpose.msra.mxu0 0.0
      %975 = vmatprep.subr.mxu0 0.0
      %976 = vmatpush1.xpose.msra.mxu0 0.0
      %977 = vmatprep.subr.mxu0 0.0
      %978 = vmatpush1.xpose.msra.mxu0 %v945
      %979 = vmatprep.subr.mxu0 0.0
      %980 = vmatpush2.xpose.msra.mxu0 0.0
      %981 = vmatprep.subr.mxu0 0.0
      %982 = vmatpush2.xpose.msra.mxu0 0.0
      %983 = vmatprep.subr.mxu0 0.0
      %984 = vmatpush2.xpose.msra.mxu0 0.0
      %985 = vmatprep.subr.mxu0 0.0
      %986 = vmatpush2.xpose.msra.mxu0 0.0
      %987 = vmatprep.subr.mxu0 0.0
      %988 = vmatpush2.xpose.msra.mxu0 0.0
      %989 = vmatprep.subr.mxu0 0.0
      %990 = vmatpush2.xpose.msra.mxu0 0.0
      %991 = vmatprep.subr.mxu0 0.0
      %992 = vmatpush2.xpose.msra.mxu0 0.0
      %993 = vmatprep.subr.mxu0 0.0
      %994 = vmatpush2.xpose.msra.mxu0 0.0
      %995 = vmatprep.subr.mxu0 0.0
      %996 = vmatpush2.xpose.msra.mxu0 0.0
      %997 = vmatprep.subr.mxu0 0.0
      %998 = vmatpush2.xpose.msra.mxu0 0.0
      %999 = vmatprep.subr.mxu0 0.0
      %1000 = vmatpush2.xpose.msra.mxu0 0.0
      %1001 = vmatprep.subr.mxu0 0.0
      %1002 = vmatpush2.xpose.msra.mxu0 0.0
      %1003 = vmatprep.subr.mxu0 0.0
      %1004 = vmatpush2.xpose.msra.mxu0 0.0
      %1005 = vmatprep.subr.mxu0 0.0
      %1006 = vmatpush2.xpose.msra.mxu0 0.0
      %1007 = vmatprep.subr.mxu0 0.0
      %1008 = vmatpush2.xpose.msra.mxu0 0.0
      %1009 = vmatprep.subr.mxu0 0.0
      %1010 = vmatpush2.xpose.msra.mxu0 0.0
      %1011 = vmatprep.mubr.f32.mxu0 0.0
      %1012 = vmatmul.mubr.f32.gmra.mxu0 %v943
      %v1013 = vpop.f32.mrf.mxu0
      %v1014 = vadd.f32 0.0, %v1013
      %v1015 = vpop.f32.mrf.mxu0
      %1016 = vdwg.mxu0
      %v1017 = vmul.f32 %v1014, 0.35355338
      %v1018 = vsel %vm437, %v1017, -inf
      %1019 = vmax.xlane.f32.xlu0 %v1018
      %v1020 = vpop.xlane.xlu0 %1019
      %v1021 = vsub.f32 %v1017, %v1020
      %v1022 = vmul.f32 %v1021, 1.442695
      %v1023 = vpow.pop %v1022
      %v1024 = vsel %vm437, %v1023, 0.0
      %1025 = vadd.xlane.f32.xlu0 %v1024
      %v1026 = vpop.xlane.xlu0 %1025
      %v1027 = vrcp.pop %v1026
      %v1028 = vmul.f32 %v1023, %v1027
      %1029 = vrot.lane.b32.xlu0 %v434, 72
      %v1030 = vpop.permute.xlu0 %1029
      %v1033 = vsel %vm437, %v1028, 0
      %1035 = vmatprep.subr.mxu0 0.0
      %1036 = vmatpush1.msra.mxu0 0.0
      %1037 = vmatprep.subr.mxu0 0.0
      %1038 = vmatpush1.msra.mxu0 0.0
      %1039 = vmatprep.subr.mxu0 0.0
      %1040 = vmatpush1.msra.mxu0 0.0
      %1041 = vmatprep.subr.mxu0 0.0
      %1042 = vmatpush1.msra.mxu0 0.0
      %1043 = vmatprep.subr.mxu0 0.0
      %1044 = vmatpush1.msra.mxu0 0.0
      %1045 = vmatprep.subr.mxu0 0.0
      %1046 = vmatpush1.msra.mxu0 0.0
      %1047 = vmatprep.subr.mxu0 0.0
      %1048 = vmatpush1.msra.mxu0 0.0
      %1049 = vmatprep.subr.mxu0 0.0
      %1050 = vmatpush1.msra.mxu0 0.0
      %1051 = vmatprep.subr.mxu0 0.0
      %1052 = vmatpush1.msra.mxu0 0.0
      %1053 = vmatprep.subr.mxu0 0.0
      %1054 = vmatpush1.msra.mxu0 0.0
      %1055 = vmatprep.subr.mxu0 0.0
      %1056 = vmatpush1.msra.mxu0 0.0
      %1057 = vmatprep.subr.mxu0 0.0
      %1058 = vmatpush1.msra.mxu0 0.0
      %1059 = vmatprep.subr.mxu0 0.0
      %1060 = vmatpush1.msra.mxu0 0.0
      %1061 = vmatprep.subr.mxu0 0.0
      %1062 = vmatpush1.msra.mxu0 0.0
      %1063 = vmatprep.subr.mxu0 0.0
      %1064 = vmatpush1.msra.mxu0 0.0
      %1065 = vmatprep.subr.mxu0 0.0
      %1066 = vmatpush1.msra.mxu0 %v1030
      %1067 = vmatprep.subr.mxu0 0.0
      %1068 = vmatpush2.msra.mxu0 0.0
      %1069 = vmatprep.subr.mxu0 0.0
      %1070 = vmatpush2.msra.mxu0 0.0
      %1071 = vmatprep.subr.mxu0 0.0
      %1072 = vmatpush2.msra.mxu0 0.0
      %1073 = vmatprep.subr.mxu0 0.0
      %1074 = vmatpush2.msra.mxu0 0.0
      %1075 = vmatprep.subr.mxu0 0.0
      %1076 = vmatpush2.msra.mxu0 0.0
      %1077 = vmatprep.subr.mxu0 0.0
      %1078 = vmatpush2.msra.mxu0 0.0
      %1079 = vmatprep.subr.mxu0 0.0
      %1080 = vmatpush2.msra.mxu0 0.0
      %1081 = vmatprep.subr.mxu0 0.0
      %1082 = vmatpush2.msra.mxu0 0.0
      %1083 = vmatprep.subr.mxu0 0.0
      %1084 = vmatpush2.msra.mxu0 0.0
      %1085 = vmatprep.subr.mxu0 0.0
      %1086 = vmatpush2.msra.mxu0 0.0
      %1087 = vmatprep.subr.mxu0 0.0
      %1088 = vmatpush2.msra.mxu0 0.0
      %1089 = vmatprep.subr.mxu0 0.0
      %1090 = vmatpush2.msra.mxu0 0.0
      %1091 = vmatprep.subr.mxu0 0.0
      %1092 = vmatpush2.msra.mxu0 0.0
      %1093 = vmatprep.subr.mxu0 0.0
      %1094 = vmatpush2.msra.mxu0 0.0
      %1095 = vmatprep.subr.mxu0 0.0
      %1096 = vmatpush2.msra.mxu0 0.0
      %1097 = vmatprep.subr.mxu0 0.0
      %1098 = vmatpush2.msra.mxu0 0.0
      %1099 = vmatprep.mubr.f32.mxu0 0.0
      %1100 = vmatmul.mubr.f32.gmra.mxu0 %v1033
      %v1101 = vpop.f32.mrf.mxu0
      %v1102 = vadd.f32 0.0, %v1101
      %v1103 = vpop.f32.mrf.mxu0
      %1104 = vdwg.mxu0
      %s1105 = scalar_lea.vmem %s265, 24
      %1106 = vst.msk [vmem:[%s1105] sm:$0xff] %vm437, %v1102
      %p1107 = scmp.lt.s32.totalorder %s17, 1
      %s1108 = scalar_select %p1107, %s17, 1
      %s1109 = smul.addr %s1108, 4
      %s1110 = smul.addr %s1109, 8
      %s1111 = scalar_lea.vmem %s6, %s1110
      // Predicated region
      $region45: #{decoder_forward.17} parent=43 // pred_check
        %p1112 = pneg %p171
      $region46: #{decoder_forward.17} parent=43 // pred_check_branch
        %1114 = sbr.rel (%p1112) target = $region48
      $region47: #{decoder_forward.17} parent=43 // pred_region
        _
      $region48: #{decoder_forward.17} parent=43 // pred_fallthru
        _
    $region44: #{decoder_forward.17} parent=5 // pred_fallthru
      _
    %p1115 = scmp.le.s32.totalorder 2, %s12
    // Predicated region
    $region49: #{decoder_forward.17} parent=5 // pred_check
      %p1116 = pneg %p1115
    $region50: #{decoder_forward.17} parent=5 // pred_check_branch
      %1118 = sbr.rel (%p1116) target = $region52
    $region51: #{decoder_forward.17} parent=5 // pred_region
      %s1119 = ssub.s32 %s12, 2
      // Predicated region
      $region53: #{decoder_forward.17} parent=51 // pred_check
        %p1120 = pneg %p177
      $region54: #{decoder_forward.17} parent=51 // pred_check_branch
        %1122 = sbr.rel (%p1120) target = $region56
      $region55: #{decoder_forward.17} parent=51 // pred_region
        %p1123 = scmp.lt.s32.totalorder %s18, 1
        %s1124 = scalar_select %p1123, %s18, 1
        %s1125 = smul.addr %s1124, 4
        %s1126 = smul.addr %s1125, 8
        %s1127 = scalar_lea.vmem %s6, %s1126
      $region56: #{decoder_forward.17} parent=51 // pred_fallthru
        _
    $region52: #{decoder_forward.17} parent=5 // pred_fallthru
      _
  $region6: #{decoder_forward.17} parent=0 // loop_footer
    %s16 = sadd.s32 1, %s12
  $region7: #{decoder_forward.17} parent=0 // loop_footer_branch
    %11 = sbr.rel target = $region3
  $region8: #{decoder_forward.17} parent=0 // loop_exit
    _

// kernel: decoder_forward.21
$region0: #{decoder_forward.21}
  #allocation0 [shape = 'u32[]', space=smem, size = 0x4, offset = 0x4, fixed_abs, tag = 'smem constant byte address 0x4 - core index']
  #allocation1 [shape = 'u32[144,128]{1,0:T(1,128)}', space=vmem, size = 0x12000, scoped, tag = 'internal scratch']
  #allocation2 [shape = 'f32[16,32]{1,0:T(8,128)}', space=vmem, size = 0x2000, scoped, tag = 'scratch operand']
  %s0 = inlined_call_operand.vmem [shape: f32[16,32], index: 0, kind: input, shape index: {}]
  %s1 = inlined_call_operand.vmem [shape: f32[32,32], index: 1, kind: input, shape index: {}]
  %s2 = inlined_call_operand.vmem [shape: f32[1,32], index: 2, kind: input, shape index: {}]
  %s3 = inlined_call_operand.vmem [shape: f32[16,32], index: 3, kind: output, shape index: {}]
  %s4 = sld [smem:[#allocation0]]
  $region30: #{decoder_forward.21} parent=0
    _
  %s6 = ssub.s32 1, %s4
  %s7 = scalar_select 0, %s6, %s4
  // Predicated region
  $region2: #{decoder_forward.21} parent=0 // pred_check
    _
  $region3: #{decoder_forward.21} parent=0 // pred_check_branch
    %9 = sbr.rel (0) target = $region5
  $region4: #{decoder_forward.21} parent=0 // pred_region
    _
  $region5: #{decoder_forward.21} parent=0 // pred_fallthru
    _
  // Predicated region
  $region6: #{decoder_forward.21} parent=0 // pred_check
    _
  $region7: #{decoder_forward.21} parent=0 // pred_check_branch
    %11 = sbr.rel (0) target = $region9
  $region8: #{decoder_forward.21} parent=0 // pred_region
    _
  $region9: #{decoder_forward.21} parent=0 // pred_fallthru
    _
  // Predicated region
  $region10: #{decoder_forward.21} parent=0 // pred_check
    _
  $region11: #{decoder_forward.21} parent=0 // pred_check_branch
    %13 = sbr.rel (0) target = $region13
  $region12: #{decoder_forward.21} parent=0 // pred_region
    _
  $region13: #{decoder_forward.21} parent=0 // pred_fallthru
    _
  %p14 = scmp.eq.s32.totalorder 0, 0
  // Predicated region
  $region14: #{decoder_forward.21} parent=0 // pred_check
    %p15 = pneg %p14
  $region15: #{decoder_forward.21} parent=0 // pred_check_branch
    %17 = sbr.rel (%p15) target = $region17
  $region16: #{decoder_forward.21} parent=0 // pred_region
    %vm18 = vcmask 261120
    %19 = vst.msk [vmem:[#allocation2] sm:$0xff] %vm18, 0.0
    %20 = vst.msk [vmem:[#allocation2 + $0x8] sm:$0xff] %vm18, 0.0
  $region17: #{decoder_forward.21} parent=0 // pred_fallthru
    _
  %v21 = vld [vmem:[#allocation2] sm:$0xff]
  %v22 = vld [vmem:[#allocation2 + $0x8] sm:$0xff]
  %v23 = vld [vmem:[%s0] sm:$0xff]
  %v24 = vld [vmem:[%s0 + $0x8] sm:$0xff]
  %v25 = vld [vmem:[%s1] sm:$0xff]
  %v26 = vld [vmem:[%s1 + $0x8] sm:$0xff]
  %v27 = vld [vmem:[%s1 + $0x10] sm:$0xff]
  %v28 = vld [vmem:[%s1 + $0x18] sm:$0xff]
  %vm29 = vcmask 261120
  %v31 = vsel %vm29, %v23, 0
  %v34 = vsel %vm29, %v24, 0
  %36 = vmatprep.subr.mxu0 0.0
  %37 = vmatpush1.msra.mxu0 0.0
  %38 = vmatprep.subr.mxu0 0.0
  %39 = vmatpush1.msra.mxu0 0.0
  %40 = vmatprep.subr.mxu0 0.0
  %41 = vmatpush1.msra.mxu0 0.0
  %42 = vmatprep.subr.mxu0 0.0
  %43 = vmatpush1.msra.mxu0 0.0
  %44 = vmatprep.subr.mxu0 0.0
  %45 = vmatpush1.msra.mxu0 0.0
  %46 = vmatprep.subr.mxu0 0.0
  %47 = vmatpush1.msra.mxu0 0.0
  %48 = vmatprep.subr.mxu0 0.0
  %49 = vmatpush1.msra.mxu0 0.0
  %50 = vmatprep.subr.mxu0 0.0
  %51 = vmatpush1.msra.mxu0 0.0
  %52 = vmatprep.subr.mxu0 0.0
  %53 = vmatpush1.msra.mxu0 0.0
  %54 = vmatprep.subr.mxu0 0.0
  %55 = vmatpush1.msra.mxu0 0.0
  %56 = vmatprep.subr.mxu0 0.0
  %57 = vmatpush1.msra.mxu0 0.0
  %58 = vmatprep.subr.mxu0 0.0
  %59 = vmatpush1.msra.mxu0 0.0
  %60 = vmatprep.subr.mxu0 0.0
  %61 = vmatpush1.msra.mxu0 %v28
  %62 = vmatprep.subr.mxu0 0.0
  %63 = vmatpush1.msra.mxu0 %v27
  %64 = vmatprep.subr.mxu0 0.0
  %65 = vmatpush1.msra.mxu0 %v26
  %66 = vmatprep.subr.mxu0 0.0
  %67 = vmatpush1.msra.mxu0 %v25
  %68 = vmatprep.subr.mxu0 0.0
  %69 = vmatpush2.msra.mxu0 0.0
  %70 = vmatprep.subr.mxu0 0.0
  %71 = vmatpush2.msra.mxu0 0.0
  %72 = vmatprep.subr.mxu0 0.0
  %73 = vmatpush2.msra.mxu0 0.0
  %74 = vmatprep.subr.mxu0 0.0
  %75 = vmatpush2.msra.mxu0 0.0
  %76 = vmatprep.subr.mxu0 0.0
  %77 = vmatpush2.msra.mxu0 0.0
  %78 = vmatprep.subr.mxu0 0.0
  %79 = vmatpush2.msra.mxu0 0.0
  %80 = vmatprep.subr.mxu0 0.0
  %81 = vmatpush2.msra.mxu0 0.0
  %82 = vmatprep.subr.mxu0 0.0
  %83 = vmatpush2.msra.mxu0 0.0
  %84 = vmatprep.subr.mxu0 0.0
  %85 = vmatpush2.msra.mxu0 0.0
  %86 = vmatprep.subr.mxu0 0.0
  %87 = vmatpush2.msra.mxu0 0.0
  %88 = vmatprep.subr.mxu0 0.0
  %89 = vmatpush2.msra.mxu0 0.0
  %90 = vmatprep.subr.mxu0 0.0
  %91 = vmatpush2.msra.mxu0 0.0
  %92 = vmatprep.subr.mxu0 0.0
  %93 = vmatpush2.msra.mxu0 0.0
  %94 = vmatprep.subr.mxu0 0.0
  %95 = vmatpush2.msra.mxu0 0.0
  %96 = vmatprep.subr.mxu0 0.0
  %97 = vmatpush2.msra.mxu0 0.0
  %98 = vmatprep.subr.mxu0 0.0
  %99 = vmatpush2.msra.mxu0 0.0
  %100 = vmatprep.mubr.f32.mxu0 0.0
  %101 = vmatmul.mubr.f32.gmra.mxu0 %v31
  %v102 = vpop.f32.mrf.mxu0
  %v103 = vadd.f32 0.0, %v102
  %v104 = vpop.f32.mrf.mxu0
  %105 = vmatprep.mubr.f32.mxu0 0.0
  %106 = vmatmul.mubr.f32.gmra.mxu0 %v34
  %v107 = vpop.f32.mrf.mxu0
  %v108 = vadd.f32 0.0, %v107
  %v109 = vpop.f32.mrf.mxu0
  %110 = vdwg.mxu0
  %v111 = vadd.f32 %v21, %v103
  %v112 = vadd.f32 %v22, %v108
  %113 = vst.msk [vmem:[#allocation2] sm:$0xff] %vm29, %v111
  %114 = vst.msk [vmem:[#allocation2 + $0x8] sm:$0xff] %vm29, %v112
  // Predicated region
  $region18: #{decoder_forward.21} parent=0 // pred_check
    %p115 = pneg %p14
  $region19: #{decoder_forward.21} parent=0 // pred_check_branch
    %117 = sbr.rel (%p115) target = $region21
  $region20: #{decoder_forward.21} parent=0 // pred_region
    %v118 = vld [vmem:[#allocation2] sm:$0xff]
    %v119 = vld [vmem:[#allocation2 + $0x8] sm:$0xff]
    %v120 = vld [vmem:[%s2] sm:$0x1]
    %v122 = vlaneseq
    %v123 = vshrl.u32 %v122, 7
    %v124 = vsub.s32 0, %v123
    %v125 = vrot.slane %v120, %v124
    %v127 = vadd.f32 %v118, %v125
    %v128 = vadd.f32 %v119, %v125
    %129 = vst.msk [vmem:[%s3] sm:$0xff] %vm29, %v127
    %130 = vst.msk [vmem:[%s3 + $0x8] sm:$0xff] %vm29, %v128
  $region21: #{decoder_forward.21} parent=0 // pred_fallthru
    _
  // Predicated region
  $region22: #{decoder_forward.21} parent=0 // pred_check
    _
  $region23: #{decoder_forward.21} parent=0 // pred_check_branch
    %132 = sbr.rel (0) target = $region25
  $region24: #{decoder_forward.21} parent=0 // pred_region
    _
  $region25: #{decoder_forward.21} parent=0 // pred_fallthru
    _
  // Predicated region
  $region26: #{decoder_forward.21} parent=0 // pred_check
    _
  $region27: #{decoder_forward.21} parent=0 // pred_check_branch
    %134 = sbr.rel (0) target = $region29
  $region28: #{decoder_forward.21} parent=0 // pred_region
    _
  $region29: #{decoder_forward.21} parent=0 // pred_fallthru
    _

// kernel: decoder_forward.20
$region0: #{decoder_forward.20}
  #allocation0 [shape = 'u32[]', space=smem, size = 0x4, offset = 0x4, fixed_abs, tag = 'smem constant byte address 0x4 - core index']
  #allocation1 [shape = 'u32[144,128]{1,0:T(1,128)}', space=vmem, size = 0x12000, scoped, tag = 'internal scratch']
  #allocation2 [shape = 'f32[16,32]{1,0:T(8,128)}', space=vmem, size = 0x2000, scoped, tag = 'scratch operand']
  %s0 = inlined_call_operand.vmem [shape: f32[16,64], index: 0, kind: input, shape index: {}]
  %s1 = inlined_call_operand.vmem [shape: f32[64,32], index: 1, kind: input, shape index: {}]
  %s2 = inlined_call_operand.vmem [shape: f32[1,32], index: 2, kind: input, shape index: {}]
  %s3 = inlined_call_operand.vmem [shape: f32[16,32], index: 3, kind: input, shape index: {}]
  %s4 = inlined_call_operand.vmem [shape: f32[1,32], index: 4, kind: input, shape index: {}]
  %s5 = inlined_call_operand.vmem [shape: f32[1,32], index: 5, kind: input, shape index: {}]
  %s6 = inlined_call_operand.vmem [shape: f32[16,32], index: 6, kind: output, shape index: {}]
  %s7 = sld [smem:[#allocation0]]
  $region42: #{decoder_forward.20} parent=0
    _
  %s9 = ssub.s32 1, %s7
  %s10 = scalar_select 0, %s9, %s7
  // Predicated region
  $region2: #{decoder_forward.20} parent=0 // pred_check
    _
  $region3: #{decoder_forward.20} parent=0 // pred_check_branch
    %12 = sbr.rel (0) target = $region5
  $region4: #{decoder_forward.20} parent=0 // pred_region
    _
  $region5: #{decoder_forward.20} parent=0 // pred_fallthru
    _
  // Predicated region
  $region6: #{decoder_forward.20} parent=0 // pred_check
    _
  $region7: #{decoder_forward.20} parent=0 // pred_check_branch
    %14 = sbr.rel (0) target = $region9
  $region8: #{decoder_forward.20} parent=0 // pred_region
    _
  $region9: #{decoder_forward.20} parent=0 // pred_fallthru
    _
  // Predicated region
  $region10: #{decoder_forward.20} parent=0 // pred_check
    _
  $region11: #{decoder_forward.20} parent=0 // pred_check_branch
    %16 = sbr.rel (0) target = $region13
  $region12: #{decoder_forward.20} parent=0 // pred_region
    _
  $region13: #{decoder_forward.20} parent=0 // pred_fallthru
    _
  // Predicated region
  $region14: #{decoder_forward.20} parent=0 // pred_check
    _
  $region15: #{decoder_forward.20} parent=0 // pred_check_branch
    %18 = sbr.rel (0) target = $region17
  $region16: #{decoder_forward.20} parent=0 // pred_region
    _
  $region17: #{decoder_forward.20} parent=0 // pred_fallthru
    _
  // Predicated region
  $region18: #{decoder_forward.20} parent=0 // pred_check
    _
  $region19: #{decoder_forward.20} parent=0 // pred_check_branch
    %20 = sbr.rel (0) target = $region21
  $region20: #{decoder_forward.20} parent=0 // pred_region
    _
  $region21: #{decoder_forward.20} parent=0 // pred_fallthru
    _
  // Predicated region
  $region22: #{decoder_forward.20} parent=0 // pred_check
    _
  $region23: #{decoder_forward.20} parent=0 // pred_check_branch
    %22 = sbr.rel (0) target = $region25
  $region24: #{decoder_forward.20} parent=0 // pred_region
    _
  $region25: #{decoder_forward.20} parent=0 // pred_fallthru
    _
  %p23 = scmp.eq.s32.totalorder 0, 0
  // Predicated region
  $region26: #{decoder_forward.20} parent=0 // pred_check
    %p24 = pneg %p23
  $region27: #{decoder_forward.20} parent=0 // pred_check_branch
    %26 = sbr.rel (%p24) target = $region29
  $region28: #{decoder_forward.20} parent=0 // pred_region
    %vm27 = vcmask 261120
    %28 = vst.msk [vmem:[#allocation2] sm:$0xff] %vm27, 0.0
    %29 = vst.msk [vmem:[#allocation2 + $0x8] sm:$0xff] %vm27, 0.0
  $region29: #{decoder_forward.20} parent=0 // pred_fallthru
    _
  %v30 = vld [vmem:[#allocation2] sm:$0xff]
  %v31 = vld [vmem:[#allocation2 + $0x8] sm:$0xff]
  %v32 = vld [vmem:[%s0] sm:$0xff]
  %v33 = vld [vmem:[%s0 + $0x8] sm:$0xff]
  %v34 = vld [vmem:[%s1] sm:$0xff]
  %v35 = vld [vmem:[%s1 + $0x8] sm:$0xff]
  %v36 = vld [vmem:[%s1 + $0x10] sm:$0xff]
  %v37 = vld [vmem:[%s1 + $0x18] sm:$0xff]
  %v38 = vld [vmem:[%s1 + $0x20] sm:$0xff]
  %v39 = vld [vmem:[%s1 + $0x28] sm:$0xff]
  %v40 = vld [vmem:[%s1 + $0x30] sm:$0xff]
  %v41 = vld [vmem:[%s1 + $0x38] sm:$0xff]
  %vm42 = vcmask 523264
  %v44 = vsel %vm42, %v32, 0
  %v47 = vsel %vm42, %v33, 0
  %49 = vmatprep.subr.mxu0 0.0
  %50 = vmatpush1.msra.mxu0 0.0
  %51 = vmatprep.subr.mxu0 0.0
  %52 = vmatpush1.msra.mxu0 0.0
  %53 = vmatprep.subr.mxu0 0.0
  %54 = vmatpush1.msra.mxu0 0.0
  %55 = vmatprep.subr.mxu0 0.0
  %56 = vmatpush1.msra.mxu0 0.0
  %57 = vmatprep.subr.mxu0 0.0
  %58 = vmatpush1.msra.mxu0 0.0
  %59 = vmatprep.subr.mxu0 0.0
  %60 = vmatpush1.msra.mxu0 0.0
  %61 = vmatprep.subr.mxu0 0.0
  %62 = vmatpush1.msra.mxu0 0.0
  %63 = vmatprep.subr.mxu0 0.0
  %64 = vmatpush1.msra.mxu0 0.0
  %65 = vmatprep.subr.mxu0 0.0
  %66 = vmatpush1.msra.mxu0 %v41
  %67 = vmatprep.subr.mxu0 0.0
  %68 = vmatpush1.msra.mxu0 %v40
  %69 = vmatprep.subr.mxu0 0.0
  %70 = vmatpush1.msra.mxu0 %v39
  %71 = vmatprep.subr.mxu0 0.0
  %72 = vmatpush1.msra.mxu0 %v38
  %73 = vmatprep.subr.mxu0 0.0
  %74 = vmatpush1.msra.mxu0 %v37
  %75 = vmatprep.subr.mxu0 0.0
  %76 = vmatpush1.msra.mxu0 %v36
  %77 = vmatprep.subr.mxu0 0.0
  %78 = vmatpush1.msra.mxu0 %v35
  %79 = vmatprep.subr.mxu0 0.0
  %80 = vmatpush1.msra.mxu0 %v34
  %81 = vmatprep.subr.mxu0 0.0
  %82 = vmatpush2.msra.mxu0 0.0
  %83 = vmatprep.subr.mxu0 0.0
  %84 = vmatpush2.msra.mxu0 0.0
  %85 = vmatprep.subr.mxu0 0.0
  %86 = vmatpush2.msra.mxu0 0.0
  %87 = vmatprep.subr.mxu0 0.0
  %88 = vmatpush2.msra.mxu0 0.0
  %89 = vmatprep.subr.mxu0 0.0
  %90 = vmatpush2.msra.mxu0 0.0
  %91 = vmatprep.subr.mxu0 0.0
  %92 = vmatpush2.msra.mxu0 0.0
  %93 = vmatprep.subr.mxu0 0.0
  %94 = vmatpush2.msra.mxu0 0.0
  %95 = vmatprep.subr.mxu0 0.0
  %96 = vmatpush2.msra.mxu0 0.0
  %97 = vmatprep.subr.mxu0 0.0
  %98 = vmatpush2.msra.mxu0 0.0
  %99 = vmatprep.subr.mxu0 0.0
  %100 = vmatpush2.msra.mxu0 0.0
  %101 = vmatprep.subr.mxu0 0.0
  %102 = vmatpush2.msra.mxu0 0.0
  %103 = vmatprep.subr.mxu0 0.0
  %104 = vmatpush2.msra.mxu0 0.0
  %105 = vmatprep.subr.mxu0 0.0
  %106 = vmatpush2.msra.mxu0 0.0
  %107 = vmatprep.subr.mxu0 0.0
  %108 = vmatpush2.msra.mxu0 0.0
  %109 = vmatprep.subr.mxu0 0.0
  %110 = vmatpush2.msra.mxu0 0.0
  %111 = vmatprep.subr.mxu0 0.0
  %112 = vmatpush2.msra.mxu0 0.0
  %113 = vmatprep.mubr.f32.mxu0 0.0
  %114 = vmatmul.mubr.f32.gmra.mxu0 %v44
  %v115 = vpop.f32.mrf.mxu0
  %v116 = vadd.f32 0.0, %v115
  %v117 = vpop.f32.mrf.mxu0
  %118 = vmatprep.mubr.f32.mxu0 0.0
  %119 = vmatmul.mubr.f32.gmra.mxu0 %v47
  %v120 = vpop.f32.mrf.mxu0
  %v121 = vadd.f32 0.0, %v120
  %v122 = vpop.f32.mrf.mxu0
  %123 = vdwg.mxu0
  %v124 = vadd.f32 %v30, %v116
  %v125 = vadd.f32 %v31, %v121
  %vm126 = vcmask 261120
  %127 = vst.msk [vmem:[#allocation2] sm:$0xff] %vm126, %v124
  %128 = vst.msk [vmem:[#allocation2 + $0x8] sm:$0xff] %vm126, %v125
  // Predicated region
  $region30: #{decoder_forward.20} parent=0 // pred_check
    %p129 = pneg %p23
  $region31: #{decoder_forward.20} parent=0 // pred_check_branch
    %131 = sbr.rel (%p129) target = $region33
  $region32: #{decoder_forward.20} parent=0 // pred_region
    %v132 = vld [vmem:[#allocation2] sm:$0xff]
    %v133 = vld [vmem:[#allocation2 + $0x8] sm:$0xff]
    %v134 = vld [vmem:[%s2] sm:$0x1]
    %v136 = vlaneseq
    %v137 = vshrl.u32 %v136, 7
    %v138 = vsub.s32 0, %v137
    %v139 = vrot.slane %v134, %v138
    %v141 = vadd.f32 %v132, %v139
    %v142 = vadd.f32 %v133, %v139
    %v143 = vld [vmem:[%s3] sm:$0xff]
    %v144 = vld [vmem:[%s3 + $0x8] sm:$0xff]
    %v145 = vadd.f32 %v141, %v143
    %v146 = vadd.f32 %v142, %v144
    %v147 = vsel %vm126, %v145, 0.0
    %148 = vadd.xlane.f32.xlu0 %v147
    %v149 = vpop.xlane.xlu0 %148
    %v150 = vsel %vm126, %v146, 0.0
    %151 = vadd.xlane.f32.xlu0 %v150
    %v152 = vpop.xlane.xlu0 %151
    %v153 = vrcp.pop 32.0
    %v154 = vmul.f32 %v149, %v153
    %v155 = vmul.f32 %v152, %v153
    %v156 = vsub.f32 %v145, %v154
    %v157 = vsub.f32 %v146, %v155
    %v158 = vmul.f32 %v156, %v156
    %v159 = vmul.f32 %v157, %v157
    %v160 = vsel %vm126, %v158, 0.0
    %161 = vadd.xlane.f32.xlu0 %v160
    %v162 = vpop.xlane.xlu0 %161
    %v163 = vsel %vm126, %v159, 0.0
    %164 = vadd.xlane.f32.xlu0 %v163
    %v165 = vpop.xlane.xlu0 %164
    %v166 = vmul.f32 %v162, %v153
    %v167 = vmul.f32 %v165, %v153
    %v168 = vadd.f32 %v166, 1e-05
    %v169 = vadd.f32 %v167, 1e-05
    %v170 = vrsqrt.pop %v168
    %v171 = vrsqrt.pop %v169
    %v172 = vmul.f32 %v156, %v170
    %v173 = vmul.f32 %v157, %v171
    %v174 = vld [vmem:[%s4] sm:$0x1]
    %v176 = vlaneseq
    %v177 = vshrl.u32 %v176, 7
    %v178 = vsub.s32 0, %v177
    %v179 = vrot.slane %v174, %v178
    %v181 = vmul.f32 %v179, %v172
    %v182 = vmul.f32 %v179, %v173
    %v183 = vld [vmem:[%s5] sm:$0x1]
    %v185 = vlaneseq
    %v186 = vshrl.u32 %v185, 7
    %v187 = vsub.s32 0, %v186
    %v188 = vrot.slane %v183, %v187
    %v190 = vadd.f32 %v181, %v188
    %v191 = vadd.f32 %v182, %v188
    %192 = vst.msk [vmem:[%s6] sm:$0xff] %vm126, %v190
    %193 = vst.msk [vmem:[%s6 + $0x8] sm:$0xff] %vm126, %v191
  $region33: #{decoder_forward.20} parent=0 // pred_fallthru
    _
  // Predicated region
  $region34: #{decoder_forward.20} parent=0 // pred_check
    _
  $region35: #{decoder_forward.20} parent=0 // pred_check_branch
    %195 = sbr.rel (0) target = $region37
  $region36: #{decoder_forward.20} parent=0 // pred_region
    _
  $region37: #{decoder_forward.20} parent=0 // pred_fallthru
    _
  // Predicated region
  $region38: #{decoder_forward.20} parent=0 // pred_check
    _
  $region39: #{decoder_forward.20} parent=0 // pred_check_branch
    %197 = sbr.rel (0) target = $region41
  $region40: #{decoder_forward.20} parent=0 // pred_region
    _
  $region41: #{decoder_forward.20} parent=0 // pred_fallthru
    _

// kernel: decoder_forward.27
$region0: #{decoder_forward.27}
  #allocation0 [shape = 'u32[]', space=smem, size = 0x4, offset = 0x4, fixed_abs, tag = 'smem constant byte address 0x4 - core index']
  #allocation1 [shape = 'u32[144,128]{1,0:T(1,128)}', space=vmem, size = 0x12000, scoped, tag = 'internal scratch']
  #allocation2 [shape = 'f32[16,32]{1,0:T(8,128)}', space=vmem, size = 0x2000, scoped, tag = 'scratch operand']
  %s0 = inlined_call_operand.vmem [shape: f32[16,64], index: 0, kind: input, shape index: {}]
  %s1 = inlined_call_operand.vmem [shape: f32[64,32], index: 1, kind: input, shape index: {}]
  %s2 = inlined_call_operand.vmem [shape: f32[1,32], index: 2, kind: input, shape index: {}]
  %s3 = inlined_call_operand.vmem [shape: f32[16,32], index: 3, kind: input, shape index: {}]
  %s4 = inlined_call_operand.vmem [shape: f32[1,32], index: 4, kind: input, shape index: {}]
  %s5 = inlined_call_operand.vmem [shape: f32[1,32], index: 5, kind: input, shape index: {}]
  %s6 = inlined_call_operand.hbm [shape: f32[16,32], index: 6, kind: output, shape index: {}]
  %s7 = sld [smem:[#allocation0]]
  $region42: #{decoder_forward.27} parent=0
    _
  %s9 = ssub.s32 1, %s7
  %s10 = scalar_select 0, %s9, %s7
  $region1: #{decoder_forward.27} parent=0
    #allocation3 [shape = 'u8[8192]{0}', space=vmem, size = 0x2000, scoped, tag = 'output window, operand 0, single buffered']
    #allocation4 [shape = 's32[1]{0}', space=sflag, size = 0x4, scoped, tag = 'scoped memory for decoder_forward.27']
    %11 = vsyncpa [#allocation4], 0
    // Predicated region
    $region2: #{decoder_forward.27} parent=1 // pred_check
      _
    $region3: #{decoder_forward.27} parent=1 // pred_check_branch
      %13 = sbr.rel (0) target = $region5
    $region4: #{decoder_forward.27} parent=1 // pred_region
      _
    $region5: #{decoder_forward.27} parent=1 // pred_fallthru
      _
    // Predicated region
    $region6: #{decoder_forward.27} parent=1 // pred_check
      _
    $region7: #{decoder_forward.27} parent=1 // pred_check_branch
      %15 = sbr.rel (0) target = $region9
    $region8: #{decoder_forward.27} parent=1 // pred_region
      _
    $region9: #{decoder_forward.27} parent=1 // pred_fallthru
      _
    // Predicated region
    $region10: #{decoder_forward.27} parent=1 // pred_check
      _
    $region11: #{decoder_forward.27} parent=1 // pred_check_branch
      %17 = sbr.rel (0) target = $region13
    $region12: #{decoder_forward.27} parent=1 // pred_region
      _
    $region13: #{decoder_forward.27} parent=1 // pred_fallthru
      _
    // Predicated region
    $region14: #{decoder_forward.27} parent=1 // pred_check
      _
    $region15: #{decoder_forward.27} parent=1 // pred_check_branch
      %19 = sbr.rel (0) target = $region17
    $region16: #{decoder_forward.27} parent=1 // pred_region
      _
    $region17: #{decoder_forward.27} parent=1 // pred_fallthru
      _
    // Predicated region
    $region18: #{decoder_forward.27} parent=1 // pred_check
      _
    $region19: #{decoder_forward.27} parent=1 // pred_check_branch
      %21 = sbr.rel (0) target = $region21
    $region20: #{decoder_forward.27} parent=1 // pred_region
      _
    $region21: #{decoder_forward.27} parent=1 // pred_fallthru
      _
    // Predicated region
    $region22: #{decoder_forward.27} parent=1 // pred_check
      _
    $region23: #{decoder_forward.27} parent=1 // pred_check_branch
      %23 = sbr.rel (0) target = $region25
    $region24: #{decoder_forward.27} parent=1 // pred_region
      _
    $region25: #{decoder_forward.27} parent=1 // pred_fallthru
      _
    %p24 = scmp.eq.s32.totalorder 0, 0
    // Predicated region
    $region26: #{decoder_forward.27} parent=1 // pred_check
      %p25 = pneg %p24
    $region27: #{decoder_forward.27} parent=1 // pred_check_branch
      %27 = sbr.rel (%p25) target = $region29
    $region28: #{decoder_forward.27} parent=1 // pred_region
      %vm28 = vcmask 261120
      %29 = vst.msk [vmem:[#allocation2] sm:$0xff] %vm28, 0.0
      %30 = vst.msk [vmem:[#allocation2 + $0x8] sm:$0xff] %vm28, 0.0
    $region29: #{decoder_forward.27} parent=1 // pred_fallthru
      _
    %v31 = vld [vmem:[#allocation2] sm:$0xff]
    %v32 = vld [vmem:[#allocation2 + $0x8] sm:$0xff]
    %v33 = vld [vmem:[%s0] sm:$0xff]
    %v34 = vld [vmem:[%s0 + $0x8] sm:$0xff]
    %v35 = vld [vmem:[%s1] sm:$0xff]
    %v36 = vld [vmem:[%s1 + $0x8] sm:$0xff]
    %v37 = vld [vmem:[%s1 + $0x10] sm:$0xff]
    %v38 = vld [vmem:[%s1 + $0x18] sm:$0xff]
    %v39 = vld [vmem:[%s1 + $0x20] sm:$0xff]
    %v40 = vld [vmem:[%s1 + $0x28] sm:$0xff]
    %v41 = vld [vmem:[%s1 + $0x30] sm:$0xff]
    %v42 = vld [vmem:[%s1 + $0x38] sm:$0xff]
    %vm43 = vcmask 523264
    %v45 = vsel %vm43, %v33, 0
    %v48 = vsel %vm43, %v34, 0
    %50 = vmatprep.subr.mxu0 0.0
    %51 = vmatpush1.msra.mxu0 0.0
    %52 = vmatprep.subr.mxu0 0.0
    %53 = vmatpush1.msra.mxu0 0.0
    %54 = vmatprep.subr.mxu0 0.0
    %55 = vmatpush1.msra.mxu0 0.0
    %56 = vmatprep.subr.mxu0 0.0
    %57 = vmatpush1.msra.mxu0 0.0
    %58 = vmatprep.subr.mxu0 0.0
    %59 = vmatpush1.msra.mxu0 0.0
    %60 = vmatprep.subr.mxu0 0.0
    %61 = vmatpush1.msra.mxu0 0.0
    %62 = vmatprep.subr.mxu0 0.0
    %63 = vmatpush1.msra.mxu0 0.0
    %64 = vmatprep.subr.mxu0 0.0
    %65 = vmatpush1.msra.mxu0 0.0
    %66 = vmatprep.subr.mxu0 0.0
    %67 = vmatpush1.msra.mxu0 %v42
    %68 = vmatprep.subr.mxu0 0.0
    %69 = vmatpush1.msra.mxu0 %v41
    %70 = vmatprep.subr.mxu0 0.0
    %71 = vmatpush1.msra.mxu0 %v40
    %72 = vmatprep.subr.mxu0 0.0
    %73 = vmatpush1.msra.mxu0 %v39
    %74 = vmatprep.subr.mxu0 0.0
    %75 = vmatpush1.msra.mxu0 %v38
    %76 = vmatprep.subr.mxu0 0.0
    %77 = vmatpush1.msra.mxu0 %v37
    %78 = vmatprep.subr.mxu0 0.0
    %79 = vmatpush1.msra.mxu0 %v36
    %80 = vmatprep.subr.mxu0 0.0
    %81 = vmatpush1.msra.mxu0 %v35
    %82 = vmatprep.subr.mxu0 0.0
    %83 = vmatpush2.msra.mxu0 0.0
    %84 = vmatprep.subr.mxu0 0.0
    %85 = vmatpush2.msra.mxu0 0.0
    %86 = vmatprep.subr.mxu0 0.0
    %87 = vmatpush2.msra.mxu0 0.0
    %88 = vmatprep.subr.mxu0 0.0
    %89 = vmatpush2.msra.mxu0 0.0
    %90 = vmatprep.subr.mxu0 0.0
    %91 = vmatpush2.msra.mxu0 0.0
    %92 = vmatprep.subr.mxu0 0.0
    %93 = vmatpush2.msra.mxu0 0.0
    %94 = vmatprep.subr.mxu0 0.0
    %95 = vmatpush2.msra.mxu0 0.0
    %96 = vmatprep.subr.mxu0 0.0
    %97 = vmatpush2.msra.mxu0 0.0
    %98 = vmatprep.subr.mxu0 0.0
    %99 = vmatpush2.msra.mxu0 0.0
    %100 = vmatprep.subr.mxu0 0.0
    %101 = vmatpush2.msra.mxu0 0.0
    %102 = vmatprep.subr.mxu0 0.0
    %103 = vmatpush2.msra.mxu0 0.0
    %104 = vmatprep.subr.mxu0 0.0
    %105 = vmatpush2.msra.mxu0 0.0
    %106 = vmatprep.subr.mxu0 0.0
    %107 = vmatpush2.msra.mxu0 0.0
    %108 = vmatprep.subr.mxu0 0.0
    %109 = vmatpush2.msra.mxu0 0.0
    %110 = vmatprep.subr.mxu0 0.0
    %111 = vmatpush2.msra.mxu0 0.0
    %112 = vmatprep.subr.mxu0 0.0
    %113 = vmatpush2.msra.mxu0 0.0
    %114 = vmatprep.mubr.f32.mxu0 0.0
    %115 = vmatmul.mubr.f32.gmra.mxu0 %v45
    %v116 = vpop.f32.mrf.mxu0
    %v117 = vadd.f32 0.0, %v116
    %v118 = vpop.f32.mrf.mxu0
    %119 = vmatprep.mubr.f32.mxu0 0.0
    %120 = vmatmul.mubr.f32.gmra.mxu0 %v48
    %v121 = vpop.f32.mrf.mxu0
    %v122 = vadd.f32 0.0, %v121
    %v123 = vpop.f32.mrf.mxu0
    %124 = vdwg.mxu0
    %v125 = vadd.f32 %v31, %v117
    %v126 = vadd.f32 %v32, %v122
    %vm127 = vcmask 261120
    %128 = vst.msk [vmem:[#allocation2] sm:$0xff] %vm127, %v125
    %129 = vst.msk [vmem:[#allocation2 + $0x8] sm:$0xff] %vm127, %v126
    // Predicated region
    $region30: #{decoder_forward.27} parent=1 // pred_check
      %p130 = pneg %p24
    $region31: #{decoder_forward.27} parent=1 // pred_check_branch
      %132 = sbr.rel (%p130) target = $region33
    $region32: #{decoder_forward.27} parent=1 // pred_region
      %v133 = vld [vmem:[#allocation2] sm:$0xff]
      %v134 = vld [vmem:[#allocation2 + $0x8] sm:$0xff]
      %v135 = vld [vmem:[%s2] sm:$0x1]
      %v137 = vlaneseq
      %v138 = vshrl.u32 %v137, 7
      %v139 = vsub.s32 0, %v138
      %v140 = vrot.slane %v135, %v139
      %v142 = vadd.f32 %v133, %v140
      %v143 = vadd.f32 %v134, %v140
      %v144 = vld [vmem:[%s3] sm:$0xff]
      %v145 = vld [vmem:[%s3 + $0x8] sm:$0xff]
      %v146 = vadd.f32 %v142, %v144
      %v147 = vadd.f32 %v143, %v145
      %v148 = vsel %vm127, %v146, 0.0
      %149 = vadd.xlane.f32.xlu0 %v148
      %v150 = vpop.xlane.xlu0 %149
      %v151 = vsel %vm127, %v147, 0.0
      %152 = vadd.xlane.f32.xlu0 %v151
      %v153 = vpop.xlane.xlu0 %152
      %v154 = vrcp.pop 32.0
      %v155 = vmul.f32 %v150, %v154
      %v156 = vmul.f32 %v153, %v154
      %v157 = vsub.f32 %v146, %v155
      %v158 = vsub.f32 %v147, %v156
      %v159 = vmul.f32 %v157, %v157
      %v160 = vmul.f32 %v158, %v158
      %v161 = vsel %vm127, %v159, 0.0
      %162 = vadd.xlane.f32.xlu0 %v161
      %v163 = vpop.xlane.xlu0 %162
      %v164 = vsel %vm127, %v160, 0.0
      %165 = vadd.xlane.f32.xlu0 %v164
      %v166 = vpop.xlane.xlu0 %165
      %v167 = vmul.f32 %v163, %v154
      %v168 = vmul.f32 %v166, %v154
      %v169 = vadd.f32 %v167, 1e-05
      %v170 = vadd.f32 %v168, 1e-05
      %v171 = vrsqrt.pop %v169
      %v172 = vrsqrt.pop %v170
      %v173 = vmul.f32 %v157, %v171
      %v174 = vmul.f32 %v158, %v172
      %v175 = vld [vmem:[%s4] sm:$0x1]
      %v177 = vlaneseq
      %v178 = vshrl.u32 %v177, 7
      %v179 = vsub.s32 0, %v178
      %v180 = vrot.slane %v175, %v179
      %v182 = vmul.f32 %v180, %v173
      %v183 = vmul.f32 %v180, %v174
      %v184 = vld [vmem:[%s5] sm:$0x1]
      %v186 = vlaneseq
      %v187 = vshrl.u32 %v186, 7
      %v188 = vsub.s32 0, %v187
      %v189 = vrot.slane %v184, %v188
      %v191 = vadd.f32 %v182, %v189
      %v192 = vadd.f32 %v183, %v189
      %193 = vst.msk [vmem:[#allocation3] sm:$0xff] %vm127, %v191
      %194 = vst.msk [vmem:[#allocation3 + $0x8] sm:$0xff] %vm127, %v192
    $region33: #{decoder_forward.27} parent=1 // pred_fallthru
      _
    // Predicated region
    $region34: #{decoder_forward.27} parent=1 // pred_check
      _
    $region35: #{decoder_forward.27} parent=1 // pred_check_branch
      %196 = sbr.rel (0) target = $region37
    $region36: #{decoder_forward.27} parent=1 // pred_region
      %s198 = ssub.s32 256, 256
      %199 = vsyncadd [#allocation4], %s198
      %s200 = sshll.u32 [#allocation3], 4
      %s201 = int_to_ptr.vmem [resolvable:$true] %s200
      %206 = dma.vmem_to_hbm [thread:$0]  %s201, 256, %s6, [#allocation4], 128, 128, 8
    $region37: #{decoder_forward.27} parent=1 // pred_fallthru
      _
    // Predicated region
    $region38: #{decoder_forward.27} parent=1 // pred_check
      _
    $region39: #{decoder_forward.27} parent=1 // pred_check_branch
      %208 = sbr.rel (0) target = $region41
    $region40: #{decoder_forward.27} parent=1 // pred_region
      %209 = dma.done [#allocation4], 256
    $region41: #{decoder_forward.27} parent=1 // pred_fallthru
      _
    %210 = vsyncpa [#allocation4], 1

</llo_original>
